<compile_context>
chip_gen: v7x
topology: tpu7x:2x2x1
jax: 0.10.0
libtpu: 0.0.40
codegen_flags: <defaults>
</compile_context>

<pallas_src>
import math
from functools import partial

import jax
import jax.numpy as jnp
from jax import lax
from jax.experimental import pallas as pl
from jax.experimental.pallas import tpu as pltpu

_LN_EPS = 1e-5                       # nn.LayerNorm default
_SQRT_2_OVER_PI = 0.7978845608028654


def _round_up(x, m):
    return (x + m - 1) // m * m


def _compute_vmem_limit():
    # Generation-aware scoped-VMEM limit: leave headroom for Mosaic internal scratch
    # on v7x (64 MiB per TC) while letting v5e/v6e (128 MiB) hold larger resident blocks.
    cap = 128 * 1024 * 1024
    try:
        cap = int(pltpu.get_tpu_info().vmem_capacity_bytes)
    except Exception:
        pass
    if cap <= 64 * 1024 * 1024:
        return max(16 * 1024 * 1024, int(cap * 0.55))
    return min(100 * 1024 * 1024, int(cap * 0.78))


_VMEM_LIMIT = _compute_vmem_limit()


def _cparams():
    return pltpu.CompilerParams(dimension_semantics=("parallel",),
                                vmem_limit_bytes=_VMEM_LIMIT)


def _resident(shape):
    # Operand fetched once (constant index map) -> single-buffered to halve VMEM use.
    nd = len(shape)
    return pl.BlockSpec(shape, lambda b: (0,) * nd, pipeline_mode=pl.Buffered(1))


def _layer_norm(x, gamma, beta):
    mu = jnp.mean(x, axis=-1, keepdims=True)
    xc = x - mu
    var = jnp.mean(xc * xc, axis=-1, keepdims=True)
    return (xc * lax.rsqrt(var + _LN_EPS)) * gamma + beta


# ----------------------------- Pallas kernels -----------------------------

def _embed_kernel(xp_ref, wT_ref, b_ref, cls0_ref, pos_ref, o_ref):
    """patch_to_embedding + cls-token concat + positional embedding (one batch item)."""
    xp = xp_ref[0].astype(jnp.bfloat16)                               # (P, patch_dim)
    emb = jnp.dot(xp, wT_ref[...], preferred_element_type=jnp.float32)
    emb = emb + b_ref[...] + pos_ref[...]                             # (P, dim)
    tok = jnp.concatenate([cls0_ref[...], emb], axis=0)               # (N, dim)
    o_ref[0] = tok.astype(o_ref.dtype)


def _attn_block_kernel(x_ref, g_ref, b_ref, qkvw_ref, outw_ref, outb_ref, o_ref,
                       *, heads, dh):
    """Residual(PreNorm(Attention)) for one batch item, fully fused."""
    dim = heads * dh
    x = x_ref[0].astype(jnp.float32)                                  # pre-LN residual
    xin = _layer_norm(x, g_ref[...], b_ref[...]).astype(jnp.bfloat16)

    # MaskedQKV has no bias; head gates + softmax scale (dim**-0.5, full model dim,
    # exactly as the reference) were folded into qkvw at prep time.
    qkv = jnp.dot(xin, qkvw_ref[...],
                  preferred_element_type=jnp.float32).astype(jnp.bfloat16)  # (N, 3*dim)

    # TODO(synk): switch to an online-softmax (flash) form tiled over KV before
    # scaling N — the per-head (N, N) score block is materialized here.
    outs = []
    for h in range(heads):                                            # static unroll
        qh = qkv[:, h * dh:(h + 1) * dh]
        kh = qkv[:, dim + h * dh:dim + (h + 1) * dh]
        vh = qkv[:, 2 * dim + h * dh:2 * dim + (h + 1) * dh]
        s = lax.dot_general(qh, kh, (((1,), (1,)), ((), ())),
                            preferred_element_type=jnp.float32)       # (N, N)
        s = s - jnp.max(s, axis=-1, keepdims=True)
        e = jnp.exp(s)
        p = e * pl.reciprocal(jnp.sum(e, axis=-1, keepdims=True), approx=True)
        outs.append(jnp.dot(p.astype(jnp.bfloat16), vh,
                            preferred_element_type=jnp.float32))      # (N, dh)
    attn = jnp.concatenate(outs, axis=-1).astype(jnp.bfloat16)        # (N, dim)

    y = jnp.dot(attn, outw_ref[...], preferred_element_type=jnp.float32) + outb_ref[...]
    o_ref[0] = (y + x).astype(o_ref.dtype)                            # fused residual


def _ff_block_kernel(x_ref, g_ref, b_ref, w1_ref, b1_ref, w2_ref, b2_ref, o_ref):
    """Residual(PreNorm(FeedForward)) for one batch item, fully fused."""
    x = x_ref[0].astype(jnp.float32)
    xin = _layer_norm(x, g_ref[...], b_ref[...]).astype(jnp.bfloat16)
    h = jnp.dot(xin, w1_ref[...], preferred_element_type=jnp.float32) + b1_ref[...]
    # TODO(synk): nn.GELU() is the exact erf GELU; the tanh approximation keeps the
    # epilogue on the EUP (one tanh) instead of a ~12-op VALU erf polynomial.
    h = 0.5 * h * (1.0 + jnp.tanh(_SQRT_2_OVER_PI * (h + 0.044715 * h * h * h)))
    y = jnp.dot(h.astype(jnp.bfloat16), w2_ref[...],
                preferred_element_type=jnp.float32) + b2_ref[...]
    o_ref[0] = (y + x).astype(o_ref.dtype)


def _classifier_kernel(cls_ref, g_ref, b_ref, wT_ref, bias_ref, o_ref):
    """exist_classifier (LN + Linear) on the CLS tokens; one head per grid step."""
    x = cls_ref[0].astype(jnp.float32)                                # (B, dim)
    xin = _layer_norm(x, g_ref[0], b_ref[0]).astype(jnp.bfloat16)
    o_ref[0] = jnp.dot(xin, wT_ref[0],
                       preferred_element_type=jnp.float32) + bias_ref[0]


# ----------------------------- pallas_call wrappers -----------------------------

def patch_embed(patches, pe_wT, pe_b, cls_pos0, pos_rest):
    B, P, PD = patches.shape
    dim = pe_wT.shape[1]
    N = P + 1
    return pl.pallas_call(
        _embed_kernel,
        out_shape=jax.ShapeDtypeStruct((B, N, dim), jnp.bfloat16),
        grid=(B,),
        in_specs=[pl.BlockSpec((1, P, PD), lambda b: (b, 0, 0)),
                  _resident((PD, dim)), _resident((1, dim)),
                  _resident((1, dim)), _resident((P, dim))],
        out_specs=pl.BlockSpec((1, N, dim), lambda b: (b, 0, 0)),
        compiler_params=_cparams(),
    )(patches, pe_wT, pe_b, cls_pos0, pos_rest)


def attn_block(x, w):
    B, N, dim = x.shape
    return pl.pallas_call(
        partial(_attn_block_kernel, heads=w['heads'], dh=w['dh']),
        out_shape=jax.ShapeDtypeStruct((B, N, dim), x.dtype),
        grid=(B,),
        in_specs=[pl.BlockSpec((1, N, dim), lambda b: (b, 0, 0)),
                  _resident((1, dim)), _resident((1, dim)),
                  _resident((dim, 3 * dim)),
                  _resident((dim, dim)), _resident((1, dim))],
        out_specs=pl.BlockSpec((1, N, dim), lambda b: (b, 0, 0)),
        compiler_params=_cparams(),
    )(x, w['ln1_g'], w['ln1_b'], w['qkv_wT'], w['out_wT'], w['out_b'])


def ff_block(x, w):
    B, N, dim = x.shape
    mlp = w['ff1_wT'].shape[1]
    return pl.pallas_call(
        _ff_block_kernel,
        out_shape=jax.ShapeDtypeStruct((B, N, dim), x.dtype),
        grid=(B,),
        in_specs=[pl.BlockSpec((1, N, dim), lambda b: (b, 0, 0)),
                  _resident((1, dim)), _resident((1, dim)),
                  _resident((dim, mlp)), _resident((1, mlp)),
                  _resident((mlp, dim)), _resident((1, dim))],
        out_specs=pl.BlockSpec((1, N, dim), lambda b: (b, 0, 0)),
        compiler_params=_cparams(),
    )(x, w['ln2_g'], w['ln2_b'], w['ff1_wT'], w['ff1_b'], w['ff2_wT'], w['ff2_b'])


def classifier_heads(cls_stack, cp, num_classes):
    C, B, dim = cls_stack.shape
    OP = cp['wT'].shape[-1]
    out = pl.pallas_call(
        _classifier_kernel,
        out_shape=jax.ShapeDtypeStruct((C, B, OP), jnp.float32),
        grid=(C,),
        in_specs=[pl.BlockSpec((1, B, dim), lambda c: (c, 0, 0)),
                  pl.BlockSpec((1, 1, dim), lambda c: (c, 0, 0)),
                  pl.BlockSpec((1, 1, dim), lambda c: (c, 0, 0)),
                  pl.BlockSpec((1, dim, OP), lambda c: (c, 0, 0)),
                  pl.BlockSpec((1, 1, OP), lambda c: (c, 0, 0))],
        out_specs=pl.BlockSpec((1, B, OP), lambda c: (c, 0, 0)),
        compiler_params=_cparams(),
    )(cls_stack, cp['ln_g'], cp['ln_b'], cp['wT'], cp['b'])
    return [out[c, :, :num_classes] for c in range(C)]


# ----------------------------- parameter prep -----------------------------

def gate_from_mask(mask):
    # TODO(synk): reference uses Bern.apply (stochastic straight-through Bernoulli on
    # sigmoid(mask)); replaced with the deterministic inference gate sigmoid(m) >= 0.5.
    return (jax.nn.sigmoid(mask) >= 0.5).astype(jnp.float32)


def _prep_block(blk, heads, dh, scale):
    dim = heads * dh
    # MaskedQKV gate: per-head gate repeated over head_dim, tiled over (q, k, v).
    qkv_gate = jnp.tile(jnp.repeat(gate_from_mask(blk['qkv_mask']), dh), 3)
    out_gate = gate_from_mask(blk['out_mask'])
    ff1_gate = gate_from_mask(blk['ff1_mask'])
    ff2_gate = gate_from_mask(blk['ff2_mask'])

    qkv_wT = (qkv_gate[:, None] * blk['qkv_w']).T                     # (dim, 3*dim)
    # Fold the softmax scale into the Q columns -> no per-score multiply in the kernel.
    col_scale = jnp.concatenate([jnp.full((dim,), scale, jnp.float32),
                                 jnp.ones((2 * dim,), jnp.float32)])
    qkv_wT = qkv_wT * col_scale[None, :]

    return dict(
        heads=heads, dh=dh,
        ln1_g=blk['ln1_g'].reshape(1, dim), ln1_b=blk['ln1_b'].reshape(1, dim),
        ln2_g=blk['ln2_g'].reshape(1, dim), ln2_b=blk['ln2_b'].reshape(1, dim),
        qkv_wT=qkv_wT.astype(jnp.bfloat16),                           # bias=False: skipped
        out_wT=(out_gate[:, None] * blk['out_w']).T.astype(jnp.bfloat16),
        out_b=(out_gate * blk['out_b']).reshape(1, dim).astype(jnp.float32),
        ff1_wT=(ff1_gate[:, None] * blk['ff1_w']).T.astype(jnp.bfloat16),
        ff1_b=(ff1_gate * blk['ff1_b']).reshape(1, -1).astype(jnp.float32),
        ff2_wT=(ff2_gate[:, None] * blk['ff2_w']).T.astype(jnp.bfloat16),
        ff2_b=(ff2_gate * blk['ff2_b']).reshape(1, dim).astype(jnp.float32),
    )


def _prep_classifiers(cps, num_classes, dim):
    # Pad logits to a 128-lane-dense width (unmasked vst); sliced back in the wrapper.
    OP = _round_up(max(num_classes, 128), 128)
    n = len(cps)
    ln_g = jnp.stack([cp['ln_g'] for cp in cps]).reshape(n, 1, dim)
    ln_b = jnp.stack([cp['ln_b'] for cp in cps]).reshape(n, 1, dim)
    wT = jnp.stack([jnp.zeros((dim, OP), jnp.float32).at[:, :num_classes].set(cp['w'].T)
                    for cp in cps]).astype(jnp.bfloat16)
    b = jnp.stack([jnp.zeros((OP,), jnp.float32).at[:num_classes].set(cp['b'])
                   for cp in cps]).reshape(n, 1, OP)
    return dict(ln_g=ln_g, ln_b=ln_b, wT=wT, b=b)


def init_params(key, cfg):
    dim, heads = cfg['dim'], cfg['heads']
    mlp_dim, depth, nc = cfg['mlp_dim'], cfg['depth'], cfg['num_classes']
    patch_dim = cfg['channels'] * cfg['patch_size'] ** 2
    num_patches = (cfg['image_size'] // cfg['patch_size']) ** 2

    keys = iter(jax.random.split(key, 512))

    def nrm(shape, scale):
        return scale * jax.random.normal(next(keys), shape, jnp.float32)

    params = {
        'cls_token': jax.random.normal(next(keys), (1, 1, dim), jnp.float32),
        'pos_embedding': jax.random.normal(next(keys), (1, num_patches + 1, dim),
                                           jnp.float32),
        'pe_w': nrm((dim, patch_dim), 1.0 / math.sqrt(patch_dim)),
        'pe_b': nrm((dim,), 0.02),
        'blocks': [],
        'classifiers': [],
    }

    for _ in range(depth):
        params['blocks'].append({
            'ln1_g': jnp.ones((dim,), jnp.float32),
            'ln1_b': jnp.zeros((dim,), jnp.float32),
            'qkv_w': nrm((3 * dim, dim), 1.0 / math.sqrt(dim)),       # MaskedQKV.weight
            'qkv_mask': jax.random.normal(next(keys), (heads,), jnp.float32),
            'out_w': nrm((dim, dim), 1.0 / math.sqrt(dim)),           # MaskedLinear to_out
            'out_b': nrm((dim,), 0.02),
            'out_mask': jax.random.normal(next(keys), (dim,), jnp.float32),
            'ln2_g': jnp.ones((dim,), jnp.float32),
            'ln2_b': jnp.zeros((dim,), jnp.float32),
            'ff1_w': nrm((mlp_dim, dim), 1.0 / math.sqrt(dim)),
            'ff1_b': nrm((mlp_dim,), 0.02),
            'ff1_mask': jax.random.normal(next(keys), (mlp_dim,), jnp.float32),
            'ff2_w': nrm((dim, mlp_dim), 1.0 / math.sqrt(mlp_dim)),
            'ff2_b': nrm((dim,), 0.02),
            'ff2_mask': jax.random.normal(next(keys), (dim,), jnp.float32),
        })

    # exist_classifiers_depth exactly as in __init__
    exist_depths = []
    for frac in (0.25, 0.5, 0.75, 1.0):
        d = math.floor(cfg['full_depth'] * frac)
        if d <= cfg['depth']:
            exist_depths.append(d)
        else:
            break

    for _ in exist_depths:
        params['classifiers'].append({
            'ln_g': jnp.ones((dim,), jnp.float32),
            'ln_b': jnp.zeros((dim,), jnp.float32),
            'w': nrm((nc, dim), 1.0 / math.sqrt(dim)),
            'b': nrm((nc,), 0.02),
        })
    return params, exist_depths


# ----------------------------- forward pass -----------------------------

def vit_dist_forward(params, img, cfg, exist_depths):
    B, C, H, W = img.shape
    p = cfg['patch_size']
    dim, heads, nc = cfg['dim'], cfg['heads'], cfg['num_classes']
    dh = dim // heads
    hp, wp = H // p, W // p
    P = hp * wp
    scale = dim ** (-0.5)          # full model dim — exactly as the reference Attention

    # rearrange 'b c (h p1) (w p2) -> b (h w) (p1 p2 c)'
    xp = img.reshape(B, C, hp, p, wp, p)
    xp = jnp.transpose(xp, (0, 2, 4, 3, 5, 1)).reshape(B, P, p * p * C)

    # hoisted parameter prep (gates + softmax scale folded into bf16 weights, once)
    pe_wT = params['pe_w'].T.astype(jnp.bfloat16)
    pe_b = params['pe_b'].reshape(1, dim).astype(jnp.float32)
    pos = params['pos_embedding'][0].astype(jnp.float32)               # (P+1, dim)
    cls_pos0 = (params['cls_token'][0, 0] + pos[0]).reshape(1, dim)
    pos_rest = pos[1:]
    blocks = [_prep_block(blk, heads, dh, scale) for blk in params['blocks']]
    cls_p = _prep_classifiers(params['classifiers'], nc, dim)

    # patch_to_embedding + cls token + positional embedding (fused) -> (B, N, dim) bf16
    x = patch_embed(xp, pe_wT, pe_b, cls_pos0, pos_rest)

    cls_tokens = []
    cnt = 0
    for i, w in enumerate(blocks):
        x = attn_block(x, w)     # Residual(PreNorm(Attention)) — one fused kernel
        x = ff_block(x, w)       # Residual(PreNorm(FeedForward)) — one fused kernel
        if cnt < len(exist_depths) and (i + 1) == exist_depths[cnt]:
            # exist_classifier on the CLS token only == classifying all tokens and
            # then taking [:, 0] (LN + Linear are per-token).
            cls_tokens.append(x[:, 0, :])
            cnt += 1

    if not cls_tokens:
        return []
    cls_stack = jnp.stack(cls_tokens, axis=0)                           # (n_heads, B, dim)
    return classifier_heads(cls_stack, cls_p, nc)


# ----------------------------- driver -----------------------------

if __name__ == "__main__":
    cfg = dict(training_mode='mask', drop=False, image_size=16, patch_size=4,
               num_classes=10, dim=32, depth=4, full_depth=4, heads=4, mlp_dim=64,
               self_distillation=True, channels=3)

    key = jax.random.PRNGKey(0)
    kp, kx = jax.random.split(key)
    params, exist_depths = init_params(kp, cfg)

    img = jax.random.normal(
        kx, (2, cfg['channels'], cfg['image_size'], cfg['image_size']), jnp.float32)

    fwd = jax.jit(lambda prm, im: vit_dist_forward(prm, im, cfg, tuple(exist_depths)))
    outs = jax.block_until_ready(fwd(params, img))

    assert len(outs) == len(exist_depths)
    for o in outs:
        assert o.shape == (2, cfg['num_classes'])
        assert bool(jnp.all(jnp.isfinite(o)))
    print("KERNEL_OK")
</pallas_src>

<mosaic_0001>
module attributes {stable_mosaic.version = 11 : i64} {
  func.func @_embed_kernel(%arg0: i32, %arg1: memref<1x16x48xf32, #tpu.memory_space<vmem>>, %arg2: memref<48x32xbf16, #tpu.memory_space<vmem>>, %arg3: memref<1x32xf32, #tpu.memory_space<vmem>>, %arg4: memref<1x32xf32, #tpu.memory_space<vmem>>, %arg5: memref<16x32xf32, #tpu.memory_space<vmem>>, %arg6: memref<1x17x32xbf16, #tpu.memory_space<vmem>>) attributes {dimension_semantics = [#tpu.dimension_semantics<parallel>], iteration_bounds = array<i64: 2>, scalar_prefetch = 0 : i64, scratch_operands = 0 : i64, tpu.core_type = #tpu.core_type<tc>, window_params = [{transform_indices = @transform_0, window_bounds = array<i64: 1, 16, 48>}, {pipeline_mode = #tpu.pipeline_mode<synchronous>, transform_indices = @transform_1, window_bounds = array<i64: 48, 32>}, {pipeline_mode = #tpu.pipeline_mode<synchronous>, transform_indices = @transform_2, window_bounds = array<i64: 1, 32>}, {pipeline_mode = #tpu.pipeline_mode<synchronous>, transform_indices = @transform_3, window_bounds = array<i64: 1, 32>}, {pipeline_mode = #tpu.pipeline_mode<synchronous>, transform_indices = @transform_4, window_bounds = array<i64: 16, 32>}, {transform_indices = @transform_5, window_bounds = array<i64: 1, 17, 32>}]} {
    %c0 = arith.constant 0 : index
    %c0_0 = arith.constant 0 : index
    %c0_1 = arith.constant 0 : index
    %0 = vector.load %arg1[%c0, %c0_0, %c0_1] : memref<1x16x48xf32, #tpu.memory_space<vmem>>, vector<1x16x48xf32>
    %1 = vector.shape_cast %0 : vector<1x16x48xf32> to vector<16x48xf32>
    %2 = arith.truncf %1 : vector<16x48xf32> to vector<16x48xbf16>
    %c0_2 = arith.constant 0 : index
    %c0_3 = arith.constant 0 : index
    %3 = vector.load %arg2[%c0_2, %c0_3] : memref<48x32xbf16, #tpu.memory_space<vmem>>, vector<48x32xbf16>
    %cst = arith.constant dense<0.000000e+00> : vector<16x32xf32>
    %4 = tpu.matmul %2, %3, %cst {dimension_numbers = #tpu.dot_dimension_numbers<[1], [0], [0], [1], [0, 0, 1, 1], [], []>} : vector<16x48xbf16>, vector<48x32xbf16>, vector<16x32xf32> -> vector<16x32xf32>
    %c0_4 = arith.constant 0 : index
    %c0_5 = arith.constant 0 : index
    %5 = vector.load %arg3[%c0_4, %c0_5] : memref<1x32xf32, #tpu.memory_space<vmem>>, vector<1x32xf32>
    %6 = vector.broadcast %5 : vector<1x32xf32> to vector<16x32xf32>
    %7 = arith.addf %4, %6 : vector<16x32xf32>
    %c0_6 = arith.constant 0 : index
    %c0_7 = arith.constant 0 : index
    %8 = vector.load %arg5[%c0_6, %c0_7] : memref<16x32xf32, #tpu.memory_space<vmem>>, vector<16x32xf32>
    %9 = arith.addf %7, %8 : vector<16x32xf32>
    %c0_8 = arith.constant 0 : index
    %c0_9 = arith.constant 0 : index
    %10 = vector.load %arg4[%c0_8, %c0_9] : memref<1x32xf32, #tpu.memory_space<vmem>>, vector<1x32xf32>
    %11 = tpu.concatenate %10, %9 in 0 : vector<1x32xf32>, vector<16x32xf32> -> vector<17x32xf32>
    %12 = arith.truncf %11 : vector<17x32xf32> to vector<17x32xbf16>
    %c0_10 = arith.constant 0 : index
    %c0_11 = arith.constant 0 : index
    %c0_12 = arith.constant 0 : index
    %13 = vector.load %arg6[%c0_10, %c0_11, %c0_12] : memref<1x17x32xbf16, #tpu.memory_space<vmem>>, vector<1x17x32xbf16>
    %14 = vector.shape_cast %13 : vector<1x17x32xbf16> to vector<17x32xbf16>
    %15 = vector.shape_cast %12 : vector<17x32xbf16> to vector<1x17x32xbf16>
    tpu.vector_store %arg6[%c0_10, %c0_11, %c0_12], %15 {strides = array<i32>} : memref<1x17x32xbf16, #tpu.memory_space<vmem>>, vector<1x17x32xbf16>,
    return
  }
  func.func @transform_0(%arg0: i32) -> (i32, i32, i32) {
    %c0_i32 = arith.constant 0 : i32
    %c0_i32_0 = arith.constant 0 : i32
    %c0_i32_1 = arith.constant 0 : i32
    return %arg0, %c0_i32, %c0_i32_0 : i32, i32, i32
  }
  func.func @transform_1(%arg0: i32) -> (i32, i32) {
    %c0_i32 = arith.constant 0 : i32
    %c0_i32_0 = arith.constant 0 : i32
    %c0_i32_1 = arith.constant 0 : i32
    return %c0_i32, %c0_i32_0 : i32, i32
  }
  func.func @transform_2(%arg0: i32) -> (i32, i32) {
    %c0_i32 = arith.constant 0 : i32
    %c0_i32_0 = arith.constant 0 : i32
    %c0_i32_1 = arith.constant 0 : i32
    return %c0_i32, %c0_i32_0 : i32, i32
  }
  func.func @transform_3(%arg0: i32) -> (i32, i32) {
    %c0_i32 = arith.constant 0 : i32
    %c0_i32_0 = arith.constant 0 : i32
    %c0_i32_1 = arith.constant 0 : i32
    return %c0_i32, %c0_i32_0 : i32, i32
  }
  func.func @transform_4(%arg0: i32) -> (i32, i32) {
    %c0_i32 = arith.constant 0 : i32
    %c0_i32_0 = arith.constant 0 : i32
    %c0_i32_1 = arith.constant 0 : i32
    return %c0_i32, %c0_i32_0 : i32, i32
  }
  func.func @transform_5(%arg0: i32) -> (i32, i32, i32) {
    %c0_i32 = arith.constant 0 : i32
    %c0_i32_0 = arith.constant 0 : i32
    %c0_i32_1 = arith.constant 0 : i32
    return %arg0, %c0_i32, %c0_i32_0 : i32, i32, i32
  }
}

module attributes {stable_mosaic.version = 11 : i64} {
  func.func @_attn_block_kernel(%arg0: i32, %arg1: memref<1x17x32xbf16, #tpu.memory_space<vmem>>, %arg2: memref<1x32xf32, #tpu.memory_space<vmem>>, %arg3: memref<1x32xf32, #tpu.memory_space<vmem>>, %arg4: memref<32x96xbf16, #tpu.memory_space<vmem>>, %arg5: memref<32x32xbf16, #tpu.memory_space<vmem>>, %arg6: memref<1x32xf32, #tpu.memory_space<vmem>>, %arg7: memref<1x17x32xbf16, #tpu.memory_space<vmem>>) attributes {dimension_semantics = [#tpu.dimension_semantics<parallel>], iteration_bounds = array<i64: 2>, scalar_prefetch = 0 : i64, scratch_operands = 0 : i64, tpu.core_type = #tpu.core_type<tc>, window_params = [{transform_indices = @transform_0, window_bounds = array<i64: 1, 17, 32>}, {pipeline_mode = #tpu.pipeline_mode<synchronous>, transform_indices = @transform_1, window_bounds = array<i64: 1, 32>}, {pipeline_mode = #tpu.pipeline_mode<synchronous>, transform_indices = @transform_2, window_bounds = array<i64: 1, 32>}, {pipeline_mode = #tpu.pipeline_mode<synchronous>, transform_indices = @transform_3, window_bounds = array<i64: 32, 96>}, {pipeline_mode = #tpu.pipeline_mode<synchronous>, transform_indices = @transform_4, window_bounds = array<i64: 32, 32>}, {pipeline_mode = #tpu.pipeline_mode<synchronous>, transform_indices = @transform_5, window_bounds = array<i64: 1, 32>}, {transform_indices = @transform_6, window_bounds = array<i64: 1, 17, 32>}]} {
    %c0 = arith.constant 0 : index
    %c0_0 = arith.constant 0 : index
    %c0_1 = arith.constant 0 : index
    %0 = vector.load %arg1[%c0, %c0_0, %c0_1] : memref<1x17x32xbf16, #tpu.memory_space<vmem>>, vector<1x17x32xbf16>
    %1 = vector.shape_cast %0 : vector<1x17x32xbf16> to vector<17x32xbf16>
    %2 = arith.extf %1 : vector<17x32xbf16> to vector<17x32xf32>
    %c0_2 = arith.constant 0 : index
    %c0_3 = arith.constant 0 : index
    %3 = vector.load %arg2[%c0_2, %c0_3] : memref<1x32xf32, #tpu.memory_space<vmem>>, vector<1x32xf32>
    %c0_4 = arith.constant 0 : index
    %c0_5 = arith.constant 0 : index
    %4 = vector.load %arg3[%c0_4, %c0_5] : memref<1x32xf32, #tpu.memory_space<vmem>>, vector<1x32xf32>
    %cst = arith.constant dense<0.000000e+00> : vector<17xf32>
    %5 = vector.multi_reduction <add>, %2, %cst [1] : vector<17x32xf32> to vector<17xf32>
    %6 = vector.shape_cast %5 : vector<17xf32> to vector<17x1xf32>
    %cst_6 = arith.constant 3.200000e+01 : f32
    %7 = vector.broadcast %cst_6 : f32 to vector<17x1xf32>
    %8 = arith.divf %6, %7 : vector<17x1xf32>
    %9 = vector.broadcast %8 : vector<17x1xf32> to vector<17x32xf32>
    %10 = arith.subf %2, %9 : vector<17x32xf32>
    %11 = arith.mulf %10, %10 : vector<17x32xf32>
    %cst_7 = arith.constant dense<0.000000e+00> : vector<17xf32>
    %12 = vector.multi_reduction <add>, %11, %cst_7 [1] : vector<17x32xf32> to vector<17xf32>
    %13 = vector.shape_cast %12 : vector<17xf32> to vector<17x1xf32>
    %cst_8 = arith.constant 3.200000e+01 : f32
    %14 = vector.broadcast %cst_8 : f32 to vector<17x1xf32>
    %15 = arith.divf %13, %14 : vector<17x1xf32>
    %cst_9 = arith.constant 9.99999974E-6 : f32
    %16 = vector.broadcast %cst_9 : f32 to vector<17x1xf32>
    %17 = arith.addf %15, %16 : vector<17x1xf32>
    %18 = math.rsqrt %17 : vector<17x1xf32>
    %19 = vector.broadcast %18 : vector<17x1xf32> to vector<17x32xf32>
    %20 = arith.mulf %10, %19 : vector<17x32xf32>
    %21 = vector.broadcast %3 : vector<1x32xf32> to vector<17x32xf32>
    %22 = arith.mulf %20, %21 : vector<17x32xf32>
    %23 = vector.broadcast %4 : vector<1x32xf32> to vector<17x32xf32>
    %24 = arith.addf %22, %23 : vector<17x32xf32>
    %25 = arith.truncf %24 : vector<17x32xf32> to vector<17x32xbf16>
    %c0_10 = arith.constant 0 : index
    %c0_11 = arith.constant 0 : index
    %26 = vector.load %arg4[%c0_10, %c0_11] : memref<32x96xbf16, #tpu.memory_space<vmem>>, vector<32x96xbf16>
    %cst_12 = arith.constant dense<0.000000e+00> : vector<17x96xf32>
    %27 = tpu.matmul %25, %26, %cst_12 {dimension_numbers = #tpu.dot_dimension_numbers<[1], [0], [0], [1], [0, 0, 1, 1], [], []>} : vector<17x32xbf16>, vector<32x96xbf16>, vector<17x96xf32> -> vector<17x96xf32>
    %28 = arith.truncf %27 : vector<17x96xf32> to vector<17x96xbf16>
    %29 = vector.extract_strided_slice %28 {offsets = [0, 0], sizes = [17, 8], strides = [1, 1]} : vector<17x96xbf16> to vector<17x8xbf16>
    %30 = vector.extract_strided_slice %28 {offsets = [0, 32], sizes = [17, 8], strides = [1, 1]} : vector<17x96xbf16> to vector<17x8xbf16>
    %31 = vector.extract_strided_slice %28 {offsets = [0, 64], sizes = [17, 8], strides = [1, 1]} : vector<17x96xbf16> to vector<17x8xbf16>
    %cst_13 = arith.constant dense<0.000000e+00> : vector<17x17xf32>
    %32 = tpu.matmul %29, %30, %cst_13 {dimension_numbers = #tpu.dot_dimension_numbers<[1], [1], [0], [0], [0, 0, 1, 0], [], []>} : vector<17x8xbf16>, vector<17x8xbf16>, vector<17x17xf32> -> vector<17x17xf32>
    %cst_14 = arith.constant dense<0xFF800000> : vector<17xf32>
    %33 = vector.multi_reduction <maximumf>, %32, %cst_14 [1] : vector<17x17xf32> to vector<17xf32>
    %34 = vector.shape_cast %33 : vector<17xf32> to vector<17x1xf32>
    %35 = vector.broadcast %34 : vector<17x1xf32> to vector<17x17xf32>
    %36 = arith.subf %32, %35 : vector<17x17xf32>
    %37 = math.exp %36 : vector<17x17xf32>
    %cst_15 = arith.constant dense<0.000000e+00> : vector<17xf32>
    %38 = vector.multi_reduction <add>, %37, %cst_15 [1] : vector<17x17xf32> to vector<17xf32>
    %39 = vector.shape_cast %38 : vector<17xf32> to vector<17x1xf32>
    %40 = tpu.reciprocal %39 {approx = true} : vector<17x1xf32> -> vector<17x1xf32>
    %41 = vector.broadcast %40 : vector<17x1xf32> to vector<17x17xf32>
    %42 = arith.mulf %37, %41 : vector<17x17xf32>
    %43 = arith.truncf %42 : vector<17x17xf32> to vector<17x17xbf16>
    %cst_16 = arith.constant dense<0.000000e+00> : vector<17x8xf32>
    %44 = tpu.matmul %43, %31, %cst_16 {dimension_numbers = #tpu.dot_dimension_numbers<[1], [0], [0], [1], [0, 0, 1, 1], [], []>} : vector<17x17xbf16>, vector<17x8xbf16>, vector<17x8xf32> -> vector<17x8xf32>
    %45 = vector.extract_strided_slice %28 {offsets = [0, 8], sizes = [17, 8], strides = [1, 1]} : vector<17x96xbf16> to vector<17x8xbf16>
    %46 = vector.extract_strided_slice %28 {offsets = [0, 40], sizes = [17, 8], strides = [1, 1]} : vector<17x96xbf16> to vector<17x8xbf16>
    %47 = vector.extract_strided_slice %28 {offsets = [0, 72], sizes = [17, 8], strides = [1, 1]} : vector<17x96xbf16> to vector<17x8xbf16>
    %cst_17 = arith.constant dense<0.000000e+00> : vector<17x17xf32>
    %48 = tpu.matmul %45, %46, %cst_17 {dimension_numbers = #tpu.dot_dimension_numbers<[1], [1], [0], [0], [0, 0, 1, 0], [], []>} : vector<17x8xbf16>, vector<17x8xbf16>, vector<17x17xf32> -> vector<17x17xf32>
    %cst_18 = arith.constant dense<0xFF800000> : vector<17xf32>
    %49 = vector.multi_reduction <maximumf>, %48, %cst_18 [1] : vector<17x17xf32> to vector<17xf32>
    %50 = vector.shape_cast %49 : vector<17xf32> to vector<17x1xf32>
    %51 = vector.broadcast %50 : vector<17x1xf32> to vector<17x17xf32>
    %52 = arith.subf %48, %51 : vector<17x17xf32>
    %53 = math.exp %52 : vector<17x17xf32>
    %cst_19 = arith.constant dense<0.000000e+00> : vector<17xf32>
    %54 = vector.multi_reduction <add>, %53, %cst_19 [1] : vector<17x17xf32> to vector<17xf32>
    %55 = vector.shape_cast %54 : vector<17xf32> to vector<17x1xf32>
    %56 = tpu.reciprocal %55 {approx = true} : vector<17x1xf32> -> vector<17x1xf32>
    %57 = vector.broadcast %56 : vector<17x1xf32> to vector<17x17xf32>
    %58 = arith.mulf %53, %57 : vector<17x17xf32>
    %59 = arith.truncf %58 : vector<17x17xf32> to vector<17x17xbf16>
    %cst_20 = arith.constant dense<0.000000e+00> : vector<17x8xf32>
    %60 = tpu.matmul %59, %47, %cst_20 {dimension_numbers = #tpu.dot_dimension_numbers<[1], [0], [0], [1], [0, 0, 1, 1], [], []>} : vector<17x17xbf16>, vector<17x8xbf16>, vector<17x8xf32> -> vector<17x8xf32>
    %61 = vector.extract_strided_slice %28 {offsets = [0, 16], sizes = [17, 8], strides = [1, 1]} : vector<17x96xbf16> to vector<17x8xbf16>
    %62 = vector.extract_strided_slice %28 {offsets = [0, 48], sizes = [17, 8], strides = [1, 1]} : vector<17x96xbf16> to vector<17x8xbf16>
    %63 = vector.extract_strided_slice %28 {offsets = [0, 80], sizes = [17, 8], strides = [1, 1]} : vector<17x96xbf16> to vector<17x8xbf16>
    %cst_21 = arith.constant dense<0.000000e+00> : vector<17x17xf32>
    %64 = tpu.matmul %61, %62, %cst_21 {dimension_numbers = #tpu.dot_dimension_numbers<[1], [1], [0], [0], [0, 0, 1, 0], [], []>} : vector<17x8xbf16>, vector<17x8xbf16>, vector<17x17xf32> -> vector<17x17xf32>
    %cst_22 = arith.constant dense<0xFF800000> : vector<17xf32>
    %65 = vector.multi_reduction <maximumf>, %64, %cst_22 [1] : vector<17x17xf32> to vector<17xf32>
    %66 = vector.shape_cast %65 : vector<17xf32> to vector<17x1xf32>
    %67 = vector.broadcast %66 : vector<17x1xf32> to vector<17x17xf32>
    %68 = arith.subf %64, %67 : vector<17x17xf32>
    %69 = math.exp %68 : vector<17x17xf32>
    %cst_23 = arith.constant dense<0.000000e+00> : vector<17xf32>
    %70 = vector.multi_reduction <add>, %69, %cst_23 [1] : vector<17x17xf32> to vector<17xf32>
    %71 = vector.shape_cast %70 : vector<17xf32> to vector<17x1xf32>
    %72 = tpu.reciprocal %71 {approx = true} : vector<17x1xf32> -> vector<17x1xf32>
    %73 = vector.broadcast %72 : vector<17x1xf32> to vector<17x17xf32>
    %74 = arith.mulf %69, %73 : vector<17x17xf32>
    %75 = arith.truncf %74 : vector<17x17xf32> to vector<17x17xbf16>
    %cst_24 = arith.constant dense<0.000000e+00> : vector<17x8xf32>
    %76 = tpu.matmul %75, %63, %cst_24 {dimension_numbers = #tpu.dot_dimension_numbers<[1], [0], [0], [1], [0, 0, 1, 1], [], []>} : vector<17x17xbf16>, vector<17x8xbf16>, vector<17x8xf32> -> vector<17x8xf32>
    %77 = vector.extract_strided_slice %28 {offsets = [0, 24], sizes = [17, 8], strides = [1, 1]} : vector<17x96xbf16> to vector<17x8xbf16>
    %78 = vector.extract_strided_slice %28 {offsets = [0, 56], sizes = [17, 8], strides = [1, 1]} : vector<17x96xbf16> to vector<17x8xbf16>
    %79 = vector.extract_strided_slice %28 {offsets = [0, 88], sizes = [17, 8], strides = [1, 1]} : vector<17x96xbf16> to vector<17x8xbf16>
    %cst_25 = arith.constant dense<0.000000e+00> : vector<17x17xf32>
    %80 = tpu.matmul %77, %78, %cst_25 {dimension_numbers = #tpu.dot_dimension_numbers<[1], [1], [0], [0], [0, 0, 1, 0], [], []>} : vector<17x8xbf16>, vector<17x8xbf16>, vector<17x17xf32> -> vector<17x17xf32>
    %cst_26 = arith.constant dense<0xFF800000> : vector<17xf32>
    %81 = vector.multi_reduction <maximumf>, %80, %cst_26 [1] : vector<17x17xf32> to vector<17xf32>
    %82 = vector.shape_cast %81 : vector<17xf32> to vector<17x1xf32>
    %83 = vector.broadcast %82 : vector<17x1xf32> to vector<17x17xf32>
    %84 = arith.subf %80, %83 : vector<17x17xf32>
    %85 = math.exp %84 : vector<17x17xf32>
    %cst_27 = arith.constant dense<0.000000e+00> : vector<17xf32>
    %86 = vector.multi_reduction <add>, %85, %cst_27 [1] : vector<17x17xf32> to vector<17xf32>
    %87 = vector.shape_cast %86 : vector<17xf32> to vector<17x1xf32>
    %88 = tpu.reciprocal %87 {approx = true} : vector<17x1xf32> -> vector<17x1xf32>
    %89 = vector.broadcast %88 : vector<17x1xf32> to vector<17x17xf32>
    %90 = arith.mulf %85, %89 : vector<17x17xf32>
    %91 = arith.truncf %90 : vector<17x17xf32> to vector<17x17xbf16>
    %cst_28 = arith.constant dense<0.000000e+00> : vector<17x8xf32>
    %92 = tpu.matmul %91, %79, %cst_28 {dimension_numbers = #tpu.dot_dimension_numbers<[1], [0], [0], [1], [0, 0, 1, 1], [], []>} : vector<17x17xbf16>, vector<17x8xbf16>, vector<17x8xf32> -> vector<17x8xf32>
    %93 = tpu.concatenate %44, %60, %76, %92 in 1 : vector<17x8xf32>, vector<17x8xf32>, vector<17x8xf32>, vector<17x8xf32> -> vector<17x32xf32>
    %94 = arith.truncf %93 : vector<17x32xf32> to vector<17x32xbf16>
    %c0_29 = arith.constant 0 : index
    %c0_30 = arith.constant 0 : index
    %95 = vector.load %arg5[%c0_29, %c0_30] : memref<32x32xbf16, #tpu.memory_space<vmem>>, vector<32x32xbf16>
    %cst_31 = arith.constant dense<0.000000e+00> : vector<17x32xf32>
    %96 = tpu.matmul %94, %95, %cst_31 {dimension_numbers = #tpu.dot_dimension_numbers<[1], [0], [0], [1], [0, 0, 1, 1], [], []>} : vector<17x32xbf16>, vector<32x32xbf16>, vector<17x32xf32> -> vector<17x32xf32>
    %c0_32 = arith.constant 0 : index
    %c0_33 = arith.constant 0 : index
    %97 = vector.load %arg6[%c0_32, %c0_33] : memref<1x32xf32, #tpu.memory_space<vmem>>, vector<1x32xf32>
    %98 = vector.broadcast %97 : vector<1x32xf32> to vector<17x32xf32>
    %99 = arith.addf %96, %98 : vector<17x32xf32>
    %100 = arith.addf %99, %2 : vector<17x32xf32>
    %101 = arith.truncf %100 : vector<17x32xf32> to vector<17x32xbf16>
    %c0_34 = arith.constant 0 : index
    %c0_35 = arith.constant 0 : index
    %c0_36 = arith.constant 0 : index
    %102 = vector.load %arg7[%c0_34, %c0_35, %c0_36] : memref<1x17x32xbf16, #tpu.memory_space<vmem>>, vector<1x17x32xbf16>
    %103 = vector.shape_cast %102 : vector<1x17x32xbf16> to vector<17x32xbf16>
    %104 = vector.shape_cast %101 : vector<17x32xbf16> to vector<1x17x32xbf16>
    tpu.vector_store %arg7[%c0_34, %c0_35, %c0_36], %104 {strides = array<i32>} : memref<1x17x32xbf16, #tpu.memory_space<vmem>>, vector<1x17x32xbf16>,
    return
  }
  func.func @transform_0(%arg0: i32) -> (i32, i32, i32) {
    %c0_i32 = arith.constant 0 : i32
    %c0_i32_0 = arith.constant 0 : i32
    %c0_i32_1 = arith.constant 0 : i32
    return %arg0, %c0_i32, %c0_i32_0 : i32, i32, i32
  }
  func.func @transform_1(%arg0: i32) -> (i32, i32) {
    %c0_i32 = arith.constant 0 : i32
    %c0_i32_0 = arith.constant 0 : i32
    %c0_i32_1 = arith.constant 0 : i32
    return %c0_i32, %c0_i32_0 : i32, i32
  }
  func.func @transform_2(%arg0: i32) -> (i32, i32) {
    %c0_i32 = arith.constant 0 : i32
    %c0_i32_0 = arith.constant 0 : i32
    %c0_i32_1 = arith.constant 0 : i32
    return %c0_i32, %c0_i32_0 : i32, i32
  }
  func.func @transform_3(%arg0: i32) -> (i32, i32) {
    %c0_i32 = arith.constant 0 : i32
    %c0_i32_0 = arith.constant 0 : i32
    %c0_i32_1 = arith.constant 0 : i32
    return %c0_i32, %c0_i32_0 : i32, i32
  }
  func.func @transform_4(%arg0: i32) -> (i32, i32) {
    %c0_i32 = arith.constant 0 : i32
    %c0_i32_0 = arith.constant 0 : i32
    %c0_i32_1 = arith.constant 0 : i32
    return %c0_i32, %c0_i32_0 : i32, i32
  }
  func.func @transform_5(%arg0: i32) -> (i32, i32) {
    %c0_i32 = arith.constant 0 : i32
    %c0_i32_0 = arith.constant 0 : i32
    %c0_i32_1 = arith.constant 0 : i32
    return %c0_i32, %c0_i32_0 : i32, i32
  }
  func.func @transform_6(%arg0: i32) -> (i32, i32, i32) {
    %c0_i32 = arith.constant 0 : i32
    %c0_i32_0 = arith.constant 0 : i32
    %c0_i32_1 = arith.constant 0 : i32
    return %arg0, %c0_i32, %c0_i32_0 : i32, i32, i32
  }
}

module attributes {stable_mosaic.version = 11 : i64} {
  func.func @_ff_block_kernel(%arg0: i32, %arg1: memref<1x17x32xbf16, #tpu.memory_space<vmem>>, %arg2: memref<1x32xf32, #tpu.memory_space<vmem>>, %arg3: memref<1x32xf32, #tpu.memory_space<vmem>>, %arg4: memref<32x64xbf16, #tpu.memory_space<vmem>>, %arg5: memref<1x64xf32, #tpu.memory_space<vmem>>, %arg6: memref<64x32xbf16, #tpu.memory_space<vmem>>, %arg7: memref<1x32xf32, #tpu.memory_space<vmem>>, %arg8: memref<1x17x32xbf16, #tpu.memory_space<vmem>>) attributes {dimension_semantics = [#tpu.dimension_semantics<parallel>], iteration_bounds = array<i64: 2>, scalar_prefetch = 0 : i64, scratch_operands = 0 : i64, tpu.core_type = #tpu.core_type<tc>, window_params = [{transform_indices = @transform_0, window_bounds = array<i64: 1, 17, 32>}, {pipeline_mode = #tpu.pipeline_mode<synchronous>, transform_indices = @transform_1, window_bounds = array<i64: 1, 32>}, {pipeline_mode = #tpu.pipeline_mode<synchronous>, transform_indices = @transform_2, window_bounds = array<i64: 1, 32>}, {pipeline_mode = #tpu.pipeline_mode<synchronous>, transform_indices = @transform_3, window_bounds = array<i64: 32, 64>}, {pipeline_mode = #tpu.pipeline_mode<synchronous>, transform_indices = @transform_4, window_bounds = array<i64: 1, 64>}, {pipeline_mode = #tpu.pipeline_mode<synchronous>, transform_indices = @transform_5, window_bounds = array<i64: 64, 32>}, {pipeline_mode = #tpu.pipeline_mode<synchronous>, transform_indices = @transform_6, window_bounds = array<i64: 1, 32>}, {transform_indices = @transform_7, window_bounds = array<i64: 1, 17, 32>}]} {
    %c0 = arith.constant 0 : index
    %c0_0 = arith.constant 0 : index
    %c0_1 = arith.constant 0 : index
    %0 = vector.load %arg1[%c0, %c0_0, %c0_1] : memref<1x17x32xbf16, #tpu.memory_space<vmem>>, vector<1x17x32xbf16>
    %1 = vector.shape_cast %0 : vector<1x17x32xbf16> to vector<17x32xbf16>
    %2 = arith.extf %1 : vector<17x32xbf16> to vector<17x32xf32>
    %c0_2 = arith.constant 0 : index
    %c0_3 = arith.constant 0 : index
    %3 = vector.load %arg2[%c0_2, %c0_3] : memref<1x32xf32, #tpu.memory_space<vmem>>, vector<1x32xf32>
    %c0_4 = arith.constant 0 : index
    %c0_5 = arith.constant 0 : index
    %4 = vector.load %arg3[%c0_4, %c0_5] : memref<1x32xf32, #tpu.memory_space<vmem>>, vector<1x32xf32>
    %cst = arith.constant dense<0.000000e+00> : vector<17xf32>
    %5 = vector.multi_reduction <add>, %2, %cst [1] : vector<17x32xf32> to vector<17xf32>
    %6 = vector.shape_cast %5 : vector<17xf32> to vector<17x1xf32>
    %cst_6 = arith.constant 3.200000e+01 : f32
    %7 = vector.broadcast %cst_6 : f32 to vector<17x1xf32>
    %8 = arith.divf %6, %7 : vector<17x1xf32>
    %9 = vector.broadcast %8 : vector<17x1xf32> to vector<17x32xf32>
    %10 = arith.subf %2, %9 : vector<17x32xf32>
    %11 = arith.mulf %10, %10 : vector<17x32xf32>
    %cst_7 = arith.constant dense<0.000000e+00> : vector<17xf32>
    %12 = vector.multi_reduction <add>, %11, %cst_7 [1] : vector<17x32xf32> to vector<17xf32>
    %13 = vector.shape_cast %12 : vector<17xf32> to vector<17x1xf32>
    %cst_8 = arith.constant 3.200000e+01 : f32
    %14 = vector.broadcast %cst_8 : f32 to vector<17x1xf32>
    %15 = arith.divf %13, %14 : vector<17x1xf32>
    %cst_9 = arith.constant 9.99999974E-6 : f32
    %16 = vector.broadcast %cst_9 : f32 to vector<17x1xf32>
    %17 = arith.addf %15, %16 : vector<17x1xf32>
    %18 = math.rsqrt %17 : vector<17x1xf32>
    %19 = vector.broadcast %18 : vector<17x1xf32> to vector<17x32xf32>
    %20 = arith.mulf %10, %19 : vector<17x32xf32>
    %21 = vector.broadcast %3 : vector<1x32xf32> to vector<17x32xf32>
    %22 = arith.mulf %20, %21 : vector<17x32xf32>
    %23 = vector.broadcast %4 : vector<1x32xf32> to vector<17x32xf32>
    %24 = arith.addf %22, %23 : vector<17x32xf32>
    %25 = arith.truncf %24 : vector<17x32xf32> to vector<17x32xbf16>
    %c0_10 = arith.constant 0 : index
    %c0_11 = arith.constant 0 : index
    %26 = vector.load %arg4[%c0_10, %c0_11] : memref<32x64xbf16, #tpu.memory_space<vmem>>, vector<32x64xbf16>
    %cst_12 = arith.constant dense<0.000000e+00> : vector<17x64xf32>
    %27 = tpu.matmul %25, %26, %cst_12 {dimension_numbers = #tpu.dot_dimension_numbers<[1], [0], [0], [1], [0, 0, 1, 1], [], []>} : vector<17x32xbf16>, vector<32x64xbf16>, vector<17x64xf32> -> vector<17x64xf32>
    %c0_13 = arith.constant 0 : index
    %c0_14 = arith.constant 0 : index
    %28 = vector.load %arg5[%c0_13, %c0_14] : memref<1x64xf32, #tpu.memory_space<vmem>>, vector<1x64xf32>
    %29 = vector.broadcast %28 : vector<1x64xf32> to vector<17x64xf32>
    %30 = arith.addf %27, %29 : vector<17x64xf32>
    %cst_15 = arith.constant 5.000000e-01 : f32
    %31 = vector.broadcast %cst_15 : f32 to vector<17x64xf32>
    %32 = arith.mulf %31, %30 : vector<17x64xf32>
    %cst_16 = arith.constant 4.471500e-02 : f32
    %33 = vector.broadcast %cst_16 : f32 to vector<17x64xf32>
    %34 = arith.mulf %33, %30 : vector<17x64xf32>
    %35 = arith.mulf %34, %30 : vector<17x64xf32>
    %36 = arith.mulf %35, %30 : vector<17x64xf32>
    %37 = arith.addf %30, %36 : vector<17x64xf32>
    %cst_17 = arith.constant 0.797884583 : f32
    %38 = vector.broadcast %cst_17 : f32 to vector<17x64xf32>
    %39 = arith.mulf %38, %37 : vector<17x64xf32>
    %40 = math.tanh %39 : vector<17x64xf32>
    %cst_18 = arith.constant 1.000000e+00 : f32
    %41 = vector.broadcast %cst_18 : f32 to vector<17x64xf32>
    %42 = arith.addf %41, %40 : vector<17x64xf32>
    %43 = arith.mulf %32, %42 : vector<17x64xf32>
    %44 = arith.truncf %43 : vector<17x64xf32> to vector<17x64xbf16>
    %c0_19 = arith.constant 0 : index
    %c0_20 = arith.constant 0 : index
    %45 = vector.load %arg6[%c0_19, %c0_20] : memref<64x32xbf16, #tpu.memory_space<vmem>>, vector<64x32xbf16>
    %cst_21 = arith.constant dense<0.000000e+00> : vector<17x32xf32>
    %46 = tpu.matmul %44, %45, %cst_21 {dimension_numbers = #tpu.dot_dimension_numbers<[1], [0], [0], [1], [0, 0, 1, 1], [], []>} : vector<17x64xbf16>, vector<64x32xbf16>, vector<17x32xf32> -> vector<17x32xf32>
    %c0_22 = arith.constant 0 : index
    %c0_23 = arith.constant 0 : index
    %47 = vector.load %arg7[%c0_22, %c0_23] : memref<1x32xf32, #tpu.memory_space<vmem>>, vector<1x32xf32>
    %48 = vector.broadcast %47 : vector<1x32xf32> to vector<17x32xf32>
    %49 = arith.addf %46, %48 : vector<17x32xf32>
    %50 = arith.addf %49, %2 : vector<17x32xf32>
    %51 = arith.truncf %50 : vector<17x32xf32> to vector<17x32xbf16>
    %c0_24 = arith.constant 0 : index
    %c0_25 = arith.constant 0 : index
    %c0_26 = arith.constant 0 : index
    %52 = vector.load %arg8[%c0_24, %c0_25, %c0_26] : memref<1x17x32xbf16, #tpu.memory_space<vmem>>, vector<1x17x32xbf16>
    %53 = vector.shape_cast %52 : vector<1x17x32xbf16> to vector<17x32xbf16>
    %54 = vector.shape_cast %51 : vector<17x32xbf16> to vector<1x17x32xbf16>
    tpu.vector_store %arg8[%c0_24, %c0_25, %c0_26], %54 {strides = array<i32>} : memref<1x17x32xbf16, #tpu.memory_space<vmem>>, vector<1x17x32xbf16>,
    return
  }
  func.func @transform_0(%arg0: i32) -> (i32, i32, i32) {
    %c0_i32 = arith.constant 0 : i32
    %c0_i32_0 = arith.constant 0 : i32
    %c0_i32_1 = arith.constant 0 : i32
    return %arg0, %c0_i32, %c0_i32_0 : i32, i32, i32
  }
  func.func @transform_1(%arg0: i32) -> (i32, i32) {
    %c0_i32 = arith.constant 0 : i32
    %c0_i32_0 = arith.constant 0 : i32
    %c0_i32_1 = arith.constant 0 : i32
    return %c0_i32, %c0_i32_0 : i32, i32
  }
  func.func @transform_2(%arg0: i32) -> (i32, i32) {
    %c0_i32 = arith.constant 0 : i32
    %c0_i32_0 = arith.constant 0 : i32
    %c0_i32_1 = arith.constant 0 : i32
    return %c0_i32, %c0_i32_0 : i32, i32
  }
  func.func @transform_3(%arg0: i32) -> (i32, i32) {
    %c0_i32 = arith.constant 0 : i32
    %c0_i32_0 = arith.constant 0 : i32
    %c0_i32_1 = arith.constant 0 : i32
    return %c0_i32, %c0_i32_0 : i32, i32
  }
  func.func @transform_4(%arg0: i32) -> (i32, i32) {
    %c0_i32 = arith.constant 0 : i32
    %c0_i32_0 = arith.constant 0 : i32
    %c0_i32_1 = arith.constant 0 : i32
    return %c0_i32, %c0_i32_0 : i32, i32
  }
  func.func @transform_5(%arg0: i32) -> (i32, i32) {
    %c0_i32 = arith.constant 0 : i32
    %c0_i32_0 = arith.constant 0 : i32
    %c0_i32_1 = arith.constant 0 : i32
    return %c0_i32, %c0_i32_0 : i32, i32
  }
  func.func @transform_6(%arg0: i32) -> (i32, i32) {
    %c0_i32 = arith.constant 0 : i32
    %c0_i32_0 = arith.constant 0 : i32
    %c0_i32_1 = arith.constant 0 : i32
    return %c0_i32, %c0_i32_0 : i32, i32
  }
  func.func @transform_7(%arg0: i32) -> (i32, i32, i32) {
    %c0_i32 = arith.constant 0 : i32
    %c0_i32_0 = arith.constant 0 : i32
    %c0_i32_1 = arith.constant 0 : i32
    return %arg0, %c0_i32, %c0_i32_0 : i32, i32, i32
  }
}

module attributes {stable_mosaic.version = 11 : i64} {
  func.func @_classifier_kernel(%arg0: i32, %arg1: memref<1x2x32xbf16, #tpu.memory_space<vmem>>, %arg2: memref<1x1x32xf32, #tpu.memory_space<vmem>>, %arg3: memref<1x1x32xf32, #tpu.memory_space<vmem>>, %arg4: memref<1x32x128xbf16, #tpu.memory_space<vmem>>, %arg5: memref<1x1x128xf32, #tpu.memory_space<vmem>>, %arg6: memref<1x2x128xf32, #tpu.memory_space<vmem>>) attributes {dimension_semantics = [#tpu.dimension_semantics<parallel>], iteration_bounds = array<i64: 4>, scalar_prefetch = 0 : i64, scratch_operands = 0 : i64, tpu.core_type = #tpu.core_type<tc>, window_params = [{transform_indices = @transform_0, window_bounds = array<i64: 1, 2, 32>}, {transform_indices = @transform_1, window_bounds = array<i64: 1, 1, 32>}, {transform_indices = @transform_2, window_bounds = array<i64: 1, 1, 32>}, {transform_indices = @transform_3, window_bounds = array<i64: 1, 32, 128>}, {transform_indices = @transform_4, window_bounds = array<i64: 1, 1, 128>}, {transform_indices = @transform_5, window_bounds = array<i64: 1, 2, 128>}]} {
    %c0 = arith.constant 0 : index
    %c0_0 = arith.constant 0 : index
    %c0_1 = arith.constant 0 : index
    %0 = vector.load %arg1[%c0, %c0_0, %c0_1] : memref<1x2x32xbf16, #tpu.memory_space<vmem>>, vector<1x2x32xbf16>
    %1 = vector.shape_cast %0 : vector<1x2x32xbf16> to vector<2x32xbf16>
    %2 = arith.extf %1 : vector<2x32xbf16> to vector<2x32xf32>
    %c0_2 = arith.constant 0 : index
    %c0_3 = arith.constant 0 : index
    %c0_4 = arith.constant 0 : index
    %3 = vector.load %arg2[%c0_2, %c0_3, %c0_4] : memref<1x1x32xf32, #tpu.memory_space<vmem>>, vector<1x1x32xf32>
    %4 = vector.shape_cast %3 : vector<1x1x32xf32> to vector<1x32xf32>
    %c0_5 = arith.constant 0 : index
    %c0_6 = arith.constant 0 : index
    %c0_7 = arith.constant 0 : index
    %5 = vector.load %arg3[%c0_5, %c0_6, %c0_7] : memref<1x1x32xf32, #tpu.memory_space<vmem>>, vector<1x1x32xf32>
    %6 = vector.shape_cast %5 : vector<1x1x32xf32> to vector<1x32xf32>
    %cst = arith.constant dense<0.000000e+00> : vector<2xf32>
    %7 = vector.multi_reduction <add>, %2, %cst [1] : vector<2x32xf32> to vector<2xf32>
    %8 = vector.shape_cast %7 : vector<2xf32> to vector<2x1xf32>
    %cst_8 = arith.constant 3.200000e+01 : f32
    %9 = vector.broadcast %cst_8 : f32 to vector<2x1xf32>
    %10 = arith.divf %8, %9 : vector<2x1xf32>
    %11 = vector.broadcast %10 : vector<2x1xf32> to vector<2x32xf32>
    %12 = arith.subf %2, %11 : vector<2x32xf32>
    %13 = arith.mulf %12, %12 : vector<2x32xf32>
    %cst_9 = arith.constant dense<0.000000e+00> : vector<2xf32>
    %14 = vector.multi_reduction <add>, %13, %cst_9 [1] : vector<2x32xf32> to vector<2xf32>
    %15 = vector.shape_cast %14 : vector<2xf32> to vector<2x1xf32>
    %cst_10 = arith.constant 3.200000e+01 : f32
    %16 = vector.broadcast %cst_10 : f32 to vector<2x1xf32>
    %17 = arith.divf %15, %16 : vector<2x1xf32>
    %cst_11 = arith.constant 9.99999974E-6 : f32
    %18 = vector.broadcast %cst_11 : f32 to vector<2x1xf32>
    %19 = arith.addf %17, %18 : vector<2x1xf32>
    %20 = math.rsqrt %19 : vector<2x1xf32>
    %21 = vector.broadcast %20 : vector<2x1xf32> to vector<2x32xf32>
    %22 = arith.mulf %12, %21 : vector<2x32xf32>
    %23 = vector.broadcast %4 : vector<1x32xf32> to vector<2x32xf32>
    %24 = arith.mulf %22, %23 : vector<2x32xf32>
    %25 = vector.broadcast %6 : vector<1x32xf32> to vector<2x32xf32>
    %26 = arith.addf %24, %25 : vector<2x32xf32>
    %27 = arith.truncf %26 : vector<2x32xf32> to vector<2x32xbf16>
    %c0_12 = arith.constant 0 : index
    %c0_13 = arith.constant 0 : index
    %c0_14 = arith.constant 0 : index
    %28 = vector.load %arg4[%c0_12, %c0_13, %c0_14] : memref<1x32x128xbf16, #tpu.memory_space<vmem>>, vector<1x32x128xbf16>
    %29 = vector.shape_cast %28 : vector<1x32x128xbf16> to vector<32x128xbf16>
    %cst_15 = arith.constant dense<0.000000e+00> : vector<2x128xf32>
    %30 = tpu.matmul %27, %29, %cst_15 {dimension_numbers = #tpu.dot_dimension_numbers<[1], [0], [0], [1], [0, 0, 1, 1], [], []>} : vector<2x32xbf16>, vector<32x128xbf16>, vector<2x128xf32> -> vector<2x128xf32>
    %c0_16 = arith.constant 0 : index
    %c0_17 = arith.constant 0 : index
    %c0_18 = arith.constant 0 : index
    %31 = vector.load %arg5[%c0_16, %c0_17, %c0_18] : memref<1x1x128xf32, #tpu.memory_space<vmem>>, vector<1x1x128xf32>
    %32 = vector.shape_cast %31 : vector<1x1x128xf32> to vector<1x128xf32>
    %33 = vector.broadcast %32 : vector<1x128xf32> to vector<2x128xf32>
    %34 = arith.addf %30, %33 : vector<2x128xf32>
    %c0_19 = arith.constant 0 : index
    %c0_20 = arith.constant 0 : index
    %c0_21 = arith.constant 0 : index
    %35 = vector.load %arg6[%c0_19, %c0_20, %c0_21] : memref<1x2x128xf32, #tpu.memory_space<vmem>>, vector<1x2x128xf32>
    %36 = vector.shape_cast %35 : vector<1x2x128xf32> to vector<2x128xf32>
    %37 = vector.shape_cast %34 : vector<2x128xf32> to vector<1x2x128xf32>
    tpu.vector_store %arg6[%c0_19, %c0_20, %c0_21], %37 {strides = array<i32>} : memref<1x2x128xf32, #tpu.memory_space<vmem>>, vector<1x2x128xf32>,
    return
  }
  func.func @transform_0(%arg0: i32) -> (i32, i32, i32) {
    %c0_i32 = arith.constant 0 : i32
    %c0_i32_0 = arith.constant 0 : i32
    %c0_i32_1 = arith.constant 0 : i32
    return %arg0, %c0_i32, %c0_i32_0 : i32, i32, i32
  }
  func.func @transform_1(%arg0: i32) -> (i32, i32, i32) {
    %c0_i32 = arith.constant 0 : i32
    %c0_i32_0 = arith.constant 0 : i32
    %c0_i32_1 = arith.constant 0 : i32
    return %arg0, %c0_i32, %c0_i32_0 : i32, i32, i32
  }
  func.func @transform_2(%arg0: i32) -> (i32, i32, i32) {
    %c0_i32 = arith.constant 0 : i32
    %c0_i32_0 = arith.constant 0 : i32
    %c0_i32_1 = arith.constant 0 : i32
    return %arg0, %c0_i32, %c0_i32_0 : i32, i32, i32
  }
  func.func @transform_3(%arg0: i32) -> (i32, i32, i32) {
    %c0_i32 = arith.constant 0 : i32
    %c0_i32_0 = arith.constant 0 : i32
    %c0_i32_1 = arith.constant 0 : i32
    return %arg0, %c0_i32, %c0_i32_0 : i32, i32, i32
  }
  func.func @transform_4(%arg0: i32) -> (i32, i32, i32) {
    %c0_i32 = arith.constant 0 : i32
    %c0_i32_0 = arith.constant 0 : i32
    %c0_i32_1 = arith.constant 0 : i32
    return %arg0, %c0_i32, %c0_i32_0 : i32, i32, i32
  }
  func.func @transform_5(%arg0: i32) -> (i32, i32, i32) {
    %c0_i32 = arith.constant 0 : i32
    %c0_i32_0 = arith.constant 0 : i32
    %c0_i32_1 = arith.constant 0 : i32
    return %arg0, %c0_i32, %c0_i32_0 : i32, i32, i32
  }
}

</mosaic_0001>

<llo_original>
// kernel: tile.29
$region0: #{tile.29}
  %s0 = inlined_call_operand.vmem [shape: f32[4,8], index: 0, kind: input, shape index: {}]
  %s1 = inlined_call_operand.vmem [shape: f32[32], index: 1, kind: output, shape index: {}]
  $region1: #{tile.29} parent=0
    #allocation0 [shape = 'u8[4096]{0}', space=vmem, size = 0x1000, scoped, tag = 'scoped mem for output reshape']
    #allocation1 [shape = 'u8[4096]{0}', space=vmem, size = 0x1000, scoped, tag = 'scoped mem for input reshape']
    %s3 = sshllo.u32 0, 4
    %v4 = vld [vmem:[%s0] sm:%s3]
    %5 = vst [vmem:[#allocation1] sm:%s3] %v4
    %v6 = vld [vmem:[#allocation1] sm:$0x1]
    %vm7 = vcmask 64512
    %8 = vst.msk [vmem:[#allocation0] sm:$0x1] %vm7, %v6
    %s9 = scalar_lea.vmem [#allocation1], 3
    %v10 = vld [vmem:[%s9] sm:$0x1]
    %11 = vrot.lane.b32.xlu0 %v10, 24
    %v12 = vpop.permute.xlu0 %11
    %vm13 = vcmask 261312
    %14 = vst.msk [vmem:[#allocation0] sm:$0x1] %vm13, %v12
    %s15 = scalar_lea.vmem [#allocation1], 2
    %v16 = vld [vmem:[%s15] sm:$0x1]
    %17 = vrot.lane.b32.xlu0 %v16, 16
    %v18 = vpop.permute.xlu0 %17
    %vm19 = vcmask 195712
    %20 = vst.msk [vmem:[#allocation0] sm:$0x1] %vm19, %v18
    %s21 = scalar_lea.vmem [#allocation1], 1
    %v22 = vld [vmem:[%s21] sm:$0x1]
    %23 = vrot.lane.b32.xlu0 %v22, 8
    %v24 = vpop.permute.xlu0 %23
    %vm25 = vcmask 130112
    %26 = vst.msk [vmem:[#allocation0] sm:$0x1] %vm25, %v24
    %s28 = sshllo.u32 0, 1
    %v30 = vld [vmem:[#allocation0] sm:%s28]
    %s31 = sshllo.u32 0, 1
    %32 = vst [vmem:[%s1] sm:%s31] %v30

// kernel: tile.30
$region0: #{tile.30}
  #allocation0 [shape = 's32[1]{0}', space=sflag, size = 0x4, scoped, tag = 'scoped memory for tile.30']
  %s0 = inlined_call_operand.vmem [shape: f32[32], index: 0, kind: input, shape index: {}]
  %s1 = inlined_call_operand.vmem [shape: f32[3,32], index: 1, kind: output, shape index: {}]
  // Predicated region
  $region2: #{tile.30} parent=0 // pred_check
    _
  $region3: #{tile.30} parent=0 // pred_check_branch
    %3 = sbr.rel (0) target = $region5
  $region4: #{tile.30} parent=0 // pred_region
    _
  $region5: #{tile.30} parent=0 // pred_fallthru
    _
  %v4 = vld [vmem:[%s0] ss:$0 sm:$0xff]
  %5 = vst [vmem:[%s1] sm:$0xf] %v4

// kernel: mul.162
$region0: #{mul.162}
  %s0 = inlined_call_operand.vmem [shape: f32[3,32], index: 0, kind: input, shape index: {}]
  %s1 = inlined_call_operand.vmem [shape: f32[96], index: 1, kind: output, shape index: {}]
  $region1: #{mul.162} parent=0
    #allocation0 [shape = 'u8[4096]{0}', space=vmem, size = 0x1000, scoped, tag = 'scoped mem for output reshape']
    #allocation1 [shape = 'u8[4096]{0}', space=vmem, size = 0x1000, scoped, tag = 'scoped mem for input reshape']
    %s3 = sshllo.u32 0, 4
    %v4 = vld [vmem:[%s0] sm:%s3]
    %5 = vst [vmem:[#allocation1] sm:%s3] %v4
    %v6 = vld [vmem:[#allocation1] sm:$0x1]
    %vm7 = vcmask 261120
    %8 = vst.msk [vmem:[#allocation0] sm:$0x1] %vm7, %v6
    %s9 = scalar_lea.vmem [#allocation1], 2
    %v10 = vld [vmem:[%s9] sm:$0x1]
    %11 = vrot.lane.b32.xlu0 %v10, 64
    %v12 = vpop.permute.xlu0 %11
    %vm13 = vcmask 785920
    %14 = vst.msk [vmem:[#allocation0] sm:$0x1] %vm13, %v12
    %s15 = scalar_lea.vmem [#allocation1], 1
    %v16 = vld [vmem:[%s15] sm:$0x1]
    %17 = vrot.lane.b32.xlu0 %v16, 32
    %v18 = vpop.permute.xlu0 %17
    %vm19 = vcmask 523520
    %20 = vst.msk [vmem:[#allocation0] sm:$0x1] %vm19, %v18
    %s22 = sshllo.u32 0, 1
    %v24 = vld [vmem:[#allocation0] sm:%s22]
    %s25 = sshllo.u32 0, 1
    %26 = vst [vmem:[%s1] sm:%s25] %v24

// kernel: _lambda_.10
$region0: #{_lambda_.10}
  #allocation0 [shape = 'u32[]', space=smem, size = 0x4, offset = 0x4, fixed_abs, tag = 'smem constant byte address 0x4 - core index']
  #allocation1 [shape = 'u32[144,128]{1,0:T(1,128)}', space=vmem, size = 0x12000, scoped, tag = 'internal scratch']
  %s0 = inlined_call_operand.hbm [shape: f32[2,16,48], index: 0, kind: input, shape index: {}]
  %s1 = inlined_call_operand.hbm [shape: bf16[48,32], index: 1, kind: input, shape index: {}]
  %s2 = inlined_call_operand.hbm [shape: f32[1,32], index: 2, kind: input, shape index: {}]
  %s3 = inlined_call_operand.hbm [shape: f32[1,32], index: 3, kind: input, shape index: {}]
  %s4 = inlined_call_operand.hbm [shape: f32[16,32], index: 4, kind: input, shape index: {}]
  %s5 = inlined_call_operand.hbm [shape: bf16[2,17,32], index: 5, kind: output, shape index: {}]
  %s6 = sld [smem:[#allocation0]]
  $region73: #{_lambda_.10} parent=0
    _
  %s8 = ssub.s32 1, %s6
  %s9 = scalar_select 0, %s8, %s6
  $region1: #{_lambda_.10} parent=0
    #allocation2 [shape = 'u8[16384]{0}', space=vmem, size = 0x4000, scoped, tag = 'input window, operand 0']
    #allocation3 [shape = 's32[2]{0}', space=sflag, size = 0x8, scoped, tag = 'scoped memory for _lambda_.10']
    #allocation4 [shape = 's32[2]{0}', space=sflag, size = 0x8, scoped, tag = 'scoped memory for _lambda_.10']
    #allocation5 [shape = 'u8[12288]{0}', space=vmem, size = 0x3000, scoped, tag = 'input window, operand 1, single buffered']
    #allocation6 [shape = 's32[1]{0}', space=sflag, size = 0x4, scoped, tag = 'scoped memory for _lambda_.10']
    #allocation7 [shape = 'u8[512]{0}', space=vmem, size = 0x400, scoped, tag = 'input window, operand 2, single buffered']
    #allocation8 [shape = 'u8[512]{0}', space=vmem, size = 0x400, scoped, tag = 'input window, operand 3, single buffered']
    #allocation9 [shape = 's32[1]{0}', space=sflag, size = 0x4, scoped, tag = 'scoped memory for _lambda_.10']
    #allocation10 [shape = 'u8[8192]{0}', space=vmem, size = 0x2000, scoped, tag = 'input window, operand 4, single buffered']
    #allocation11 [shape = 'u8[12288]{0}', space=vmem, size = 0x3000, scoped, tag = 'output window, operand 0']
    %10 = vsyncpa [#allocation3], 0
    %s11 = scalar_lea.sflag [#allocation3], 1
    %12 = vsyncpa %s11, 0
    %13 = vsyncpa [#allocation6], 0
    %14 = vsyncpa [#allocation9], 0
    %15 = vsyncpa [#allocation4], 0
    %s16 = scalar_lea.sflag [#allocation4], 1
    %17 = vsyncpa %s16, 0
    loop: start=0, step=1, limit=4
    $region2: #{_lambda_.10} parent=1 // loop_pre_header
      _
    $region3: #{_lambda_.10} parent=1 // loop_header
      %s19 = sphi 0, %s23
      %p20 = scmp.ge.s32.totalorder %s19, 4
      %s29 = sphi 0, %s31
      %s32 = sphi 0, %s29
      %s33 = sphi 0, %s32
      %s49 = sphi 0, %s33
      %s53 = sphi 0, %s53
      %s55 = sphi 0, %s53
      %s56 = sphi 0, %s55
      %s70 = sphi 0, %s56
      %s74 = sphi 0, %s74
      %s76 = sphi 0, %s74
      %s77 = sphi 0, %s76
      %s91 = sphi 0, %s77
      %s95 = sphi 0, %s95
      %s97 = sphi 0, %s95
      %s98 = sphi 0, %s97
      %s112 = sphi 0, %s98
      %s116 = sphi 0, %s116
      %s118 = sphi 0, %s116
      %s119 = sphi 0, %s118
      %s133 = sphi 0, %s119
      %s139 = sphi 0, %s141
      %s142 = sphi 0, %s139
      %s143 = sphi 0, %s142
      %s159 = sphi 0, %s143
    $region4: #{_lambda_.10} parent=1 // loop_header_branch
      %22 = sbr.rel (%p20) target = $region8
    $region5: #{_lambda_.10} parent=1 // loop_body
      %s24 = ssub.s32 %s19, 1
      %s25 = ssub.s32 %s19, 2
      %s26 = sadd.s32 %s19, 1
      %s27 = ssub.s32 %s19, %s26
      %p28 = scmp.eq.s32.totalorder %s27, 0
      %s30 = sadd.s32 %s29, 1
      %s31 = scalar_select %p28, %s29, %s30
      %p34 = pneg %p28
      %p35 = scmp.eq.s32.totalorder %s19, 1
      %p36 = por %p34, %p35
      %p37 = scmp.ne.s32.totalorder %s29, %s32
      %p38 = scmp.eq.s32.totalorder %s19, 0
      %p39 = por %p37, %p38
      %p40 = scmp.ne.s32.totalorder %s29, %s32
      %p41 = scmp.eq.s32.totalorder %s24, 1
      %p42 = por %p40, %p41
      %p43 = scmp.ne.s32.totalorder %s32, %s33
      %p44 = scmp.eq.s32.totalorder %s24, 0
      %p45 = por %p43, %p44
      %p46 = scmp.ne.s32.totalorder %s32, %s33
      %p47 = scmp.eq.s32.totalorder %s25, 1
      %p48 = por %p46, %p47
      %p50 = scmp.ne.s32.totalorder %s33, %s49
      %p51 = scmp.eq.s32.totalorder %s25, 0
      %p52 = por %p50, %p51
      %s54 = sadd.s32 %s53, 1
      %p57 = scmp.eq.s32.totalorder %s19, 1
      %p58 = scmp.ne.s32.totalorder %s53, %s55
      %p59 = scmp.eq.s32.totalorder %s19, 0
      %p60 = por %p58, %p59
      %p61 = scmp.ne.s32.totalorder %s53, %s55
      %p62 = scmp.eq.s32.totalorder %s24, 1
      %p63 = por %p61, %p62
      %p64 = scmp.ne.s32.totalorder %s55, %s56
      %p65 = scmp.eq.s32.totalorder %s24, 0
      %p66 = por %p64, %p65
      %p67 = scmp.ne.s32.totalorder %s55, %s56
      %p68 = scmp.eq.s32.totalorder %s25, 1
      %p69 = por %p67, %p68
      %p71 = scmp.ne.s32.totalorder %s56, %s70
      %p72 = scmp.eq.s32.totalorder %s25, 0
      %p73 = por %p71, %p72
      %s75 = sadd.s32 %s74, 1
      %p78 = scmp.eq.s32.totalorder %s19, 1
      %p79 = scmp.ne.s32.totalorder %s74, %s76
      %p80 = scmp.eq.s32.totalorder %s19, 0
      %p81 = por %p79, %p80
      %p82 = scmp.ne.s32.totalorder %s74, %s76
      %p83 = scmp.eq.s32.totalorder %s24, 1
      %p84 = por %p82, %p83
      %p85 = scmp.ne.s32.totalorder %s76, %s77
      %p86 = scmp.eq.s32.totalorder %s24, 0
      %p87 = por %p85, %p86
      %p88 = scmp.ne.s32.totalorder %s76, %s77
      %p89 = scmp.eq.s32.totalorder %s25, 1
      %p90 = por %p88, %p89
      %p92 = scmp.ne.s32.totalorder %s77, %s91
      %p93 = scmp.eq.s32.totalorder %s25, 0
      %p94 = por %p92, %p93
      %s96 = sadd.s32 %s95, 1
      %p99 = scmp.eq.s32.totalorder %s19, 1
      %p100 = scmp.ne.s32.totalorder %s95, %s97
      %p101 = scmp.eq.s32.totalorder %s19, 0
      %p102 = por %p100, %p101
      %p103 = scmp.ne.s32.totalorder %s95, %s97
      %p104 = scmp.eq.s32.totalorder %s24, 1
      %p105 = por %p103, %p104
      %p106 = scmp.ne.s32.totalorder %s97, %s98
      %p107 = scmp.eq.s32.totalorder %s24, 0
      %p108 = por %p106, %p107
      %p109 = scmp.ne.s32.totalorder %s97, %s98
      %p110 = scmp.eq.s32.totalorder %s25, 1
      %p111 = por %p109, %p110
      %p113 = scmp.ne.s32.totalorder %s98, %s112
      %p114 = scmp.eq.s32.totalorder %s25, 0
      %p115 = por %p113, %p114
      %s117 = sadd.s32 %s116, 1
      %p120 = scmp.eq.s32.totalorder %s19, 1
      %p121 = scmp.ne.s32.totalorder %s116, %s118
      %p122 = scmp.eq.s32.totalorder %s19, 0
      %p123 = por %p121, %p122
      %p124 = scmp.ne.s32.totalorder %s116, %s118
      %p125 = scmp.eq.s32.totalorder %s24, 1
      %p126 = por %p124, %p125
      %p127 = scmp.ne.s32.totalorder %s118, %s119
      %p128 = scmp.eq.s32.totalorder %s24, 0
      %p129 = por %p127, %p128
      %p130 = scmp.ne.s32.totalorder %s118, %s119
      %p131 = scmp.eq.s32.totalorder %s25, 1
      %p132 = por %p130, %p131
      %p134 = scmp.ne.s32.totalorder %s119, %s133
      %p135 = scmp.eq.s32.totalorder %s25, 0
      %p136 = por %p134, %p135
      %s137 = ssub.s32 %s19, %s26
      %p138 = scmp.eq.s32.totalorder %s137, 0
      %s140 = sadd.s32 %s139, 1
      %s141 = scalar_select %p138, %s139, %s140
      %p144 = pneg %p138
      %p145 = scmp.eq.s32.totalorder %s19, 1
      %p146 = por %p144, %p145
      %p147 = scmp.ne.s32.totalorder %s139, %s142
      %p148 = scmp.eq.s32.totalorder %s19, 0
      %p149 = por %p147, %p148
      %p150 = scmp.ne.s32.totalorder %s139, %s142
      %p151 = scmp.eq.s32.totalorder %s24, 1
      %p152 = por %p150, %p151
      %p153 = scmp.ne.s32.totalorder %s142, %s143
      %p154 = scmp.eq.s32.totalorder %s24, 0
      %p155 = por %p153, %p154
      %p156 = scmp.ne.s32.totalorder %s142, %s143
      %p157 = scmp.eq.s32.totalorder %s25, 1
      %p158 = por %p156, %p157
      %p160 = scmp.ne.s32.totalorder %s143, %s159
      %p161 = scmp.eq.s32.totalorder %s25, 0
      %p162 = por %p160, %p161
      %p163 = scmp.le.s32.totalorder 1, %s19
      %p164 = scmp.lt.s32.totalorder %s19, 3
      %p165 = pnand %p163, %p164
      %p166 = pneg %p165
      // Predicated region
      $region9: #{_lambda_.10} parent=5 // pred_check
        _
      $region10: #{_lambda_.10} parent=5 // pred_check_branch
        %168 = sbr.rel (%p165) target = $region12
      $region11: #{_lambda_.10} parent=5 // pred_region
        %s169 = ssub.s32 %s19, 1
        // Predicated region
        $region13: #{_lambda_.10} parent=11 // pred_check
          %p170 = pneg %p66
        $region14: #{_lambda_.10} parent=11 // pred_check_branch
          %172 = sbr.rel (%p170) target = $region16
        $region15: #{_lambda_.10} parent=11 // pred_region
          %s174 = ssub.s32 384, 384
          %175 = vsyncadd [#allocation6], %s174
          %s176 = sshll.u32 [#allocation5], 4
          %s177 = int_to_ptr.vmem [resolvable:$true] %s176
          %182 = dma.hbm_to_vmem [thread:$0]  %s1, 384, %s177, [#allocation6], 64, 64, 4
        $region16: #{_lambda_.10} parent=11 // pred_fallthru
          _
        // Predicated region
        $region17: #{_lambda_.10} parent=11 // pred_check
          %p183 = pneg %p87
        $region18: #{_lambda_.10} parent=11 // pred_check_branch
          %185 = sbr.rel (%p183) target = $region20
        $region19: #{_lambda_.10} parent=11 // pred_region
          %s187 = ssub.s32 16, 16
          %188 = vsyncadd [#allocation6], %s187
          %s190 = sshll.u32 [#allocation7], 4
          %s191 = int_to_ptr.vmem [resolvable:$true] %s190
          %193 = dma.hbm_to_vmem [thread:$0]  %s2, 16, %s191, [#allocation6]
        $region20: #{_lambda_.10} parent=11 // pred_fallthru
          _
        // Predicated region
        $region21: #{_lambda_.10} parent=11 // pred_check
          %p194 = pneg %p108
        $region22: #{_lambda_.10} parent=11 // pred_check_branch
          %196 = sbr.rel (%p194) target = $region24
        $region23: #{_lambda_.10} parent=11 // pred_region
          %s198 = ssub.s32 16, 16
          %199 = vsyncadd [#allocation9], %s198
          %s201 = sshll.u32 [#allocation8], 4
          %s202 = int_to_ptr.vmem [resolvable:$true] %s201
          %204 = dma.hbm_to_vmem [thread:$0]  %s3, 16, %s202, [#allocation9]
        $region24: #{_lambda_.10} parent=11 // pred_fallthru
          _
        // Predicated region
        $region25: #{_lambda_.10} parent=11 // pred_check
          %p205 = pneg %p129
        $region26: #{_lambda_.10} parent=11 // pred_check_branch
          %207 = sbr.rel (%p205) target = $region28
        $region27: #{_lambda_.10} parent=11 // pred_region
          %s209 = ssub.s32 256, 256
          %210 = vsyncadd [#allocation9], %s209
          %s211 = sshll.u32 [#allocation10], 4
          %s212 = int_to_ptr.vmem [resolvable:$true] %s211
          %217 = dma.hbm_to_vmem [thread:$0]  %s4, 256, %s212, [#allocation9], 128, 128, 8
        $region28: #{_lambda_.10} parent=11 // pred_fallthru
          _
      $region12: #{_lambda_.10} parent=5 // pred_fallthru
        _
      %p218 = scmp.lt.s32.totalorder %s19, 2
      // Predicated region
      $region29: #{_lambda_.10} parent=5 // pred_check
        %p219 = pneg %p218
      $region30: #{_lambda_.10} parent=5 // pred_check_branch
        %221 = sbr.rel (%p219) target = $region32
      $region31: #{_lambda_.10} parent=5 // pred_region
        // Predicated region
        $region33: #{_lambda_.10} parent=31 // pred_check
          %p222 = pneg %p39
        $region34: #{_lambda_.10} parent=31 // pred_check_branch
          %224 = sbr.rel (%p222) target = $region36
        $region35: #{_lambda_.10} parent=31 // pred_region
          %s225 = sand.u32 %s29, 1
          %s226 = scalar_lea.sflag [#allocation3], %s225
          %s227 = sand.u32 %s29, 1
          %s228 = smul.addr %s227, 16
          %s229 = scalar_lea.vmem [#allocation2], %s228
          %s231 = ssub.s32 256, 256
          %232 = vsyncadd %s226, %s231
          %s233 = smul.addr %s19, 2
          %s234 = smul.addr %s233, 128
          %s235 = scalar_lea.hbm %s0, %s234
          %s236 = sshll.u32 %s229, 4
          %s237 = int_to_ptr.vmem [resolvable:$true] %s236
          %242 = dma.hbm_to_vmem [thread:$0]  %s235, 256, %s237, %s226, 128, 128, 8
        $region36: #{_lambda_.10} parent=31 // pred_fallthru
          _
      $region32: #{_lambda_.10} parent=5 // pred_fallthru
        _
      %p243 = scmp.le.s32.totalorder 1, %s19
      %p244 = scmp.lt.s32.totalorder %s19, 3
      %p245 = pnand %p243, %p244
      %p246 = pneg %p245
      // Predicated region
      $region37: #{_lambda_.10} parent=5 // pred_check
        _
      $region38: #{_lambda_.10} parent=5 // pred_check_branch
        %248 = sbr.rel (%p245) target = $region40
      $region39: #{_lambda_.10} parent=5 // pred_region
        %s249 = ssub.s32 %s19, 1
        %s250 = sand.u32 %s32, 1
        %s251 = scalar_lea.sflag [#allocation3], %s250
        %s252 = sand.u32 %s32, 1
        %s253 = smul.addr %s252, 16
        %s254 = scalar_lea.vmem [#allocation2], %s253
        // Predicated region
        $region41: #{_lambda_.10} parent=39 // pred_check
          %p255 = pneg %p45
        $region42: #{_lambda_.10} parent=39 // pred_check_branch
          %257 = sbr.rel (%p255) target = $region44
        $region43: #{_lambda_.10} parent=39 // pred_region
          %258 = dma.done %s251, 256
        $region44: #{_lambda_.10} parent=39 // pred_fallthru
          _
        // Predicated region
        $region45: #{_lambda_.10} parent=39 // pred_check
          %p259 = pneg %p66
        $region46: #{_lambda_.10} parent=39 // pred_check_branch
          %261 = sbr.rel (%p259) target = $region48
        $region47: #{_lambda_.10} parent=39 // pred_region
          %262 = dma.done [#allocation6], 384
        $region48: #{_lambda_.10} parent=39 // pred_fallthru
          _
        // Predicated region
        $region49: #{_lambda_.10} parent=39 // pred_check
          %p263 = pneg %p87
        $region50: #{_lambda_.10} parent=39 // pred_check_branch
          %265 = sbr.rel (%p263) target = $region52
        $region51: #{_lambda_.10} parent=39 // pred_region
          %266 = dma.done [#allocation6], 16
        $region52: #{_lambda_.10} parent=39 // pred_fallthru
          _
        // Predicated region
        $region53: #{_lambda_.10} parent=39 // pred_check
          %p267 = pneg %p108
        $region54: #{_lambda_.10} parent=39 // pred_check_branch
          %269 = sbr.rel (%p267) target = $region56
        $region55: #{_lambda_.10} parent=39 // pred_region
          %270 = dma.done [#allocation9], 16
        $region56: #{_lambda_.10} parent=39 // pred_fallthru
          _
        // Predicated region
        $region57: #{_lambda_.10} parent=39 // pred_check
          %p271 = pneg %p129
        $region58: #{_lambda_.10} parent=39 // pred_check_branch
          %273 = sbr.rel (%p271) target = $region60
        $region59: #{_lambda_.10} parent=39 // pred_region
          %274 = dma.done [#allocation9], 256
        $region60: #{_lambda_.10} parent=39 // pred_fallthru
          _
        %s275 = sand.u32 %s32, 1
        %s276 = scalar_lea.sflag [#allocation3], %s275
        %s277 = sand.u32 %s32, 1
        %s278 = smul.addr %s277, 16
        %s279 = scalar_lea.vmem [#allocation2], %s278
        %p280 = pneg %p45
        %p281 = pneg %p42
        %p282 = pneg %p66
        %p283 = pneg %p63
        %p284 = pneg %p87
        %p285 = pneg %p84
        %p286 = pneg %p108
        %p287 = pneg %p105
        %p288 = pneg %p129
        %p289 = pneg %p126
        %p290 = pneg %p155
        %p291 = pneg %p152
        %s292 = sand.u32 %s142, 1
        %s293 = scalar_lea.sflag [#allocation4], %s292
        %s294 = sand.u32 %s142, 1
        %s295 = smul.addr %s294, 12
        %s296 = scalar_lea.vmem [#allocation11], %s295
        %v298 = vld [vmem:[%s254] sm:$0xff]
        %v299 = vld [vmem:[%s254 + $0x8] sm:$0xff]
        %v300 = vpack.c.bf16 %v299, %v298
        %v301 = vld [vmem:[#allocation5] sm:$0xf]
        %v302 = vld [vmem:[#allocation5 + $0x4] sm:$0xf]
        %v303 = vld [vmem:[#allocation5 + $0x8] sm:$0xf]
        %v304 = vld [vmem:[#allocation5 + $0xc] sm:$0xf]
        %v305 = vld [vmem:[#allocation5 + $0x10] sm:$0xf]
        %v306 = vld [vmem:[#allocation5 + $0x14] sm:$0xf]
        %v307 = vld [vmem:[#allocation7] sm:$0x1]
        %v309 = vlaneseq
        %v310 = vshrl.u32 %v309, 7
        %v311 = vsub.s32 0, %v310
        %v312 = vrot.slane %v307, %v311
        %v320 = vunpack.c.l.b16 %v301
        %v321 = vunpack.c.l.b16 %v302
        %v322 = vunpack.c.l.b16 %v303
        %v323 = vunpack.c.l.b16 %v304
        %v324 = vunpack.c.l.b16 %v305
        %v325 = vunpack.c.l.b16 %v306
        %v326 = vpack.c.b16 %v321, %v320
        %v327 = vpack.c.b16 %v323, %v322
        %v328 = vpack.c.b16 %v325, %v324
        %vm332 = vcmask 392192
        %v334 = vsel %vm332, %v300, 0
        %336 = vmatprep.subr.bf16.mxu0 0
        %337 = vmatpush1.bf16.msra.mxu0 %v326
        %338 = vmatprep.subr.bf16.mxu0 0
        %339 = vmatpush1.bf16.msra.mxu0 %v327
        %340 = vmatprep.subr.bf16.mxu0 0
        %341 = vmatpush1.bf16.msra.mxu0 %v328
        %342 = vmatprep.subr.bf16.mxu0 0
        %343 = vmatpush1.bf16.msra.mxu0 0
        %344 = vmatprep.subr.bf16.mxu0 0
        %345 = vmatpush1.bf16.msra.mxu0 0
        %346 = vmatprep.subr.bf16.mxu0 0
        %347 = vmatpush1.bf16.msra.mxu0 0
        %348 = vmatprep.subr.bf16.mxu0 0
        %349 = vmatpush1.bf16.msra.mxu0 0
        %350 = vmatprep.subr.bf16.mxu0 0
        %351 = vmatpush1.bf16.msra.mxu0 0
        %352 = vmatprep.subr.bf16.mxu0 0
        %353 = vmatpush1.bf16.msra.mxu0 0
        %354 = vmatprep.subr.bf16.mxu0 0
        %355 = vmatpush1.bf16.msra.mxu0 0
        %356 = vmatprep.subr.bf16.mxu0 0
        %357 = vmatpush1.bf16.msra.mxu0 0
        %358 = vmatprep.subr.bf16.mxu0 0
        %359 = vmatpush1.bf16.msra.mxu0 0
        %360 = vmatprep.subr.bf16.mxu0 0
        %361 = vmatpush1.bf16.msra.mxu0 0
        %362 = vmatprep.subr.bf16.mxu0 0
        %363 = vmatpush1.bf16.msra.mxu0 0
        %364 = vmatprep.subr.bf16.mxu0 0
        %365 = vmatpush1.bf16.msra.mxu0 0
        %366 = vmatprep.subr.bf16.mxu0 0
        %367 = vmatpush1.bf16.msra.mxu0 0
        %368 = vmatprep.mubr.bf16.mxu0 0
        %369 = vmatmul.mubr.bf16.gmra.mrb[0].mxu0 %v334
        %v370 = vpop.f32.mrb[0].mxu0
        %v371 = vadd.f32 %v312, %v370
        %v372 = vpop.f32.mrb[0].mxu0
        %v373 = vpop.f32.mrb[0].mxu0
        %v374 = vadd.f32 %v312, %v373
        %v375 = vpop.f32.mrb[0].mxu0
        %376 = vdwg.mxu0
        %v377 = vld [vmem:[#allocation10] sm:$0xff]
        %v378 = vld [vmem:[#allocation10 + $0x8] sm:$0xff]
        %v379 = vadd.f32 %v371, %v377
        %v380 = vadd.f32 %v374, %v378
        %v381 = vld [vmem:[#allocation8] sm:$0x1]
        %vm384 = vcmask 1040384
        %v385 = vrot.slane %v379, 7
        %v386 = vrot.slane %v380, 7
        %v387 = vsel %vm384, %v385, %v386
        %v391 = vsel %vm384, %v381, %v385
        %v392 = vpack.c.bf16 %v387, %v391
        %v393 = vpack.c.bf16 %v386, %v386
        %v396 = vunpack.c.l.b16 %v392
        %v397 = vunpack.c.h.b16 %v392
        %v398 = vunpack.c.l.b16 %v393
        %v399 = vpack.c.b16 %v396, %v396
        %v400 = vpack.c.b16 %v397, %v397
        %v401 = vpack.c.b16 %v398, %v398
        %vm405 = vcmask 257024
        %406 = vst.msk [vmem:[%s296] sm:$0xf] %vm405, %v399
        %407 = vst.msk [vmem:[%s296 + $0x4] sm:$0xf] %vm405, %v400
        %vm408 = vcmask 253952
        %vm409 = vsmask.f32 256
        %vm410 = vmand %vm408, %vm409
        %v411 = vld [vmem:[%s296 + $0x8] sm:$0x1]
        %v412 = vsel %vm410, %v401, %v411
        %413 = vst [vmem:[%s296 + $0x8] sm:$0x1] %v412
        %s414 = sand.u32 %s142, 1
        %s415 = scalar_lea.sflag [#allocation4], %s414
        %s416 = sand.u32 %s142, 1
        %s417 = smul.addr %s416, 12
        %s418 = scalar_lea.vmem [#allocation11], %s417
        // Predicated region
        $region61: #{_lambda_.10} parent=39 // pred_check
          %p419 = pneg %p152
        $region62: #{_lambda_.10} parent=39 // pred_check_branch
          %421 = sbr.rel (%p419) target = $region64
        $region63: #{_lambda_.10} parent=39 // pred_region
          %s423 = ssub.s32 192, 192
          %424 = vsyncadd %s415, %s423
          %s425 = smul.addr %s24, 3
          %s426 = smul.addr %s425, 64
          %s427 = scalar_lea.hbm %s5, %s426
          %s428 = sshll.u32 %s418, 4
          %s429 = int_to_ptr.vmem [resolvable:$true] %s428
          %434 = dma.vmem_to_hbm [thread:$0]  %s429, 192, %s427, %s415, 64, 64, 4
        $region64: #{_lambda_.10} parent=39 // pred_fallthru
          _
      $region40: #{_lambda_.10} parent=5 // pred_fallthru
        _
      %p435 = scmp.le.s32.totalorder 2, %s19
      // Predicated region
      $region65: #{_lambda_.10} parent=5 // pred_check
        %p436 = pneg %p435
      $region66: #{_lambda_.10} parent=5 // pred_check_branch
        %438 = sbr.rel (%p436) target = $region68
      $region67: #{_lambda_.10} parent=5 // pred_region
        %s439 = ssub.s32 %s19, 2
        // Predicated region
        $region69: #{_lambda_.10} parent=67 // pred_check
          %p440 = pneg %p158
        $region70: #{_lambda_.10} parent=67 // pred_check_branch
          %442 = sbr.rel (%p440) target = $region72
        $region71: #{_lambda_.10} parent=67 // pred_region
          %s443 = sand.u32 %s143, 1
          %s444 = scalar_lea.sflag [#allocation4], %s443
          %s445 = sand.u32 %s143, 1
          %s446 = smul.addr %s445, 12
          %s447 = scalar_lea.vmem [#allocation11], %s446
          %448 = dma.done %s444, 192
        $region72: #{_lambda_.10} parent=67 // pred_fallthru
          _
      $region68: #{_lambda_.10} parent=5 // pred_fallthru
        _
    $region6: #{_lambda_.10} parent=1 // loop_footer
      %s23 = sadd.s32 1, %s19
    $region7: #{_lambda_.10} parent=1 // loop_footer_branch
      %18 = sbr.rel target = $region3
    $region8: #{_lambda_.10} parent=1 // loop_exit
      _
    %449 = vsyncpa [#allocation3], 1
    %s450 = scalar_lea.sflag [#allocation3], 1
    %451 = vsyncpa %s450, 1
    %452 = vsyncpa [#allocation6], 1
    %453 = vsyncpa [#allocation9], 1
    %454 = vsyncpa [#allocation4], 1
    %s455 = scalar_lea.sflag [#allocation4], 1
    %456 = vsyncpa %s455, 1

// kernel: _lambda_.11
$region0: #{_lambda_.11}
  #allocation0 [shape = 'u32[]', space=smem, size = 0x4, offset = 0x4, fixed_abs, tag = 'smem constant byte address 0x4 - core index']
  #allocation1 [shape = 'u32[144,128]{1,0:T(1,128)}', space=vmem, size = 0x12000, scoped, tag = 'internal scratch']
  %s0 = inlined_call_operand.hbm [shape: bf16[2,17,32], index: 0, kind: input, shape index: {}]
  %s1 = inlined_call_operand.hbm [shape: f32[1,32], index: 1, kind: input, shape index: {}]
  %s2 = inlined_call_operand.hbm [shape: f32[1,32], index: 2, kind: input, shape index: {}]
  %s3 = inlined_call_operand.hbm [shape: bf16[32,96], index: 3, kind: input, shape index: {}]
  %s4 = inlined_call_operand.hbm [shape: bf16[32,32], index: 4, kind: input, shape index: {}]
  %s5 = inlined_call_operand.hbm [shape: f32[1,32], index: 5, kind: input, shape index: {}]
  %s6 = inlined_call_operand.hbm [shape: bf16[2,17,32], index: 6, kind: output, shape index: {}]
  %s7 = sld [smem:[#allocation0]]
  $region81: #{_lambda_.11} parent=0
    _
  %s9 = ssub.s32 1, %s7
  %s10 = scalar_select 0, %s9, %s7
  $region1: #{_lambda_.11} parent=0
    #allocation2 [shape = 'u8[12288]{0}', space=vmem, size = 0x3000, scoped, tag = 'input window, operand 0']
    #allocation3 [shape = 's32[2]{0}', space=sflag, size = 0x8, scoped, tag = 'scoped memory for _lambda_.11']
    #allocation4 [shape = 's32[2]{0}', space=sflag, size = 0x8, scoped, tag = 'scoped memory for _lambda_.11']
    #allocation5 [shape = 'u8[512]{0}', space=vmem, size = 0x400, scoped, tag = 'input window, operand 1, single buffered']
    #allocation6 [shape = 's32[1]{0}', space=sflag, size = 0x4, scoped, tag = 'scoped memory for _lambda_.11']
    #allocation7 [shape = 'u8[512]{0}', space=vmem, size = 0x400, scoped, tag = 'input window, operand 2, single buffered']
    #allocation8 [shape = 'u8[8192]{0}', space=vmem, size = 0x2000, scoped, tag = 'input window, operand 3, single buffered']
    #allocation9 [shape = 's32[1]{0}', space=sflag, size = 0x4, scoped, tag = 'scoped memory for _lambda_.11']
    #allocation10 [shape = 'u8[8192]{0}', space=vmem, size = 0x2000, scoped, tag = 'input window, operand 4, single buffered']
    #allocation11 [shape = 'u8[512]{0}', space=vmem, size = 0x400, scoped, tag = 'input window, operand 5, single buffered']
    #allocation12 [shape = 's32[1]{0}', space=sflag, size = 0x4, scoped, tag = 'scoped memory for _lambda_.11']
    #allocation13 [shape = 'u8[12288]{0}', space=vmem, size = 0x3000, scoped, tag = 'output window, operand 0']
    %11 = vsyncpa [#allocation3], 0
    %s12 = scalar_lea.sflag [#allocation3], 1
    %13 = vsyncpa %s12, 0
    %14 = vsyncpa [#allocation6], 0
    %15 = vsyncpa [#allocation9], 0
    %16 = vsyncpa [#allocation12], 0
    %17 = vsyncpa [#allocation4], 0
    %s18 = scalar_lea.sflag [#allocation4], 1
    %19 = vsyncpa %s18, 0
    loop: start=0, step=1, limit=4
    $region2: #{_lambda_.11} parent=1 // loop_pre_header
      _
    $region3: #{_lambda_.11} parent=1 // loop_header
      %s21 = sphi 0, %s25
      %p22 = scmp.ge.s32.totalorder %s21, 4
      %s31 = sphi 0, %s33
      %s34 = sphi 0, %s31
      %s35 = sphi 0, %s34
      %s51 = sphi 0, %s35
      %s55 = sphi 0, %s55
      %s57 = sphi 0, %s55
      %s58 = sphi 0, %s57
      %s72 = sphi 0, %s58
      %s76 = sphi 0, %s76
      %s78 = sphi 0, %s76
      %s79 = sphi 0, %s78
      %s93 = sphi 0, %s79
      %s97 = sphi 0, %s97
      %s99 = sphi 0, %s97
      %s100 = sphi 0, %s99
      %s114 = sphi 0, %s100
      %s118 = sphi 0, %s118
      %s120 = sphi 0, %s118
      %s121 = sphi 0, %s120
      %s135 = sphi 0, %s121
      %s139 = sphi 0, %s139
      %s141 = sphi 0, %s139
      %s142 = sphi 0, %s141
      %s156 = sphi 0, %s142
      %s162 = sphi 0, %s164
      %s165 = sphi 0, %s162
      %s166 = sphi 0, %s165
      %s182 = sphi 0, %s166
    $region4: #{_lambda_.11} parent=1 // loop_header_branch
      %24 = sbr.rel (%p22) target = $region8
    $region5: #{_lambda_.11} parent=1 // loop_body
      %s26 = ssub.s32 %s21, 1
      %s27 = ssub.s32 %s21, 2
      %s28 = sadd.s32 %s21, 1
      %s29 = ssub.s32 %s21, %s28
      %p30 = scmp.eq.s32.totalorder %s29, 0
      %s32 = sadd.s32 %s31, 1
      %s33 = scalar_select %p30, %s31, %s32
      %p36 = pneg %p30
      %p37 = scmp.eq.s32.totalorder %s21, 1
      %p38 = por %p36, %p37
      %p39 = scmp.ne.s32.totalorder %s31, %s34
      %p40 = scmp.eq.s32.totalorder %s21, 0
      %p41 = por %p39, %p40
      %p42 = scmp.ne.s32.totalorder %s31, %s34
      %p43 = scmp.eq.s32.totalorder %s26, 1
      %p44 = por %p42, %p43
      %p45 = scmp.ne.s32.totalorder %s34, %s35
      %p46 = scmp.eq.s32.totalorder %s26, 0
      %p47 = por %p45, %p46
      %p48 = scmp.ne.s32.totalorder %s34, %s35
      %p49 = scmp.eq.s32.totalorder %s27, 1
      %p50 = por %p48, %p49
      %p52 = scmp.ne.s32.totalorder %s35, %s51
      %p53 = scmp.eq.s32.totalorder %s27, 0
      %p54 = por %p52, %p53
      %s56 = sadd.s32 %s55, 1
      %p59 = scmp.eq.s32.totalorder %s21, 1
      %p60 = scmp.ne.s32.totalorder %s55, %s57
      %p61 = scmp.eq.s32.totalorder %s21, 0
      %p62 = por %p60, %p61
      %p63 = scmp.ne.s32.totalorder %s55, %s57
      %p64 = scmp.eq.s32.totalorder %s26, 1
      %p65 = por %p63, %p64
      %p66 = scmp.ne.s32.totalorder %s57, %s58
      %p67 = scmp.eq.s32.totalorder %s26, 0
      %p68 = por %p66, %p67
      %p69 = scmp.ne.s32.totalorder %s57, %s58
      %p70 = scmp.eq.s32.totalorder %s27, 1
      %p71 = por %p69, %p70
      %p73 = scmp.ne.s32.totalorder %s58, %s72
      %p74 = scmp.eq.s32.totalorder %s27, 0
      %p75 = por %p73, %p74
      %s77 = sadd.s32 %s76, 1
      %p80 = scmp.eq.s32.totalorder %s21, 1
      %p81 = scmp.ne.s32.totalorder %s76, %s78
      %p82 = scmp.eq.s32.totalorder %s21, 0
      %p83 = por %p81, %p82
      %p84 = scmp.ne.s32.totalorder %s76, %s78
      %p85 = scmp.eq.s32.totalorder %s26, 1
      %p86 = por %p84, %p85
      %p87 = scmp.ne.s32.totalorder %s78, %s79
      %p88 = scmp.eq.s32.totalorder %s26, 0
      %p89 = por %p87, %p88
      %p90 = scmp.ne.s32.totalorder %s78, %s79
      %p91 = scmp.eq.s32.totalorder %s27, 1
      %p92 = por %p90, %p91
      %p94 = scmp.ne.s32.totalorder %s79, %s93
      %p95 = scmp.eq.s32.totalorder %s27, 0
      %p96 = por %p94, %p95
      %s98 = sadd.s32 %s97, 1
      %p101 = scmp.eq.s32.totalorder %s21, 1
      %p102 = scmp.ne.s32.totalorder %s97, %s99
      %p103 = scmp.eq.s32.totalorder %s21, 0
      %p104 = por %p102, %p103
      %p105 = scmp.ne.s32.totalorder %s97, %s99
      %p106 = scmp.eq.s32.totalorder %s26, 1
      %p107 = por %p105, %p106
      %p108 = scmp.ne.s32.totalorder %s99, %s100
      %p109 = scmp.eq.s32.totalorder %s26, 0
      %p110 = por %p108, %p109
      %p111 = scmp.ne.s32.totalorder %s99, %s100
      %p112 = scmp.eq.s32.totalorder %s27, 1
      %p113 = por %p111, %p112
      %p115 = scmp.ne.s32.totalorder %s100, %s114
      %p116 = scmp.eq.s32.totalorder %s27, 0
      %p117 = por %p115, %p116
      %s119 = sadd.s32 %s118, 1
      %p122 = scmp.eq.s32.totalorder %s21, 1
      %p123 = scmp.ne.s32.totalorder %s118, %s120
      %p124 = scmp.eq.s32.totalorder %s21, 0
      %p125 = por %p123, %p124
      %p126 = scmp.ne.s32.totalorder %s118, %s120
      %p127 = scmp.eq.s32.totalorder %s26, 1
      %p128 = por %p126, %p127
      %p129 = scmp.ne.s32.totalorder %s120, %s121
      %p130 = scmp.eq.s32.totalorder %s26, 0
      %p131 = por %p129, %p130
      %p132 = scmp.ne.s32.totalorder %s120, %s121
      %p133 = scmp.eq.s32.totalorder %s27, 1
      %p134 = por %p132, %p133
      %p136 = scmp.ne.s32.totalorder %s121, %s135
      %p137 = scmp.eq.s32.totalorder %s27, 0
      %p138 = por %p136, %p137
      %s140 = sadd.s32 %s139, 1
      %p143 = scmp.eq.s32.totalorder %s21, 1
      %p144 = scmp.ne.s32.totalorder %s139, %s141
      %p145 = scmp.eq.s32.totalorder %s21, 0
      %p146 = por %p144, %p145
      %p147 = scmp.ne.s32.totalorder %s139, %s141
      %p148 = scmp.eq.s32.totalorder %s26, 1
      %p149 = por %p147, %p148
      %p150 = scmp.ne.s32.totalorder %s141, %s142
      %p151 = scmp.eq.s32.totalorder %s26, 0
      %p152 = por %p150, %p151
      %p153 = scmp.ne.s32.totalorder %s141, %s142
      %p154 = scmp.eq.s32.totalorder %s27, 1
      %p155 = por %p153, %p154
      %p157 = scmp.ne.s32.totalorder %s142, %s156
      %p158 = scmp.eq.s32.totalorder %s27, 0
      %p159 = por %p157, %p158
      %s160 = ssub.s32 %s21, %s28
      %p161 = scmp.eq.s32.totalorder %s160, 0
      %s163 = sadd.s32 %s162, 1
      %s164 = scalar_select %p161, %s162, %s163
      %p167 = pneg %p161
      %p168 = scmp.eq.s32.totalorder %s21, 1
      %p169 = por %p167, %p168
      %p170 = scmp.ne.s32.totalorder %s162, %s165
      %p171 = scmp.eq.s32.totalorder %s21, 0
      %p172 = por %p170, %p171
      %p173 = scmp.ne.s32.totalorder %s162, %s165
      %p174 = scmp.eq.s32.totalorder %s26, 1
      %p175 = por %p173, %p174
      %p176 = scmp.ne.s32.totalorder %s165, %s166
      %p177 = scmp.eq.s32.totalorder %s26, 0
      %p178 = por %p176, %p177
      %p179 = scmp.ne.s32.totalorder %s165, %s166
      %p180 = scmp.eq.s32.totalorder %s27, 1
      %p181 = por %p179, %p180
      %p183 = scmp.ne.s32.totalorder %s166, %s182
      %p184 = scmp.eq.s32.totalorder %s27, 0
      %p185 = por %p183, %p184
      %p186 = scmp.le.s32.totalorder 1, %s21
      %p187 = scmp.lt.s32.totalorder %s21, 3
      %p188 = pnand %p186, %p187
      %p189 = pneg %p188
      // Predicated region
      $region9: #{_lambda_.11} parent=5 // pred_check
        _
      $region10: #{_lambda_.11} parent=5 // pred_check_branch
        %191 = sbr.rel (%p188) target = $region12
      $region11: #{_lambda_.11} parent=5 // pred_region
        %s192 = ssub.s32 %s21, 1
        // Predicated region
        $region13: #{_lambda_.11} parent=11 // pred_check
          %p193 = pneg %p68
        $region14: #{_lambda_.11} parent=11 // pred_check_branch
          %195 = sbr.rel (%p193) target = $region16
        $region15: #{_lambda_.11} parent=11 // pred_region
          %s197 = ssub.s32 16, 16
          %198 = vsyncadd [#allocation6], %s197
          %s200 = sshll.u32 [#allocation5], 4
          %s201 = int_to_ptr.vmem [resolvable:$true] %s200
          %203 = dma.hbm_to_vmem [thread:$0]  %s1, 16, %s201, [#allocation6]
        $region16: #{_lambda_.11} parent=11 // pred_fallthru
          _
        // Predicated region
        $region17: #{_lambda_.11} parent=11 // pred_check
          %p204 = pneg %p89
        $region18: #{_lambda_.11} parent=11 // pred_check_branch
          %206 = sbr.rel (%p204) target = $region20
        $region19: #{_lambda_.11} parent=11 // pred_region
          %s208 = ssub.s32 16, 16
          %209 = vsyncadd [#allocation6], %s208
          %s211 = sshll.u32 [#allocation7], 4
          %s212 = int_to_ptr.vmem [resolvable:$true] %s211
          %214 = dma.hbm_to_vmem [thread:$0]  %s2, 16, %s212, [#allocation6]
        $region20: #{_lambda_.11} parent=11 // pred_fallthru
          _
        // Predicated region
        $region21: #{_lambda_.11} parent=11 // pred_check
          %p215 = pneg %p110
        $region22: #{_lambda_.11} parent=11 // pred_check_branch
          %217 = sbr.rel (%p215) target = $region24
        $region23: #{_lambda_.11} parent=11 // pred_region
          %s219 = ssub.s32 256, 256
          %220 = vsyncadd [#allocation9], %s219
          %s221 = sshll.u32 [#allocation8], 4
          %s222 = int_to_ptr.vmem [resolvable:$true] %s221
          %227 = dma.hbm_to_vmem [thread:$0]  %s3, 256, %s222, [#allocation9], 64, 64, 4
        $region24: #{_lambda_.11} parent=11 // pred_fallthru
          _
        // Predicated region
        $region25: #{_lambda_.11} parent=11 // pred_check
          %p228 = pneg %p131
        $region26: #{_lambda_.11} parent=11 // pred_check_branch
          %230 = sbr.rel (%p228) target = $region28
        $region27: #{_lambda_.11} parent=11 // pred_region
          %s232 = ssub.s32 256, 256
          %233 = vsyncadd [#allocation9], %s232
          %s234 = sshll.u32 [#allocation10], 4
          %s235 = int_to_ptr.vmem [resolvable:$true] %s234
          %240 = dma.hbm_to_vmem [thread:$0]  %s4, 256, %s235, [#allocation9], 64, 64, 4
        $region28: #{_lambda_.11} parent=11 // pred_fallthru
          _
        // Predicated region
        $region29: #{_lambda_.11} parent=11 // pred_check
          %p241 = pneg %p152
        $region30: #{_lambda_.11} parent=11 // pred_check_branch
          %243 = sbr.rel (%p241) target = $region32
        $region31: #{_lambda_.11} parent=11 // pred_region
          %s245 = ssub.s32 16, 16
          %246 = vsyncadd [#allocation12], %s245
          %s248 = sshll.u32 [#allocation11], 4
          %s249 = int_to_ptr.vmem [resolvable:$true] %s248
          %251 = dma.hbm_to_vmem [thread:$0]  %s5, 16, %s249, [#allocation12]
        $region32: #{_lambda_.11} parent=11 // pred_fallthru
          _
      $region12: #{_lambda_.11} parent=5 // pred_fallthru
        _
      %p252 = scmp.lt.s32.totalorder %s21, 2
      // Predicated region
      $region33: #{_lambda_.11} parent=5 // pred_check
        %p253 = pneg %p252
      $region34: #{_lambda_.11} parent=5 // pred_check_branch
        %255 = sbr.rel (%p253) target = $region36
      $region35: #{_lambda_.11} parent=5 // pred_region
        // Predicated region
        $region37: #{_lambda_.11} parent=35 // pred_check
          %p256 = pneg %p41
        $region38: #{_lambda_.11} parent=35 // pred_check_branch
          %258 = sbr.rel (%p256) target = $region40
        $region39: #{_lambda_.11} parent=35 // pred_region
          %s259 = sand.u32 %s31, 1
          %s260 = scalar_lea.sflag [#allocation3], %s259
          %s261 = sand.u32 %s31, 1
          %s262 = smul.addr %s261, 12
          %s263 = scalar_lea.vmem [#allocation2], %s262
          %s265 = ssub.s32 192, 192
          %266 = vsyncadd %s260, %s265
          %s267 = smul.addr %s21, 3
          %s268 = smul.addr %s267, 64
          %s269 = scalar_lea.hbm %s0, %s268
          %s270 = sshll.u32 %s263, 4
          %s271 = int_to_ptr.vmem [resolvable:$true] %s270
          %276 = dma.hbm_to_vmem [thread:$0]  %s269, 192, %s271, %s260, 64, 64, 4
        $region40: #{_lambda_.11} parent=35 // pred_fallthru
          _
      $region36: #{_lambda_.11} parent=5 // pred_fallthru
        _
      %p277 = scmp.le.s32.totalorder 1, %s21
      %p278 = scmp.lt.s32.totalorder %s21, 3
      %p279 = pnand %p277, %p278
      %p280 = pneg %p279
      // Predicated region
      $region41: #{_lambda_.11} parent=5 // pred_check
        _
      $region42: #{_lambda_.11} parent=5 // pred_check_branch
        %282 = sbr.rel (%p279) target = $region44
      $region43: #{_lambda_.11} parent=5 // pred_region
        %s283 = ssub.s32 %s21, 1
        %s284 = sand.u32 %s34, 1
        %s285 = scalar_lea.sflag [#allocation3], %s284
        %s286 = sand.u32 %s34, 1
        %s287 = smul.addr %s286, 12
        %s288 = scalar_lea.vmem [#allocation2], %s287
        // Predicated region
        $region45: #{_lambda_.11} parent=43 // pred_check
          %p289 = pneg %p47
        $region46: #{_lambda_.11} parent=43 // pred_check_branch
          %291 = sbr.rel (%p289) target = $region48
        $region47: #{_lambda_.11} parent=43 // pred_region
          %292 = dma.done %s285, 192
        $region48: #{_lambda_.11} parent=43 // pred_fallthru
          _
        // Predicated region
        $region49: #{_lambda_.11} parent=43 // pred_check
          %p293 = pneg %p68
        $region50: #{_lambda_.11} parent=43 // pred_check_branch
          %295 = sbr.rel (%p293) target = $region52
        $region51: #{_lambda_.11} parent=43 // pred_region
          %296 = dma.done [#allocation6], 16
        $region52: #{_lambda_.11} parent=43 // pred_fallthru
          _
        // Predicated region
        $region53: #{_lambda_.11} parent=43 // pred_check
          %p297 = pneg %p89
        $region54: #{_lambda_.11} parent=43 // pred_check_branch
          %299 = sbr.rel (%p297) target = $region56
        $region55: #{_lambda_.11} parent=43 // pred_region
          %300 = dma.done [#allocation6], 16
        $region56: #{_lambda_.11} parent=43 // pred_fallthru
          _
        // Predicated region
        $region57: #{_lambda_.11} parent=43 // pred_check
          %p301 = pneg %p110
        $region58: #{_lambda_.11} parent=43 // pred_check_branch
          %303 = sbr.rel (%p301) target = $region60
        $region59: #{_lambda_.11} parent=43 // pred_region
          %304 = dma.done [#allocation9], 256
        $region60: #{_lambda_.11} parent=43 // pred_fallthru
          _
        // Predicated region
        $region61: #{_lambda_.11} parent=43 // pred_check
          %p305 = pneg %p131
        $region62: #{_lambda_.11} parent=43 // pred_check_branch
          %307 = sbr.rel (%p305) target = $region64
        $region63: #{_lambda_.11} parent=43 // pred_region
          %308 = dma.done [#allocation9], 256
        $region64: #{_lambda_.11} parent=43 // pred_fallthru
          _
        // Predicated region
        $region65: #{_lambda_.11} parent=43 // pred_check
          %p309 = pneg %p152
        $region66: #{_lambda_.11} parent=43 // pred_check_branch
          %311 = sbr.rel (%p309) target = $region68
        $region67: #{_lambda_.11} parent=43 // pred_region
          %312 = dma.done [#allocation12], 16
        $region68: #{_lambda_.11} parent=43 // pred_fallthru
          _
        %s313 = sand.u32 %s34, 1
        %s314 = scalar_lea.sflag [#allocation3], %s313
        %s315 = sand.u32 %s34, 1
        %s316 = smul.addr %s315, 12
        %s317 = scalar_lea.vmem [#allocation2], %s316
        %p318 = pneg %p47
        %p319 = pneg %p44
        %p320 = pneg %p68
        %p321 = pneg %p65
        %p322 = pneg %p89
        %p323 = pneg %p86
        %p324 = pneg %p110
        %p325 = pneg %p107
        %p326 = pneg %p131
        %p327 = pneg %p128
        %p328 = pneg %p152
        %p329 = pneg %p149
        %p330 = pneg %p178
        %p331 = pneg %p175
        %s332 = sand.u32 %s165, 1
        %s333 = scalar_lea.sflag [#allocation4], %s332
        %s334 = sand.u32 %s165, 1
        %s335 = smul.addr %s334, 12
        %s336 = scalar_lea.vmem [#allocation13], %s335
        %v338 = vld [vmem:[%s288] sm:$0xf]
        %v339 = vld [vmem:[%s288 + $0x4] sm:$0xf]
        %v340 = vld [vmem:[%s288 + $0x8] sm:$0x1]
        %v341 = vunpack.c.l.bf16 %v338
        %v342 = vunpack.c.l.bf16 %v339
        %v343 = vunpack.c.l.bf16 %v340
        %v344 = vld [vmem:[#allocation5] sm:$0x1]
        %v345 = vld [vmem:[#allocation7] sm:$0x1]
        %vm346 = vcmask 261120
        %v347 = vsel %vm346, %v341, 0.0
        %348 = vadd.xlane.f32.xlu0 %v347
        %v349 = vpop.xlane.xlu0 %348
        %v350 = vsel %vm346, %v342, 0.0
        %351 = vadd.xlane.f32.xlu0 %v350
        %v352 = vpop.xlane.xlu0 %351
        %vm353 = vcmask 253952
        %v354 = vsel %vm353, %v343, 0.0
        %355 = vadd.xlane.f32.xlu0 %v354
        %v356 = vpop.xlane.xlu0 %355
        %v357 = vrcp.pop 32.0
        %v358 = vmul.f32 %v349, %v357
        %v359 = vmul.f32 %v352, %v357
        %v360 = vmul.f32 %v356, %v357
        %v361 = vsub.f32 %v341, %v358
        %v362 = vsub.f32 %v342, %v359
        %v363 = vsub.f32 %v343, %v360
        %v364 = vmul.f32 %v361, %v361
        %v365 = vmul.f32 %v362, %v362
        %v366 = vmul.f32 %v363, %v363
        %v367 = vsel %vm346, %v364, 0.0
        %368 = vadd.xlane.f32.xlu0 %v367
        %v369 = vpop.xlane.xlu0 %368
        %v370 = vsel %vm346, %v365, 0.0
        %371 = vadd.xlane.f32.xlu0 %v370
        %v372 = vpop.xlane.xlu0 %371
        %v373 = vsel %vm353, %v366, 0.0
        %374 = vadd.xlane.f32.xlu0 %v373
        %v375 = vpop.xlane.xlu0 %374
        %v376 = vmul.f32 %v369, %v357
        %v377 = vmul.f32 %v372, %v357
        %v378 = vmul.f32 %v375, %v357
        %v379 = vadd.f32 %v376, 1e-05
        %v380 = vadd.f32 %v377, 1e-05
        %v381 = vadd.f32 %v378, 1e-05
        %v382 = vrsqrt.pop %v379
        %v383 = vrsqrt.pop %v380
        %v384 = vrsqrt.pop %v381
        %v385 = vmul.f32 %v361, %v382
        %v386 = vmul.f32 %v362, %v383
        %v387 = vmul.f32 %v363, %v384
        %v389 = vlaneseq
        %v390 = vshrl.u32 %v389, 7
        %v391 = vsub.s32 0, %v390
        %v392 = vrot.slane %v344, %v391
        %v394 = vmul.f32 %v385, %v392
        %v395 = vmul.f32 %v386, %v392
        %v396 = vmul.f32 %v387, %v392
        %v398 = vlaneseq
        %v399 = vshrl.u32 %v398, 7
        %v400 = vsub.s32 0, %v399
        %v401 = vrot.slane %v345, %v400
        %v403 = vadd.f32 %v394, %v401
        %v404 = vadd.f32 %v395, %v401
        %v405 = vadd.f32 %v396, %v401
        %v406 = vpack.c.bf16 %v404, %v403
        %v407 = vpack.c.bf16 %v405, %v405
        %v408 = vld [vmem:[#allocation8] sm:$0xf]
        %v409 = vld [vmem:[#allocation8 + $0x4] sm:$0xf]
        %v410 = vld [vmem:[#allocation8 + $0x8] sm:$0xf]
        %v411 = vld [vmem:[#allocation8 + $0xc] sm:$0xf]
        %v416 = vunpack.c.l.b16 %v408
        %v417 = vunpack.c.l.b16 %v409
        %v418 = vunpack.c.l.b16 %v410
        %v419 = vunpack.c.l.b16 %v411
        %v420 = vpack.c.b16 %v417, %v416
        %v421 = vpack.c.b16 %v419, %v418
        %v425 = vsel %vm346, %v406, 0
        %v428 = vsel %vm346, %v407, 0
        %430 = vmatprep.subr.bf16.mxu0 0
        %431 = vmatpush1.bf16.msra.mxu0 %v420
        %432 = vmatprep.subr.bf16.mxu0 0
        %433 = vmatpush1.bf16.msra.mxu0 %v421
        %434 = vmatprep.subr.bf16.mxu0 0
        %435 = vmatpush1.bf16.msra.mxu0 0
        %436 = vmatprep.subr.bf16.mxu0 0
        %437 = vmatpush1.bf16.msra.mxu0 0
        %438 = vmatprep.subr.bf16.mxu0 0
        %439 = vmatpush1.bf16.msra.mxu0 0
        %440 = vmatprep.subr.bf16.mxu0 0
        %441 = vmatpush1.bf16.msra.mxu0 0
        %442 = vmatprep.subr.bf16.mxu0 0
        %443 = vmatpush1.bf16.msra.mxu0 0
        %444 = vmatprep.subr.bf16.mxu0 0
        %445 = vmatpush1.bf16.msra.mxu0 0
        %446 = vmatprep.subr.bf16.mxu0 0
        %447 = vmatpush1.bf16.msra.mxu0 0
        %448 = vmatprep.subr.bf16.mxu0 0
        %449 = vmatpush1.bf16.msra.mxu0 0
        %450 = vmatprep.subr.bf16.mxu0 0
        %451 = vmatpush1.bf16.msra.mxu0 0
        %452 = vmatprep.subr.bf16.mxu0 0
        %453 = vmatpush1.bf16.msra.mxu0 0
        %454 = vmatprep.subr.bf16.mxu0 0
        %455 = vmatpush1.bf16.msra.mxu0 0
        %456 = vmatprep.subr.bf16.mxu0 0
        %457 = vmatpush1.bf16.msra.mxu0 0
        %458 = vmatprep.subr.bf16.mxu0 0
        %459 = vmatpush1.bf16.msra.mxu0 0
        %460 = vmatprep.subr.bf16.mxu0 0
        %461 = vmatpush1.bf16.msra.mxu0 0
        %462 = vmatprep.mubr.bf16.mxu0 0
        %463 = vmatmul.mubr.bf16.gmra.mrb[0].mxu0 %v425
        %v464 = vpop.f32.mrb[0].mxu0
        %v465 = vadd.f32 0.0, %v464
        %v466 = vpop.f32.mrb[0].mxu0
        %v467 = vpop.f32.mrb[0].mxu0
        %v468 = vadd.f32 0.0, %v467
        %v469 = vpop.f32.mrb[0].mxu0
        %470 = vmatprep.mubr.bf16.mxu0 0
        %471 = vmatmul.mubr.bf16.gmra.mrb[0].mxu0 %v428
        %v472 = vpop.f32.mrb[0].mxu0
        %v473 = vadd.f32 0.0, %v472
        %v474 = vpop.f32.mrb[0].mxu0
        %v475 = vpop.f32.mrb[0].mxu0
        %v476 = vpop.f32.mrb[0].mxu0
        %477 = vdwg.mxu0
        %v478 = vpack.c.bf16 %v468, %v465
        %v479 = vpack.c.bf16 %v473, %v473
        %482 = vrot.lane.b32.xlu0 %v478, 96
        %v483 = vpop.permute.xlu0 %482
        %484 = vrot.lane.b32.xlu0 %v479, 96
        %v485 = vpop.permute.xlu0 %484
        %vm486 = vcmask 64512
        %v488 = vsel %vm486, %v478, 0
        %v491 = vsel %vm486, %v479, 0
        %v494 = vsel %vm486, %v483, 0
        %v497 = vsel %vm486, %v485, 0
        %499 = vmatprep.subr.bf16.mxu0 0
        %500 = vmatpush1.bf16.xpose.msra.mxu0 %v494
        %501 = vmatprep.subr.bf16.mxu0 0
        %502 = vmatpush1.bf16.xpose.msra.mxu0 %v497
        %503 = vmatprep.subr.bf16.mxu0 0
        %504 = vmatpush1.bf16.xpose.msra.mxu0 0
        %505 = vmatprep.subr.bf16.mxu0 0
        %506 = vmatpush1.bf16.xpose.msra.mxu0 0
        %507 = vmatprep.subr.bf16.mxu0 0
        %508 = vmatpush1.bf16.xpose.msra.mxu0 0
        %509 = vmatprep.subr.bf16.mxu0 0
        %510 = vmatpush1.bf16.xpose.msra.mxu0 0
        %511 = vmatprep.subr.bf16.mxu0 0
        %512 = vmatpush1.bf16.xpose.msra.mxu0 0
        %513 = vmatprep.subr.bf16.mxu0 0
        %514 = vmatpush1.bf16.xpose.msra.mxu0 0
        %515 = vmatprep.subr.bf16.mxu0 0
        %516 = vmatpush1.bf16.xpose.msra.mxu0 0
        %517 = vmatprep.subr.bf16.mxu0 0
        %518 = vmatpush1.bf16.xpose.msra.mxu0 0
        %519 = vmatprep.subr.bf16.mxu0 0
        %520 = vmatpush1.bf16.xpose.msra.mxu0 0
        %521 = vmatprep.subr.bf16.mxu0 0
        %522 = vmatpush1.bf16.xpose.msra.mxu0 0
        %523 = vmatprep.subr.bf16.mxu0 0
        %524 = vmatpush1.bf16.xpose.msra.mxu0 0
        %525 = vmatprep.subr.bf16.mxu0 0
        %526 = vmatpush1.bf16.xpose.msra.mxu0 0
        %527 = vmatprep.subr.bf16.mxu0 0
        %528 = vmatpush1.bf16.xpose.msra.mxu0 0
        %529 = vmatprep.subr.bf16.mxu0 0
        %530 = vmatpush1.bf16.xpose.msra.mxu0 0
        %531 = vmatprep.mubr.bf16.mxu0 0
        %532 = vmatmul.mubr.bf16.gmra.mrb[0].mxu0 %v488
        %v533 = vpop.f32.mrb[0].mxu0
        %v534 = vadd.f32 0.0, %v533
        %v535 = vpop.f32.mrb[0].mxu0
        %v536 = vpop.f32.mrb[0].mxu0
        %v537 = vadd.f32 0.0, %v536
        %v538 = vpop.f32.mrb[0].mxu0
        %539 = vmatprep.mubr.bf16.mxu0 0
        %540 = vmatmul.mubr.bf16.gmra.mrb[0].mxu0 %v491
        %v541 = vpop.f32.mrb[0].mxu0
        %v542 = vadd.f32 0.0, %v541
        %v543 = vpop.f32.mrb[0].mxu0
        %v544 = vpop.f32.mrb[0].mxu0
        %v545 = vpop.f32.mrb[0].mxu0
        %546 = vdwg.mxu0
        %vm547 = vcmask 138240
        %v548 = vsel %vm547, %v534, -inf
        %549 = vmax.xlane.f32.xlu0 %v548
        %v550 = vpop.xlane.xlu0 %549
        %v551 = vsel %vm547, %v537, -inf
        %552 = vmax.xlane.f32.xlu0 %v551
        %v553 = vpop.xlane.xlu0 %552
        %vm554 = vcmask 131072
        %v555 = vsel %vm554, %v542, -inf
        %556 = vmax.xlane.f32.xlu0 %v555
        %v557 = vpop.xlane.xlu0 %556
        %v558 = vsub.f32 %v534, %v550
        %v559 = vsub.f32 %v537, %v553
        %v560 = vsub.f32 %v542, %v557
        %v561 = vmul.f32 %v558, 1.442695
        %v562 = vpow.pop %v561
        %v563 = vmul.f32 %v559, 1.442695
        %v564 = vpow.pop %v563
        %v565 = vmul.f32 %v560, 1.442695
        %v566 = vpow.pop %v565
        %v567 = vsel %vm547, %v562, 0.0
        %568 = vadd.xlane.f32.xlu0 %v567
        %v569 = vpop.xlane.xlu0 %568
        %v570 = vsel %vm547, %v564, 0.0
        %571 = vadd.xlane.f32.xlu0 %v570
        %v572 = vpop.xlane.xlu0 %571
        %v573 = vsel %vm554, %v566, 0.0
        %574 = vadd.xlane.f32.xlu0 %v573
        %v575 = vpop.xlane.xlu0 %574
        %v576 = vrcp.pop %v569
        %v577 = vrcp.pop %v572
        %v578 = vrcp.pop %v575
        %v579 = vmul.f32 %v562, %v576
        %v580 = vmul.f32 %v564, %v577
        %v581 = vmul.f32 %v566, %v578
        %v582 = vpack.c.bf16 %v580, %v579
        %v583 = vpack.c.bf16 %v581, %v581
        %584 = vrot.lane.b32.xlu0 %v478, 64
        %v585 = vpop.permute.xlu0 %584
        %586 = vrot.lane.b32.xlu0 %v479, 64
        %v587 = vpop.permute.xlu0 %586
        %v590 = vsel %vm547, %v582, 0
        %v593 = vsel %vm547, %v583, 0
        %vm595 = vcmask 1040384
        %v596 = vsel 0, 4294967295, 65535
        %v597 = vsel %vm595, %v596, 0
        %v599 = vand.u32 %v587, %v597
        %601 = vmatprep.subr.bf16.mxu0 0
        %602 = vmatpush1.bf16.msra.mxu0 %v585
        %603 = vmatprep.subr.bf16.mxu0 0
        %604 = vmatpush1.bf16.msra.mxu0 %v599
        %605 = vmatprep.subr.bf16.mxu0 0
        %606 = vmatpush1.bf16.msra.mxu0 0
        %607 = vmatprep.subr.bf16.mxu0 0
        %608 = vmatpush1.bf16.msra.mxu0 0
        %609 = vmatprep.subr.bf16.mxu0 0
        %610 = vmatpush1.bf16.msra.mxu0 0
        %611 = vmatprep.subr.bf16.mxu0 0
        %612 = vmatpush1.bf16.msra.mxu0 0
        %613 = vmatprep.subr.bf16.mxu0 0
        %614 = vmatpush1.bf16.msra.mxu0 0
        %615 = vmatprep.subr.bf16.mxu0 0
        %616 = vmatpush1.bf16.msra.mxu0 0
        %617 = vmatprep.subr.bf16.mxu0 0
        %618 = vmatpush1.bf16.msra.mxu0 0
        %619 = vmatprep.subr.bf16.mxu0 0
        %620 = vmatpush1.bf16.msra.mxu0 0
        %621 = vmatprep.subr.bf16.mxu0 0
        %622 = vmatpush1.bf16.msra.mxu0 0
        %623 = vmatprep.subr.bf16.mxu0 0
        %624 = vmatpush1.bf16.msra.mxu0 0
        %625 = vmatprep.subr.bf16.mxu0 0
        %626 = vmatpush1.bf16.msra.mxu0 0
        %627 = vmatprep.subr.bf16.mxu0 0
        %628 = vmatpush1.bf16.msra.mxu0 0
        %629 = vmatprep.subr.bf16.mxu0 0
        %630 = vmatpush1.bf16.msra.mxu0 0
        %631 = vmatprep.subr.bf16.mxu0 0
        %632 = vmatpush1.bf16.msra.mxu0 0
        %633 = vmatprep.mubr.bf16.mxu0 0
        %634 = vmatmul.mubr.bf16.gmra.mrb[0].mxu0 %v590
        %v635 = vpop.f32.mrb[0].mxu0
        %v636 = vadd.f32 0.0, %v635
        %v637 = vpop.f32.mrb[0].mxu0
        %v638 = vpop.f32.mrb[0].mxu0
        %v639 = vadd.f32 0.0, %v638
        %v640 = vpop.f32.mrb[0].mxu0
        %641 = vmatprep.mubr.bf16.mxu0 0
        %642 = vmatmul.mubr.bf16.gmra.mrb[0].mxu0 %v593
        %v643 = vpop.f32.mrb[0].mxu0
        %v644 = vadd.f32 0.0, %v643
        %v645 = vpop.f32.mrb[0].mxu0
        %v646 = vpop.f32.mrb[0].mxu0
        %v647 = vpop.f32.mrb[0].mxu0
        %648 = vdwg.mxu0
        %649 = vrot.lane.b32.xlu0 %v478, 120
        %v650 = vpop.permute.xlu0 %649
        %651 = vrot.lane.b32.xlu0 %v479, 120
        %v652 = vpop.permute.xlu0 %651
        %653 = vrot.lane.b32.xlu0 %v478, 88
        %v654 = vpop.permute.xlu0 %653
        %655 = vrot.lane.b32.xlu0 %v479, 88
        %v656 = vpop.permute.xlu0 %655
        %v658 = vsel %vm486, %v650, 0
        %v661 = vsel %vm486, %v652, 0
        %v664 = vsel %vm486, %v654, 0
        %v667 = vsel %vm486, %v656, 0
        %669 = vmatprep.subr.bf16.mxu0 0
        %670 = vmatpush1.bf16.xpose.msra.mxu0 %v664
        %671 = vmatprep.subr.bf16.mxu0 0
        %672 = vmatpush1.bf16.xpose.msra.mxu0 %v667
        %673 = vmatprep.subr.bf16.mxu0 0
        %674 = vmatpush1.bf16.xpose.msra.mxu0 0
        %675 = vmatprep.subr.bf16.mxu0 0
        %676 = vmatpush1.bf16.xpose.msra.mxu0 0
        %677 = vmatprep.subr.bf16.mxu0 0
        %678 = vmatpush1.bf16.xpose.msra.mxu0 0
        %679 = vmatprep.subr.bf16.mxu0 0
        %680 = vmatpush1.bf16.xpose.msra.mxu0 0
        %681 = vmatprep.subr.bf16.mxu0 0
        %682 = vmatpush1.bf16.xpose.msra.mxu0 0
        %683 = vmatprep.subr.bf16.mxu0 0
        %684 = vmatpush1.bf16.xpose.msra.mxu0 0
        %685 = vmatprep.subr.bf16.mxu0 0
        %686 = vmatpush1.bf16.xpose.msra.mxu0 0
        %687 = vmatprep.subr.bf16.mxu0 0
        %688 = vmatpush1.bf16.xpose.msra.mxu0 0
        %689 = vmatprep.subr.bf16.mxu0 0
        %690 = vmatpush1.bf16.xpose.msra.mxu0 0
        %691 = vmatprep.subr.bf16.mxu0 0
        %692 = vmatpush1.bf16.xpose.msra.mxu0 0
        %693 = vmatprep.subr.bf16.mxu0 0
        %694 = vmatpush1.bf16.xpose.msra.mxu0 0
        %695 = vmatprep.subr.bf16.mxu0 0
        %696 = vmatpush1.bf16.xpose.msra.mxu0 0
        %697 = vmatprep.subr.bf16.mxu0 0
        %698 = vmatpush1.bf16.xpose.msra.mxu0 0
        %699 = vmatprep.subr.bf16.mxu0 0
        %700 = vmatpush1.bf16.xpose.msra.mxu0 0
        %701 = vmatprep.mubr.bf16.mxu0 0
        %702 = vmatmul.mubr.bf16.gmra.mrb[0].mxu0 %v658
        %v703 = vpop.f32.mrb[0].mxu0
        %v704 = vadd.f32 0.0, %v703
        %v705 = vpop.f32.mrb[0].mxu0
        %v706 = vpop.f32.mrb[0].mxu0
        %v707 = vadd.f32 0.0, %v706
        %v708 = vpop.f32.mrb[0].mxu0
        %709 = vmatprep.mubr.bf16.mxu0 0
        %710 = vmatmul.mubr.bf16.gmra.mrb[0].mxu0 %v661
        %v711 = vpop.f32.mrb[0].mxu0
        %v712 = vadd.f32 0.0, %v711
        %v713 = vpop.f32.mrb[0].mxu0
        %v714 = vpop.f32.mrb[0].mxu0
        %v715 = vpop.f32.mrb[0].mxu0
        %716 = vdwg.mxu0
        %v717 = vsel %vm547, %v704, -inf
        %718 = vmax.xlane.f32.xlu0 %v717
        %v719 = vpop.xlane.xlu0 %718
        %v720 = vsel %vm547, %v707, -inf
        %721 = vmax.xlane.f32.xlu0 %v720
        %v722 = vpop.xlane.xlu0 %721
        %v723 = vsel %vm554, %v712, -inf
        %724 = vmax.xlane.f32.xlu0 %v723
        %v725 = vpop.xlane.xlu0 %724
        %v726 = vsub.f32 %v704, %v719
        %v727 = vsub.f32 %v707, %v722
        %v728 = vsub.f32 %v712, %v725
        %v729 = vmul.f32 %v726, 1.442695
        %v730 = vpow.pop %v729
        %v731 = vmul.f32 %v727, 1.442695
        %v732 = vpow.pop %v731
        %v733 = vmul.f32 %v728, 1.442695
        %v734 = vpow.pop %v733
        %v735 = vsel %vm547, %v730, 0.0
        %736 = vadd.xlane.f32.xlu0 %v735
        %v737 = vpop.xlane.xlu0 %736
        %v738 = vsel %vm547, %v732, 0.0
        %739 = vadd.xlane.f32.xlu0 %v738
        %v740 = vpop.xlane.xlu0 %739
        %v741 = vsel %vm554, %v734, 0.0
        %742 = vadd.xlane.f32.xlu0 %v741
        %v743 = vpop.xlane.xlu0 %742
        %v744 = vrcp.pop %v737
        %v745 = vrcp.pop %v740
        %v746 = vrcp.pop %v743
        %v747 = vmul.f32 %v730, %v744
        %v748 = vmul.f32 %v732, %v745
        %v749 = vmul.f32 %v734, %v746
        %v750 = vpack.c.bf16 %v748, %v747
        %v751 = vpack.c.bf16 %v749, %v749
        %752 = vrot.lane.b32.xlu0 %v478, 56
        %v753 = vpop.permute.xlu0 %752
        %754 = vrot.lane.b32.xlu0 %v479, 56
        %v755 = vpop.permute.xlu0 %754
        %v758 = vsel %vm547, %v750, 0
        %v761 = vsel %vm547, %v751, 0
        %v764 = vand.u32 %v755, %v597
        %766 = vmatprep.subr.bf16.mxu0 0
        %767 = vmatpush1.bf16.msra.mxu0 %v753
        %768 = vmatprep.subr.bf16.mxu0 0
        %769 = vmatpush1.bf16.msra.mxu0 %v764
        %770 = vmatprep.subr.bf16.mxu0 0
        %771 = vmatpush1.bf16.msra.mxu0 0
        %772 = vmatprep.subr.bf16.mxu0 0
        %773 = vmatpush1.bf16.msra.mxu0 0
        %774 = vmatprep.subr.bf16.mxu0 0
        %775 = vmatpush1.bf16.msra.mxu0 0
        %776 = vmatprep.subr.bf16.mxu0 0
        %777 = vmatpush1.bf16.msra.mxu0 0
        %778 = vmatprep.subr.bf16.mxu0 0
        %779 = vmatpush1.bf16.msra.mxu0 0
        %780 = vmatprep.subr.bf16.mxu0 0
        %781 = vmatpush1.bf16.msra.mxu0 0
        %782 = vmatprep.subr.bf16.mxu0 0
        %783 = vmatpush1.bf16.msra.mxu0 0
        %784 = vmatprep.subr.bf16.mxu0 0
        %785 = vmatpush1.bf16.msra.mxu0 0
        %786 = vmatprep.subr.bf16.mxu0 0
        %787 = vmatpush1.bf16.msra.mxu0 0
        %788 = vmatprep.subr.bf16.mxu0 0
        %789 = vmatpush1.bf16.msra.mxu0 0
        %790 = vmatprep.subr.bf16.mxu0 0
        %791 = vmatpush1.bf16.msra.mxu0 0
        %792 = vmatprep.subr.bf16.mxu0 0
        %793 = vmatpush1.bf16.msra.mxu0 0
        %794 = vmatprep.subr.bf16.mxu0 0
        %795 = vmatpush1.bf16.msra.mxu0 0
        %796 = vmatprep.subr.bf16.mxu0 0
        %797 = vmatpush1.bf16.msra.mxu0 0
        %798 = vmatprep.mubr.bf16.mxu0 0
        %799 = vmatmul.mubr.bf16.gmra.mrb[0].mxu0 %v758
        %v800 = vpop.f32.mrb[0].mxu0
        %v801 = vadd.f32 0.0, %v800
        %v802 = vpop.f32.mrb[0].mxu0
        %v803 = vpop.f32.mrb[0].mxu0
        %v804 = vadd.f32 0.0, %v803
        %v805 = vpop.f32.mrb[0].mxu0
        %806 = vmatprep.mubr.bf16.mxu0 0
        %807 = vmatmul.mubr.bf16.gmra.mrb[0].mxu0 %v761
        %v808 = vpop.f32.mrb[0].mxu0
        %v809 = vadd.f32 0.0, %v808
        %v810 = vpop.f32.mrb[0].mxu0
        %v811 = vpop.f32.mrb[0].mxu0
        %v812 = vpop.f32.mrb[0].mxu0
        %813 = vdwg.mxu0
        %814 = vrot.lane.b32.xlu0 %v478, 112
        %v815 = vpop.permute.xlu0 %814
        %816 = vrot.lane.b32.xlu0 %v479, 112
        %v817 = vpop.permute.xlu0 %816
        %818 = vrot.lane.b32.xlu0 %v478, 80
        %v819 = vpop.permute.xlu0 %818
        %820 = vrot.lane.b32.xlu0 %v479, 80
        %v821 = vpop.permute.xlu0 %820
        %v823 = vsel %vm486, %v815, 0
        %v826 = vsel %vm486, %v817, 0
        %v829 = vsel %vm486, %v819, 0
        %v832 = vsel %vm486, %v821, 0
        %834 = vmatprep.subr.bf16.mxu0 0
        %835 = vmatpush1.bf16.xpose.msra.mxu0 %v829
        %836 = vmatprep.subr.bf16.mxu0 0
        %837 = vmatpush1.bf16.xpose.msra.mxu0 %v832
        %838 = vmatprep.subr.bf16.mxu0 0
        %839 = vmatpush1.bf16.xpose.msra.mxu0 0
        %840 = vmatprep.subr.bf16.mxu0 0
        %841 = vmatpush1.bf16.xpose.msra.mxu0 0
        %842 = vmatprep.subr.bf16.mxu0 0
        %843 = vmatpush1.bf16.xpose.msra.mxu0 0
        %844 = vmatprep.subr.bf16.mxu0 0
        %845 = vmatpush1.bf16.xpose.msra.mxu0 0
        %846 = vmatprep.subr.bf16.mxu0 0
        %847 = vmatpush1.bf16.xpose.msra.mxu0 0
        %848 = vmatprep.subr.bf16.mxu0 0
        %849 = vmatpush1.bf16.xpose.msra.mxu0 0
        %850 = vmatprep.subr.bf16.mxu0 0
        %851 = vmatpush1.bf16.xpose.msra.mxu0 0
        %852 = vmatprep.subr.bf16.mxu0 0
        %853 = vmatpush1.bf16.xpose.msra.mxu0 0
        %854 = vmatprep.subr.bf16.mxu0 0
        %855 = vmatpush1.bf16.xpose.msra.mxu0 0
        %856 = vmatprep.subr.bf16.mxu0 0
        %857 = vmatpush1.bf16.xpose.msra.mxu0 0
        %858 = vmatprep.subr.bf16.mxu0 0
        %859 = vmatpush1.bf16.xpose.msra.mxu0 0
        %860 = vmatprep.subr.bf16.mxu0 0
        %861 = vmatpush1.bf16.xpose.msra.mxu0 0
        %862 = vmatprep.subr.bf16.mxu0 0
        %863 = vmatpush1.bf16.xpose.msra.mxu0 0
        %864 = vmatprep.subr.bf16.mxu0 0
        %865 = vmatpush1.bf16.xpose.msra.mxu0 0
        %866 = vmatprep.mubr.bf16.mxu0 0
        %867 = vmatmul.mubr.bf16.gmra.mrb[0].mxu0 %v823
        %v868 = vpop.f32.mrb[0].mxu0
        %v869 = vadd.f32 0.0, %v868
        %v870 = vpop.f32.mrb[0].mxu0
        %v871 = vpop.f32.mrb[0].mxu0
        %v872 = vadd.f32 0.0, %v871
        %v873 = vpop.f32.mrb[0].mxu0
        %874 = vmatprep.mubr.bf16.mxu0 0
        %875 = vmatmul.mubr.bf16.gmra.mrb[0].mxu0 %v826
        %v876 = vpop.f32.mrb[0].mxu0
        %v877 = vadd.f32 0.0, %v876
        %v878 = vpop.f32.mrb[0].mxu0
        %v879 = vpop.f32.mrb[0].mxu0
        %v880 = vpop.f32.mrb[0].mxu0
        %881 = vdwg.mxu0
        %v882 = vsel %vm547, %v869, -inf
        %883 = vmax.xlane.f32.xlu0 %v882
        %v884 = vpop.xlane.xlu0 %883
        %v885 = vsel %vm547, %v872, -inf
        %886 = vmax.xlane.f32.xlu0 %v885
        %v887 = vpop.xlane.xlu0 %886
        %v888 = vsel %vm554, %v877, -inf
        %889 = vmax.xlane.f32.xlu0 %v888
        %v890 = vpop.xlane.xlu0 %889
        %v891 = vsub.f32 %v869, %v884
        %v892 = vsub.f32 %v872, %v887
        %v893 = vsub.f32 %v877, %v890
        %v894 = vmul.f32 %v891, 1.442695
        %v895 = vpow.pop %v894
        %v896 = vmul.f32 %v892, 1.442695
        %v897 = vpow.pop %v896
        %v898 = vmul.f32 %v893, 1.442695
        %v899 = vpow.pop %v898
        %v900 = vsel %vm547, %v895, 0.0
        %901 = vadd.xlane.f32.xlu0 %v900
        %v902 = vpop.xlane.xlu0 %901
        %v903 = vsel %vm547, %v897, 0.0
        %904 = vadd.xlane.f32.xlu0 %v903
        %v905 = vpop.xlane.xlu0 %904
        %v906 = vsel %vm554, %v899, 0.0
        %907 = vadd.xlane.f32.xlu0 %v906
        %v908 = vpop.xlane.xlu0 %907
        %v909 = vrcp.pop %v902
        %v910 = vrcp.pop %v905
        %v911 = vrcp.pop %v908
        %v912 = vmul.f32 %v895, %v909
        %v913 = vmul.f32 %v897, %v910
        %v914 = vmul.f32 %v899, %v911
        %v915 = vpack.c.bf16 %v913, %v912
        %v916 = vpack.c.bf16 %v914, %v914
        %917 = vrot.lane.b32.xlu0 %v478, 48
        %v918 = vpop.permute.xlu0 %917
        %919 = vrot.lane.b32.xlu0 %v479, 48
        %v920 = vpop.permute.xlu0 %919
        %v923 = vsel %vm547, %v915, 0
        %v926 = vsel %vm547, %v916, 0
        %v929 = vand.u32 %v920, %v597
        %931 = vmatprep.subr.bf16.mxu0 0
        %932 = vmatpush1.bf16.msra.mxu0 %v918
        %933 = vmatprep.subr.bf16.mxu0 0
        %934 = vmatpush1.bf16.msra.mxu0 %v929
        %935 = vmatprep.subr.bf16.mxu0 0
        %936 = vmatpush1.bf16.msra.mxu0 0
        %937 = vmatprep.subr.bf16.mxu0 0
        %938 = vmatpush1.bf16.msra.mxu0 0
        %939 = vmatprep.subr.bf16.mxu0 0
        %940 = vmatpush1.bf16.msra.mxu0 0
        %941 = vmatprep.subr.bf16.mxu0 0
        %942 = vmatpush1.bf16.msra.mxu0 0
        %943 = vmatprep.subr.bf16.mxu0 0
        %944 = vmatpush1.bf16.msra.mxu0 0
        %945 = vmatprep.subr.bf16.mxu0 0
        %946 = vmatpush1.bf16.msra.mxu0 0
        %947 = vmatprep.subr.bf16.mxu0 0
        %948 = vmatpush1.bf16.msra.mxu0 0
        %949 = vmatprep.subr.bf16.mxu0 0
        %950 = vmatpush1.bf16.msra.mxu0 0
        %951 = vmatprep.subr.bf16.mxu0 0
        %952 = vmatpush1.bf16.msra.mxu0 0
        %953 = vmatprep.subr.bf16.mxu0 0
        %954 = vmatpush1.bf16.msra.mxu0 0
        %955 = vmatprep.subr.bf16.mxu0 0
        %956 = vmatpush1.bf16.msra.mxu0 0
        %957 = vmatprep.subr.bf16.mxu0 0
        %958 = vmatpush1.bf16.msra.mxu0 0
        %959 = vmatprep.subr.bf16.mxu0 0
        %960 = vmatpush1.bf16.msra.mxu0 0
        %961 = vmatprep.subr.bf16.mxu0 0
        %962 = vmatpush1.bf16.msra.mxu0 0
        %963 = vmatprep.mubr.bf16.mxu0 0
        %964 = vmatmul.mubr.bf16.gmra.mrb[0].mxu0 %v923
        %v965 = vpop.f32.mrb[0].mxu0
        %v966 = vadd.f32 0.0, %v965
        %v967 = vpop.f32.mrb[0].mxu0
        %v968 = vpop.f32.mrb[0].mxu0
        %v969 = vadd.f32 0.0, %v968
        %v970 = vpop.f32.mrb[0].mxu0
        %971 = vmatprep.mubr.bf16.mxu0 0
        %972 = vmatmul.mubr.bf16.gmra.mrb[0].mxu0 %v926
        %v973 = vpop.f32.mrb[0].mxu0
        %v974 = vadd.f32 0.0, %v973
        %v975 = vpop.f32.mrb[0].mxu0
        %v976 = vpop.f32.mrb[0].mxu0
        %v977 = vpop.f32.mrb[0].mxu0
        %978 = vdwg.mxu0
        %979 = vrot.lane.b32.xlu0 %v478, 104
        %v980 = vpop.permute.xlu0 %979
        %981 = vrot.lane.b32.xlu0 %v479, 104
        %v982 = vpop.permute.xlu0 %981
        %983 = vrot.lane.b32.xlu0 %v478, 72
        %v984 = vpop.permute.xlu0 %983
        %985 = vrot.lane.b32.xlu0 %v479, 72
        %v986 = vpop.permute.xlu0 %985
        %v988 = vsel %vm486, %v980, 0
        %v991 = vsel %vm486, %v982, 0
        %v994 = vsel %vm486, %v984, 0
        %v997 = vsel %vm486, %v986, 0
        %999 = vmatprep.subr.bf16.mxu0 0
        %1000 = vmatpush1.bf16.xpose.msra.mxu0 %v994
        %1001 = vmatprep.subr.bf16.mxu0 0
        %1002 = vmatpush1.bf16.xpose.msra.mxu0 %v997
        %1003 = vmatprep.subr.bf16.mxu0 0
        %1004 = vmatpush1.bf16.xpose.msra.mxu0 0
        %1005 = vmatprep.subr.bf16.mxu0 0
        %1006 = vmatpush1.bf16.xpose.msra.mxu0 0
        %1007 = vmatprep.subr.bf16.mxu0 0
        %1008 = vmatpush1.bf16.xpose.msra.mxu0 0
        %1009 = vmatprep.subr.bf16.mxu0 0
        %1010 = vmatpush1.bf16.xpose.msra.mxu0 0
        %1011 = vmatprep.subr.bf16.mxu0 0
        %1012 = vmatpush1.bf16.xpose.msra.mxu0 0
        %1013 = vmatprep.subr.bf16.mxu0 0
        %1014 = vmatpush1.bf16.xpose.msra.mxu0 0
        %1015 = vmatprep.subr.bf16.mxu0 0
        %1016 = vmatpush1.bf16.xpose.msra.mxu0 0
        %1017 = vmatprep.subr.bf16.mxu0 0
        %1018 = vmatpush1.bf16.xpose.msra.mxu0 0
        %1019 = vmatprep.subr.bf16.mxu0 0
        %1020 = vmatpush1.bf16.xpose.msra.mxu0 0
        %1021 = vmatprep.subr.bf16.mxu0 0
        %1022 = vmatpush1.bf16.xpose.msra.mxu0 0
        %1023 = vmatprep.subr.bf16.mxu0 0
        %1024 = vmatpush1.bf16.xpose.msra.mxu0 0
        %1025 = vmatprep.subr.bf16.mxu0 0
        %1026 = vmatpush1.bf16.xpose.msra.mxu0 0
        %1027 = vmatprep.subr.bf16.mxu0 0
        %1028 = vmatpush1.bf16.xpose.msra.mxu0 0
        %1029 = vmatprep.subr.bf16.mxu0 0
        %1030 = vmatpush1.bf16.xpose.msra.mxu0 0
        %1031 = vmatprep.mubr.bf16.mxu0 0
        %1032 = vmatmul.mubr.bf16.gmra.mrb[0].mxu0 %v988
        %v1033 = vpop.f32.mrb[0].mxu0
        %v1034 = vadd.f32 0.0, %v1033
        %v1035 = vpop.f32.mrb[0].mxu0
        %v1036 = vpop.f32.mrb[0].mxu0
        %v1037 = vadd.f32 0.0, %v1036
        %v1038 = vpop.f32.mrb[0].mxu0
        %1039 = vmatprep.mubr.bf16.mxu0 0
        %1040 = vmatmul.mubr.bf16.gmra.mrb[0].mxu0 %v991
        %v1041 = vpop.f32.mrb[0].mxu0
        %v1042 = vadd.f32 0.0, %v1041
        %v1043 = vpop.f32.mrb[0].mxu0
        %v1044 = vpop.f32.mrb[0].mxu0
        %v1045 = vpop.f32.mrb[0].mxu0
        %1046 = vdwg.mxu0
        %v1047 = vsel %vm547, %v1034, -inf
        %1048 = vmax.xlane.f32.xlu0 %v1047
        %v1049 = vpop.xlane.xlu0 %1048
        %v1050 = vsel %vm547, %v1037, -inf
        %1051 = vmax.xlane.f32.xlu0 %v1050
        %v1052 = vpop.xlane.xlu0 %1051
        %v1053 = vsel %vm554, %v1042, -inf
        %1054 = vmax.xlane.f32.xlu0 %v1053
        %v1055 = vpop.xlane.xlu0 %1054
        %v1056 = vsub.f32 %v1034, %v1049
        %v1057 = vsub.f32 %v1037, %v1052
        %v1058 = vsub.f32 %v1042, %v1055
        %v1059 = vmul.f32 %v1056, 1.442695
        %v1060 = vpow.pop %v1059
        %v1061 = vmul.f32 %v1057, 1.442695
        %v1062 = vpow.pop %v1061
        %v1063 = vmul.f32 %v1058, 1.442695
        %v1064 = vpow.pop %v1063
        %v1065 = vsel %vm547, %v1060, 0.0
        %1066 = vadd.xlane.f32.xlu0 %v1065
        %v1067 = vpop.xlane.xlu0 %1066
        %v1068 = vsel %vm547, %v1062, 0.0
        %1069 = vadd.xlane.f32.xlu0 %v1068
        %v1070 = vpop.xlane.xlu0 %1069
        %v1071 = vsel %vm554, %v1064, 0.0
        %1072 = vadd.xlane.f32.xlu0 %v1071
        %v1073 = vpop.xlane.xlu0 %1072
        %v1074 = vrcp.pop %v1067
        %v1075 = vrcp.pop %v1070
        %v1076 = vrcp.pop %v1073
        %v1077 = vmul.f32 %v1060, %v1074
        %v1078 = vmul.f32 %v1062, %v1075
        %v1079 = vmul.f32 %v1064, %v1076
        %v1080 = vpack.c.bf16 %v1078, %v1077
        %v1081 = vpack.c.bf16 %v1079, %v1079
        %1082 = vrot.lane.b32.xlu0 %v478, 40
        %v1083 = vpop.permute.xlu0 %1082
        %1084 = vrot.lane.b32.xlu0 %v479, 40
        %v1085 = vpop.permute.xlu0 %1084
        %v1088 = vsel %vm547, %v1080, 0
        %v1091 = vsel %vm547, %v1081, 0
        %v1094 = vand.u32 %v1085, %v597
        %1096 = vmatprep.subr.bf16.mxu0 0
        %1097 = vmatpush1.bf16.msra.mxu0 %v1083
        %1098 = vmatprep.subr.bf16.mxu0 0
        %1099 = vmatpush1.bf16.msra.mxu0 %v1094
        %1100 = vmatprep.subr.bf16.mxu0 0
        %1101 = vmatpush1.bf16.msra.mxu0 0
        %1102 = vmatprep.subr.bf16.mxu0 0
        %1103 = vmatpush1.bf16.msra.mxu0 0
        %1104 = vmatprep.subr.bf16.mxu0 0
        %1105 = vmatpush1.bf16.msra.mxu0 0
        %1106 = vmatprep.subr.bf16.mxu0 0
        %1107 = vmatpush1.bf16.msra.mxu0 0
        %1108 = vmatprep.subr.bf16.mxu0 0
        %1109 = vmatpush1.bf16.msra.mxu0 0
        %1110 = vmatprep.subr.bf16.mxu0 0
        %1111 = vmatpush1.bf16.msra.mxu0 0
        %1112 = vmatprep.subr.bf16.mxu0 0
        %1113 = vmatpush1.bf16.msra.mxu0 0
        %1114 = vmatprep.subr.bf16.mxu0 0
        %1115 = vmatpush1.bf16.msra.mxu0 0
        %1116 = vmatprep.subr.bf16.mxu0 0
        %1117 = vmatpush1.bf16.msra.mxu0 0
        %1118 = vmatprep.subr.bf16.mxu0 0
        %1119 = vmatpush1.bf16.msra.mxu0 0
        %1120 = vmatprep.subr.bf16.mxu0 0
        %1121 = vmatpush1.bf16.msra.mxu0 0
        %1122 = vmatprep.subr.bf16.mxu0 0
        %1123 = vmatpush1.bf16.msra.mxu0 0
        %1124 = vmatprep.subr.bf16.mxu0 0
        %1125 = vmatpush1.bf16.msra.mxu0 0
        %1126 = vmatprep.subr.bf16.mxu0 0
        %1127 = vmatpush1.bf16.msra.mxu0 0
        %1128 = vmatprep.mubr.bf16.mxu0 0
        %1129 = vmatmul.mubr.bf16.gmra.mrb[0].mxu0 %v1088
        %v1130 = vpop.f32.mrb[0].mxu0
        %v1131 = vadd.f32 0.0, %v1130
        %v1132 = vpop.f32.mrb[0].mxu0
        %v1133 = vpop.f32.mrb[0].mxu0
        %v1134 = vadd.f32 0.0, %v1133
        %v1135 = vpop.f32.mrb[0].mxu0
        %1136 = vmatprep.mubr.bf16.mxu0 0
        %1137 = vmatmul.mubr.bf16.gmra.mrb[0].mxu0 %v1091
        %v1138 = vpop.f32.mrb[0].mxu0
        %v1139 = vadd.f32 0.0, %v1138
        %v1140 = vpop.f32.mrb[0].mxu0
        %v1141 = vpop.f32.mrb[0].mxu0
        %v1142 = vpop.f32.mrb[0].mxu0
        %1143 = vdwg.mxu0
        %1147 = vrot.lane.b32.xlu0 %v801, 8
        %v1148 = vpop.permute.xlu0 %1147
        %1149 = vrot.lane.b32.xlu0 %v804, 8
        %v1150 = vpop.permute.xlu0 %1149
        %1151 = vrot.lane.b32.xlu0 %v809, 8
        %v1152 = vpop.permute.xlu0 %1151
        %1159 = vrot.lane.b32.xlu0 %v966, 16
        %v1160 = vpop.permute.xlu0 %1159
        %1161 = vrot.lane.b32.xlu0 %v969, 16
        %v1162 = vpop.permute.xlu0 %1161
        %1163 = vrot.lane.b32.xlu0 %v974, 16
        %v1164 = vpop.permute.xlu0 %1163
        %1171 = vrot.lane.b32.xlu0 %v1131, 24
        %v1172 = vpop.permute.xlu0 %1171
        %1173 = vrot.lane.b32.xlu0 %v1134, 24
        %v1174 = vpop.permute.xlu0 %1173
        %1175 = vrot.lane.b32.xlu0 %v1139, 24
        %v1176 = vpop.permute.xlu0 %1175
        %v1180 = vsel %vm486, %v636, %v1148
        %v1181 = vsel %vm486, %v639, %v1150
        %v1182 = vsel %vm486, %v644, %v1152
        %vm1183 = vcmask 130048
        %v1184 = vsel %vm1183, %v1180, %v1160
        %v1185 = vsel %vm1183, %v1181, %v1162
        %v1186 = vsel %vm1183, %v1182, %v1164
        %vm1187 = vcmask 195584
        %v1188 = vsel %vm1187, %v1184, %v1172
        %v1189 = vsel %vm1187, %v1185, %v1174
        %v1190 = vsel %vm1187, %v1186, %v1176
        %v1191 = vpack.c.bf16 %v1189, %v1188
        %v1192 = vpack.c.bf16 %v1190, %v1190
        %v1193 = vld [vmem:[#allocation10] sm:$0xf]
        %v1194 = vld [vmem:[#allocation10 + $0x4] sm:$0xf]
        %v1195 = vld [vmem:[#allocation10 + $0x8] sm:$0xf]
        %v1196 = vld [vmem:[#allocation10 + $0xc] sm:$0xf]
        %v1197 = vld [vmem:[#allocation11] sm:$0x1]
        %v1199 = vlaneseq
        %v1200 = vshrl.u32 %v1199, 7
        %v1201 = vsub.s32 0, %v1200
        %v1202 = vrot.slane %v1197, %v1201
        %v1208 = vunpack.c.l.b16 %v1193
        %v1209 = vunpack.c.l.b16 %v1194
        %v1210 = vunpack.c.l.b16 %v1195
        %v1211 = vunpack.c.l.b16 %v1196
        %v1212 = vpack.c.b16 %v1209, %v1208
        %v1213 = vpack.c.b16 %v1211, %v1210
        %v1217 = vsel %vm346, %v1191, 0
        %v1220 = vsel %vm346, %v1192, 0
        %1222 = vmatprep.subr.bf16.mxu0 0
        %1223 = vmatpush1.bf16.msra.mxu0 %v1212
        %1224 = vmatprep.subr.bf16.mxu0 0
        %1225 = vmatpush1.bf16.msra.mxu0 %v1213
        %1226 = vmatprep.subr.bf16.mxu0 0
        %1227 = vmatpush1.bf16.msra.mxu0 0
        %1228 = vmatprep.subr.bf16.mxu0 0
        %1229 = vmatpush1.bf16.msra.mxu0 0
        %1230 = vmatprep.subr.bf16.mxu0 0
        %1231 = vmatpush1.bf16.msra.mxu0 0
        %1232 = vmatprep.subr.bf16.mxu0 0
        %1233 = vmatpush1.bf16.msra.mxu0 0
        %1234 = vmatprep.subr.bf16.mxu0 0
        %1235 = vmatpush1.bf16.msra.mxu0 0
        %1236 = vmatprep.subr.bf16.mxu0 0
        %1237 = vmatpush1.bf16.msra.mxu0 0
        %1238 = vmatprep.subr.bf16.mxu0 0
        %1239 = vmatpush1.bf16.msra.mxu0 0
        %1240 = vmatprep.subr.bf16.mxu0 0
        %1241 = vmatpush1.bf16.msra.mxu0 0
        %1242 = vmatprep.subr.bf16.mxu0 0
        %1243 = vmatpush1.bf16.msra.mxu0 0
        %1244 = vmatprep.subr.bf16.mxu0 0
        %1245 = vmatpush1.bf16.msra.mxu0 0
        %1246 = vmatprep.subr.bf16.mxu0 0
        %1247 = vmatpush1.bf16.msra.mxu0 0
        %1248 = vmatprep.subr.bf16.mxu0 0
        %1249 = vmatpush1.bf16.msra.mxu0 0
        %1250 = vmatprep.subr.bf16.mxu0 0
        %1251 = vmatpush1.bf16.msra.mxu0 0
        %1252 = vmatprep.subr.bf16.mxu0 0
        %1253 = vmatpush1.bf16.msra.mxu0 0
        %1254 = vmatprep.mubr.bf16.mxu0 0
        %1255 = vmatmul.mubr.bf16.gmra.mrb[0].mxu0 %v1217
        %v1256 = vpop.f32.mrb[0].mxu0
        %v1257 = vadd.f32 %v1202, %v1256
        %v1258 = vpop.f32.mrb[0].mxu0
        %v1259 = vpop.f32.mrb[0].mxu0
        %v1260 = vadd.f32 %v1202, %v1259
        %v1261 = vpop.f32.mrb[0].mxu0
        %1262 = vmatprep.mubr.bf16.mxu0 0
        %1263 = vmatmul.mubr.bf16.gmra.mrb[0].mxu0 %v1220
        %v1264 = vpop.f32.mrb[0].mxu0
        %v1265 = vadd.f32 %v1202, %v1264
        %v1266 = vpop.f32.mrb[0].mxu0
        %v1267 = vpop.f32.mrb[0].mxu0
        %v1268 = vpop.f32.mrb[0].mxu0
        %1269 = vdwg.mxu0
        %v1270 = vadd.f32 %v1257, %v341
        %v1271 = vadd.f32 %v1260, %v342
        %v1272 = vadd.f32 %v1265, %v343
        %v1273 = vpack.c.bf16 %v1271, %v1270
        %v1274 = vpack.c.bf16 %v1272, %v1272
        %v1277 = vunpack.c.l.b16 %v1273
        %v1278 = vunpack.c.h.b16 %v1273
        %v1279 = vunpack.c.l.b16 %v1274
        %v1280 = vpack.c.b16 %v1277, %v1277
        %v1281 = vpack.c.b16 %v1278, %v1278
        %v1282 = vpack.c.b16 %v1279, %v1279
        %vm1286 = vcmask 257024
        %1287 = vst.msk [vmem:[%s336] sm:$0xf] %vm1286, %v1280
        %1288 = vst.msk [vmem:[%s336 + $0x4] sm:$0xf] %vm1286, %v1281
        %vm1289 = vcmask 253952
        %vm1290 = vsmask.f32 256
        %vm1291 = vmand %vm1289, %vm1290
        %v1292 = vld [vmem:[%s336 + $0x8] sm:$0x1]
        %v1293 = vsel %vm1291, %v1282, %v1292
        %1294 = vst [vmem:[%s336 + $0x8] sm:$0x1] %v1293
        %s1295 = sand.u32 %s165, 1
        %s1296 = scalar_lea.sflag [#allocation4], %s1295
        %s1297 = sand.u32 %s165, 1
        %s1298 = smul.addr %s1297, 12
        %s1299 = scalar_lea.vmem [#allocation13], %s1298
        // Predicated region
        $region69: #{_lambda_.11} parent=43 // pred_check
          %p1300 = pneg %p175
        $region70: #{_lambda_.11} parent=43 // pred_check_branch
          %1302 = sbr.rel (%p1300) target = $region72
        $region71: #{_lambda_.11} parent=43 // pred_region
          %s1304 = ssub.s32 192, 192
          %1305 = vsyncadd %s1296, %s1304
          %s1306 = smul.addr %s26, 3
          %s1307 = smul.addr %s1306, 64
          %s1308 = scalar_lea.hbm %s6, %s1307
          %s1309 = sshll.u32 %s1299, 4
          %s1310 = int_to_ptr.vmem [resolvable:$true] %s1309
          %1315 = dma.vmem_to_hbm [thread:$0]  %s1310, 192, %s1308, %s1296, 64, 64, 4
        $region72: #{_lambda_.11} parent=43 // pred_fallthru
          _
      $region44: #{_lambda_.11} parent=5 // pred_fallthru
        _
      %p1316 = scmp.le.s32.totalorder 2, %s21
      // Predicated region
      $region73: #{_lambda_.11} parent=5 // pred_check
        %p1317 = pneg %p1316
      $region74: #{_lambda_.11} parent=5 // pred_check_branch
        %1319 = sbr.rel (%p1317) target = $region76
      $region75: #{_lambda_.11} parent=5 // pred_region
        %s1320 = ssub.s32 %s21, 2
        // Predicated region
        $region77: #{_lambda_.11} parent=75 // pred_check
          %p1321 = pneg %p181
        $region78: #{_lambda_.11} parent=75 // pred_check_branch
          %1323 = sbr.rel (%p1321) target = $region80
        $region79: #{_lambda_.11} parent=75 // pred_region
          %s1324 = sand.u32 %s166, 1
          %s1325 = scalar_lea.sflag [#allocation4], %s1324
          %s1326 = sand.u32 %s166, 1
          %s1327 = smul.addr %s1326, 12
          %s1328 = scalar_lea.vmem [#allocation13], %s1327
          %1329 = dma.done %s1325, 192
        $region80: #{_lambda_.11} parent=75 // pred_fallthru
          _
      $region76: #{_lambda_.11} parent=5 // pred_fallthru
        _
    $region6: #{_lambda_.11} parent=1 // loop_footer
      %s25 = sadd.s32 1, %s21
    $region7: #{_lambda_.11} parent=1 // loop_footer_branch
      %20 = sbr.rel target = $region3
    $region8: #{_lambda_.11} parent=1 // loop_exit
      _
    %1330 = vsyncpa [#allocation3], 1
    %s1331 = scalar_lea.sflag [#allocation3], 1
    %1332 = vsyncpa %s1331, 1
    %1333 = vsyncpa [#allocation6], 1
    %1334 = vsyncpa [#allocation9], 1
    %1335 = vsyncpa [#allocation12], 1
    %1336 = vsyncpa [#allocation4], 1
    %s1337 = scalar_lea.sflag [#allocation4], 1
    %1338 = vsyncpa %s1337, 1

// kernel: _lambda_.12
$region0: #{_lambda_.12}
  #allocation0 [shape = 'u32[]', space=smem, size = 0x4, offset = 0x4, fixed_abs, tag = 'smem constant byte address 0x4 - core index']
  #allocation1 [shape = 'u32[144,128]{1,0:T(1,128)}', space=vmem, size = 0x12000, scoped, tag = 'internal scratch']
  %s0 = inlined_call_operand.hbm [shape: bf16[2,17,32], index: 0, kind: input, shape index: {}]
  %s1 = inlined_call_operand.hbm [shape: f32[1,32], index: 1, kind: input, shape index: {}]
  %s2 = inlined_call_operand.hbm [shape: f32[1,32], index: 2, kind: input, shape index: {}]
  %s3 = inlined_call_operand.hbm [shape: bf16[32,64], index: 3, kind: input, shape index: {}]
  %s4 = inlined_call_operand.hbm [shape: f32[1,64], index: 4, kind: input, shape index: {}]
  %s5 = inlined_call_operand.hbm [shape: bf16[64,32], index: 5, kind: input, shape index: {}]
  %s6 = inlined_call_operand.hbm [shape: f32[1,32], index: 6, kind: input, shape index: {}]
  %s7 = inlined_call_operand.hbm [shape: bf16[2,17,32], index: 7, kind: output, shape index: {}]
  %s8 = sld [smem:[#allocation0]]
  $region89: #{_lambda_.12} parent=0
    _
  %s10 = ssub.s32 1, %s8
  %s11 = scalar_select 0, %s10, %s8
  $region1: #{_lambda_.12} parent=0
    #allocation2 [shape = 'u8[12288]{0}', space=vmem, size = 0x3000, scoped, tag = 'input window, operand 0']
    #allocation3 [shape = 's32[2]{0}', space=sflag, size = 0x8, scoped, tag = 'scoped memory for _lambda_.12']
    #allocation4 [shape = 's32[2]{0}', space=sflag, size = 0x8, scoped, tag = 'scoped memory for _lambda_.12']
    #allocation5 [shape = 'u8[512]{0}', space=vmem, size = 0x400, scoped, tag = 'input window, operand 1, single buffered']
    #allocation6 [shape = 's32[1]{0}', space=sflag, size = 0x4, scoped, tag = 'scoped memory for _lambda_.12']
    #allocation7 [shape = 'u8[512]{0}', space=vmem, size = 0x400, scoped, tag = 'input window, operand 2, single buffered']
    #allocation8 [shape = 'u8[8192]{0}', space=vmem, size = 0x2000, scoped, tag = 'input window, operand 3, single buffered']
    #allocation9 [shape = 's32[1]{0}', space=sflag, size = 0x4, scoped, tag = 'scoped memory for _lambda_.12']
    #allocation10 [shape = 'u8[512]{0}', space=vmem, size = 0x400, scoped, tag = 'input window, operand 4, single buffered']
    #allocation11 [shape = 'u8[16384]{0}', space=vmem, size = 0x4000, scoped, tag = 'input window, operand 5, single buffered']
    #allocation12 [shape = 's32[1]{0}', space=sflag, size = 0x4, scoped, tag = 'scoped memory for _lambda_.12']
    #allocation13 [shape = 'u8[512]{0}', space=vmem, size = 0x400, scoped, tag = 'input window, operand 6, single buffered']
    #allocation14 [shape = 'u8[12288]{0}', space=vmem, size = 0x3000, scoped, tag = 'output window, operand 0']
    %12 = vsyncpa [#allocation3], 0
    %s13 = scalar_lea.sflag [#allocation3], 1
    %14 = vsyncpa %s13, 0
    %15 = vsyncpa [#allocation6], 0
    %16 = vsyncpa [#allocation9], 0
    %17 = vsyncpa [#allocation12], 0
    %18 = vsyncpa [#allocation4], 0
    %s19 = scalar_lea.sflag [#allocation4], 1
    %20 = vsyncpa %s19, 0
    loop: start=0, step=1, limit=4
    $region2: #{_lambda_.12} parent=1 // loop_pre_header
      _
    $region3: #{_lambda_.12} parent=1 // loop_header
      %s22 = sphi 0, %s26
      %p23 = scmp.ge.s32.totalorder %s22, 4
      %s32 = sphi 0, %s34
      %s35 = sphi 0, %s32
      %s36 = sphi 0, %s35
      %s52 = sphi 0, %s36
      %s56 = sphi 0, %s56
      %s58 = sphi 0, %s56
      %s59 = sphi 0, %s58
      %s73 = sphi 0, %s59
      %s77 = sphi 0, %s77
      %s79 = sphi 0, %s77
      %s80 = sphi 0, %s79
      %s94 = sphi 0, %s80
      %s98 = sphi 0, %s98
      %s100 = sphi 0, %s98
      %s101 = sphi 0, %s100
      %s115 = sphi 0, %s101
      %s119 = sphi 0, %s119
      %s121 = sphi 0, %s119
      %s122 = sphi 0, %s121
      %s136 = sphi 0, %s122
      %s140 = sphi 0, %s140
      %s142 = sphi 0, %s140
      %s143 = sphi 0, %s142
      %s157 = sphi 0, %s143
      %s161 = sphi 0, %s161
      %s163 = sphi 0, %s161
      %s164 = sphi 0, %s163
      %s178 = sphi 0, %s164
      %s184 = sphi 0, %s186
      %s187 = sphi 0, %s184
      %s188 = sphi 0, %s187
      %s204 = sphi 0, %s188
    $region4: #{_lambda_.12} parent=1 // loop_header_branch
      %25 = sbr.rel (%p23) target = $region8
    $region5: #{_lambda_.12} parent=1 // loop_body
      %s27 = ssub.s32 %s22, 1
      %s28 = ssub.s32 %s22, 2
      %s29 = sadd.s32 %s22, 1
      %s30 = ssub.s32 %s22, %s29
      %p31 = scmp.eq.s32.totalorder %s30, 0
      %s33 = sadd.s32 %s32, 1
      %s34 = scalar_select %p31, %s32, %s33
      %p37 = pneg %p31
      %p38 = scmp.eq.s32.totalorder %s22, 1
      %p39 = por %p37, %p38
      %p40 = scmp.ne.s32.totalorder %s32, %s35
      %p41 = scmp.eq.s32.totalorder %s22, 0
      %p42 = por %p40, %p41
      %p43 = scmp.ne.s32.totalorder %s32, %s35
      %p44 = scmp.eq.s32.totalorder %s27, 1
      %p45 = por %p43, %p44
      %p46 = scmp.ne.s32.totalorder %s35, %s36
      %p47 = scmp.eq.s32.totalorder %s27, 0
      %p48 = por %p46, %p47
      %p49 = scmp.ne.s32.totalorder %s35, %s36
      %p50 = scmp.eq.s32.totalorder %s28, 1
      %p51 = por %p49, %p50
      %p53 = scmp.ne.s32.totalorder %s36, %s52
      %p54 = scmp.eq.s32.totalorder %s28, 0
      %p55 = por %p53, %p54
      %s57 = sadd.s32 %s56, 1
      %p60 = scmp.eq.s32.totalorder %s22, 1
      %p61 = scmp.ne.s32.totalorder %s56, %s58
      %p62 = scmp.eq.s32.totalorder %s22, 0
      %p63 = por %p61, %p62
      %p64 = scmp.ne.s32.totalorder %s56, %s58
      %p65 = scmp.eq.s32.totalorder %s27, 1
      %p66 = por %p64, %p65
      %p67 = scmp.ne.s32.totalorder %s58, %s59
      %p68 = scmp.eq.s32.totalorder %s27, 0
      %p69 = por %p67, %p68
      %p70 = scmp.ne.s32.totalorder %s58, %s59
      %p71 = scmp.eq.s32.totalorder %s28, 1
      %p72 = por %p70, %p71
      %p74 = scmp.ne.s32.totalorder %s59, %s73
      %p75 = scmp.eq.s32.totalorder %s28, 0
      %p76 = por %p74, %p75
      %s78 = sadd.s32 %s77, 1
      %p81 = scmp.eq.s32.totalorder %s22, 1
      %p82 = scmp.ne.s32.totalorder %s77, %s79
      %p83 = scmp.eq.s32.totalorder %s22, 0
      %p84 = por %p82, %p83
      %p85 = scmp.ne.s32.totalorder %s77, %s79
      %p86 = scmp.eq.s32.totalorder %s27, 1
      %p87 = por %p85, %p86
      %p88 = scmp.ne.s32.totalorder %s79, %s80
      %p89 = scmp.eq.s32.totalorder %s27, 0
      %p90 = por %p88, %p89
      %p91 = scmp.ne.s32.totalorder %s79, %s80
      %p92 = scmp.eq.s32.totalorder %s28, 1
      %p93 = por %p91, %p92
      %p95 = scmp.ne.s32.totalorder %s80, %s94
      %p96 = scmp.eq.s32.totalorder %s28, 0
      %p97 = por %p95, %p96
      %s99 = sadd.s32 %s98, 1
      %p102 = scmp.eq.s32.totalorder %s22, 1
      %p103 = scmp.ne.s32.totalorder %s98, %s100
      %p104 = scmp.eq.s32.totalorder %s22, 0
      %p105 = por %p103, %p104
      %p106 = scmp.ne.s32.totalorder %s98, %s100
      %p107 = scmp.eq.s32.totalorder %s27, 1
      %p108 = por %p106, %p107
      %p109 = scmp.ne.s32.totalorder %s100, %s101
      %p110 = scmp.eq.s32.totalorder %s27, 0
      %p111 = por %p109, %p110
      %p112 = scmp.ne.s32.totalorder %s100, %s101
      %p113 = scmp.eq.s32.totalorder %s28, 1
      %p114 = por %p112, %p113
      %p116 = scmp.ne.s32.totalorder %s101, %s115
      %p117 = scmp.eq.s32.totalorder %s28, 0
      %p118 = por %p116, %p117
      %s120 = sadd.s32 %s119, 1
      %p123 = scmp.eq.s32.totalorder %s22, 1
      %p124 = scmp.ne.s32.totalorder %s119, %s121
      %p125 = scmp.eq.s32.totalorder %s22, 0
      %p126 = por %p124, %p125
      %p127 = scmp.ne.s32.totalorder %s119, %s121
      %p128 = scmp.eq.s32.totalorder %s27, 1
      %p129 = por %p127, %p128
      %p130 = scmp.ne.s32.totalorder %s121, %s122
      %p131 = scmp.eq.s32.totalorder %s27, 0
      %p132 = por %p130, %p131
      %p133 = scmp.ne.s32.totalorder %s121, %s122
      %p134 = scmp.eq.s32.totalorder %s28, 1
      %p135 = por %p133, %p134
      %p137 = scmp.ne.s32.totalorder %s122, %s136
      %p138 = scmp.eq.s32.totalorder %s28, 0
      %p139 = por %p137, %p138
      %s141 = sadd.s32 %s140, 1
      %p144 = scmp.eq.s32.totalorder %s22, 1
      %p145 = scmp.ne.s32.totalorder %s140, %s142
      %p146 = scmp.eq.s32.totalorder %s22, 0
      %p147 = por %p145, %p146
      %p148 = scmp.ne.s32.totalorder %s140, %s142
      %p149 = scmp.eq.s32.totalorder %s27, 1
      %p150 = por %p148, %p149
      %p151 = scmp.ne.s32.totalorder %s142, %s143
      %p152 = scmp.eq.s32.totalorder %s27, 0
      %p153 = por %p151, %p152
      %p154 = scmp.ne.s32.totalorder %s142, %s143
      %p155 = scmp.eq.s32.totalorder %s28, 1
      %p156 = por %p154, %p155
      %p158 = scmp.ne.s32.totalorder %s143, %s157
      %p159 = scmp.eq.s32.totalorder %s28, 0
      %p160 = por %p158, %p159
      %s162 = sadd.s32 %s161, 1
      %p165 = scmp.eq.s32.totalorder %s22, 1
      %p166 = scmp.ne.s32.totalorder %s161, %s163
      %p167 = scmp.eq.s32.totalorder %s22, 0
      %p168 = por %p166, %p167
      %p169 = scmp.ne.s32.totalorder %s161, %s163
      %p170 = scmp.eq.s32.totalorder %s27, 1
      %p171 = por %p169, %p170
      %p172 = scmp.ne.s32.totalorder %s163, %s164
      %p173 = scmp.eq.s32.totalorder %s27, 0
      %p174 = por %p172, %p173
      %p175 = scmp.ne.s32.totalorder %s163, %s164
      %p176 = scmp.eq.s32.totalorder %s28, 1
      %p177 = por %p175, %p176
      %p179 = scmp.ne.s32.totalorder %s164, %s178
      %p180 = scmp.eq.s32.totalorder %s28, 0
      %p181 = por %p179, %p180
      %s182 = ssub.s32 %s22, %s29
      %p183 = scmp.eq.s32.totalorder %s182, 0
      %s185 = sadd.s32 %s184, 1
      %s186 = scalar_select %p183, %s184, %s185
      %p189 = pneg %p183
      %p190 = scmp.eq.s32.totalorder %s22, 1
      %p191 = por %p189, %p190
      %p192 = scmp.ne.s32.totalorder %s184, %s187
      %p193 = scmp.eq.s32.totalorder %s22, 0
      %p194 = por %p192, %p193
      %p195 = scmp.ne.s32.totalorder %s184, %s187
      %p196 = scmp.eq.s32.totalorder %s27, 1
      %p197 = por %p195, %p196
      %p198 = scmp.ne.s32.totalorder %s187, %s188
      %p199 = scmp.eq.s32.totalorder %s27, 0
      %p200 = por %p198, %p199
      %p201 = scmp.ne.s32.totalorder %s187, %s188
      %p202 = scmp.eq.s32.totalorder %s28, 1
      %p203 = por %p201, %p202
      %p205 = scmp.ne.s32.totalorder %s188, %s204
      %p206 = scmp.eq.s32.totalorder %s28, 0
      %p207 = por %p205, %p206
      %p208 = scmp.le.s32.totalorder 1, %s22
      %p209 = scmp.lt.s32.totalorder %s22, 3
      %p210 = pnand %p208, %p209
      %p211 = pneg %p210
      // Predicated region
      $region9: #{_lambda_.12} parent=5 // pred_check
        _
      $region10: #{_lambda_.12} parent=5 // pred_check_branch
        %213 = sbr.rel (%p210) target = $region12
      $region11: #{_lambda_.12} parent=5 // pred_region
        %s214 = ssub.s32 %s22, 1
        // Predicated region
        $region13: #{_lambda_.12} parent=11 // pred_check
          %p215 = pneg %p69
        $region14: #{_lambda_.12} parent=11 // pred_check_branch
          %217 = sbr.rel (%p215) target = $region16
        $region15: #{_lambda_.12} parent=11 // pred_region
          %s219 = ssub.s32 16, 16
          %220 = vsyncadd [#allocation6], %s219
          %s222 = sshll.u32 [#allocation5], 4
          %s223 = int_to_ptr.vmem [resolvable:$true] %s222
          %225 = dma.hbm_to_vmem [thread:$0]  %s1, 16, %s223, [#allocation6]
        $region16: #{_lambda_.12} parent=11 // pred_fallthru
          _
        // Predicated region
        $region17: #{_lambda_.12} parent=11 // pred_check
          %p226 = pneg %p90
        $region18: #{_lambda_.12} parent=11 // pred_check_branch
          %228 = sbr.rel (%p226) target = $region20
        $region19: #{_lambda_.12} parent=11 // pred_region
          %s230 = ssub.s32 16, 16
          %231 = vsyncadd [#allocation6], %s230
          %s233 = sshll.u32 [#allocation7], 4
          %s234 = int_to_ptr.vmem [resolvable:$true] %s233
          %236 = dma.hbm_to_vmem [thread:$0]  %s2, 16, %s234, [#allocation6]
        $region20: #{_lambda_.12} parent=11 // pred_fallthru
          _
        // Predicated region
        $region21: #{_lambda_.12} parent=11 // pred_check
          %p237 = pneg %p111
        $region22: #{_lambda_.12} parent=11 // pred_check_branch
          %239 = sbr.rel (%p237) target = $region24
        $region23: #{_lambda_.12} parent=11 // pred_region
          %s241 = ssub.s32 256, 256
          %242 = vsyncadd [#allocation9], %s241
          %s243 = sshll.u32 [#allocation8], 4
          %s244 = int_to_ptr.vmem [resolvable:$true] %s243
          %249 = dma.hbm_to_vmem [thread:$0]  %s3, 256, %s244, [#allocation9], 64, 64, 4
        $region24: #{_lambda_.12} parent=11 // pred_fallthru
          _
        // Predicated region
        $region25: #{_lambda_.12} parent=11 // pred_check
          %p250 = pneg %p132
        $region26: #{_lambda_.12} parent=11 // pred_check_branch
          %252 = sbr.rel (%p250) target = $region28
        $region27: #{_lambda_.12} parent=11 // pred_region
          %s254 = ssub.s32 16, 16
          %255 = vsyncadd [#allocation9], %s254
          %s257 = sshll.u32 [#allocation10], 4
          %s258 = int_to_ptr.vmem [resolvable:$true] %s257
          %260 = dma.hbm_to_vmem [thread:$0]  %s4, 16, %s258, [#allocation9]
        $region28: #{_lambda_.12} parent=11 // pred_fallthru
          _
        // Predicated region
        $region29: #{_lambda_.12} parent=11 // pred_check
          %p261 = pneg %p153
        $region30: #{_lambda_.12} parent=11 // pred_check_branch
          %263 = sbr.rel (%p261) target = $region32
        $region31: #{_lambda_.12} parent=11 // pred_region
          %s265 = ssub.s32 512, 512
          %266 = vsyncadd [#allocation12], %s265
          %s267 = sshll.u32 [#allocation11], 4
          %s268 = int_to_ptr.vmem [resolvable:$true] %s267
          %273 = dma.hbm_to_vmem [thread:$0]  %s5, 512, %s268, [#allocation12], 64, 64, 4
        $region32: #{_lambda_.12} parent=11 // pred_fallthru
          _
        // Predicated region
        $region33: #{_lambda_.12} parent=11 // pred_check
          %p274 = pneg %p174
        $region34: #{_lambda_.12} parent=11 // pred_check_branch
          %276 = sbr.rel (%p274) target = $region36
        $region35: #{_lambda_.12} parent=11 // pred_region
          %s278 = ssub.s32 16, 16
          %279 = vsyncadd [#allocation12], %s278
          %s281 = sshll.u32 [#allocation13], 4
          %s282 = int_to_ptr.vmem [resolvable:$true] %s281
          %284 = dma.hbm_to_vmem [thread:$0]  %s6, 16, %s282, [#allocation12]
        $region36: #{_lambda_.12} parent=11 // pred_fallthru
          _
      $region12: #{_lambda_.12} parent=5 // pred_fallthru
        _
      %p285 = scmp.lt.s32.totalorder %s22, 2
      // Predicated region
      $region37: #{_lambda_.12} parent=5 // pred_check
        %p286 = pneg %p285
      $region38: #{_lambda_.12} parent=5 // pred_check_branch
        %288 = sbr.rel (%p286) target = $region40
      $region39: #{_lambda_.12} parent=5 // pred_region
        // Predicated region
        $region41: #{_lambda_.12} parent=39 // pred_check
          %p289 = pneg %p42
        $region42: #{_lambda_.12} parent=39 // pred_check_branch
          %291 = sbr.rel (%p289) target = $region44
        $region43: #{_lambda_.12} parent=39 // pred_region
          %s292 = sand.u32 %s32, 1
          %s293 = scalar_lea.sflag [#allocation3], %s292
          %s294 = sand.u32 %s32, 1
          %s295 = smul.addr %s294, 12
          %s296 = scalar_lea.vmem [#allocation2], %s295
          %s298 = ssub.s32 192, 192
          %299 = vsyncadd %s293, %s298
          %s300 = smul.addr %s22, 3
          %s301 = smul.addr %s300, 64
          %s302 = scalar_lea.hbm %s0, %s301
          %s303 = sshll.u32 %s296, 4
          %s304 = int_to_ptr.vmem [resolvable:$true] %s303
          %309 = dma.hbm_to_vmem [thread:$0]  %s302, 192, %s304, %s293, 64, 64, 4
        $region44: #{_lambda_.12} parent=39 // pred_fallthru
          _
      $region40: #{_lambda_.12} parent=5 // pred_fallthru
        _
      %p310 = scmp.le.s32.totalorder 1, %s22
      %p311 = scmp.lt.s32.totalorder %s22, 3
      %p312 = pnand %p310, %p311
      %p313 = pneg %p312
      // Predicated region
      $region45: #{_lambda_.12} parent=5 // pred_check
        _
      $region46: #{_lambda_.12} parent=5 // pred_check_branch
        %315 = sbr.rel (%p312) target = $region48
      $region47: #{_lambda_.12} parent=5 // pred_region
        %s316 = ssub.s32 %s22, 1
        %s317 = sand.u32 %s35, 1
        %s318 = scalar_lea.sflag [#allocation3], %s317
        %s319 = sand.u32 %s35, 1
        %s320 = smul.addr %s319, 12
        %s321 = scalar_lea.vmem [#allocation2], %s320
        // Predicated region
        $region49: #{_lambda_.12} parent=47 // pred_check
          %p322 = pneg %p48
        $region50: #{_lambda_.12} parent=47 // pred_check_branch
          %324 = sbr.rel (%p322) target = $region52
        $region51: #{_lambda_.12} parent=47 // pred_region
          %325 = dma.done %s318, 192
        $region52: #{_lambda_.12} parent=47 // pred_fallthru
          _
        // Predicated region
        $region53: #{_lambda_.12} parent=47 // pred_check
          %p326 = pneg %p69
        $region54: #{_lambda_.12} parent=47 // pred_check_branch
          %328 = sbr.rel (%p326) target = $region56
        $region55: #{_lambda_.12} parent=47 // pred_region
          %329 = dma.done [#allocation6], 16
        $region56: #{_lambda_.12} parent=47 // pred_fallthru
          _
        // Predicated region
        $region57: #{_lambda_.12} parent=47 // pred_check
          %p330 = pneg %p90
        $region58: #{_lambda_.12} parent=47 // pred_check_branch
          %332 = sbr.rel (%p330) target = $region60
        $region59: #{_lambda_.12} parent=47 // pred_region
          %333 = dma.done [#allocation6], 16
        $region60: #{_lambda_.12} parent=47 // pred_fallthru
          _
        // Predicated region
        $region61: #{_lambda_.12} parent=47 // pred_check
          %p334 = pneg %p111
        $region62: #{_lambda_.12} parent=47 // pred_check_branch
          %336 = sbr.rel (%p334) target = $region64
        $region63: #{_lambda_.12} parent=47 // pred_region
          %337 = dma.done [#allocation9], 256
        $region64: #{_lambda_.12} parent=47 // pred_fallthru
          _
        // Predicated region
        $region65: #{_lambda_.12} parent=47 // pred_check
          %p338 = pneg %p132
        $region66: #{_lambda_.12} parent=47 // pred_check_branch
          %340 = sbr.rel (%p338) target = $region68
        $region67: #{_lambda_.12} parent=47 // pred_region
          %341 = dma.done [#allocation9], 16
        $region68: #{_lambda_.12} parent=47 // pred_fallthru
          _
        // Predicated region
        $region69: #{_lambda_.12} parent=47 // pred_check
          %p342 = pneg %p153
        $region70: #{_lambda_.12} parent=47 // pred_check_branch
          %344 = sbr.rel (%p342) target = $region72
        $region71: #{_lambda_.12} parent=47 // pred_region
          %345 = dma.done [#allocation12], 512
        $region72: #{_lambda_.12} parent=47 // pred_fallthru
          _
        // Predicated region
        $region73: #{_lambda_.12} parent=47 // pred_check
          %p346 = pneg %p174
        $region74: #{_lambda_.12} parent=47 // pred_check_branch
          %348 = sbr.rel (%p346) target = $region76
        $region75: #{_lambda_.12} parent=47 // pred_region
          %349 = dma.done [#allocation12], 16
        $region76: #{_lambda_.12} parent=47 // pred_fallthru
          _
        %s350 = sand.u32 %s35, 1
        %s351 = scalar_lea.sflag [#allocation3], %s350
        %s352 = sand.u32 %s35, 1
        %s353 = smul.addr %s352, 12
        %s354 = scalar_lea.vmem [#allocation2], %s353
        %p355 = pneg %p48
        %p356 = pneg %p45
        %p357 = pneg %p69
        %p358 = pneg %p66
        %p359 = pneg %p90
        %p360 = pneg %p87
        %p361 = pneg %p111
        %p362 = pneg %p108
        %p363 = pneg %p132
        %p364 = pneg %p129
        %p365 = pneg %p153
        %p366 = pneg %p150
        %p367 = pneg %p174
        %p368 = pneg %p171
        %p369 = pneg %p200
        %p370 = pneg %p197
        %s371 = sand.u32 %s187, 1
        %s372 = scalar_lea.sflag [#allocation4], %s371
        %s373 = sand.u32 %s187, 1
        %s374 = smul.addr %s373, 12
        %s375 = scalar_lea.vmem [#allocation14], %s374
        %v377 = vld [vmem:[%s321] sm:$0xf]
        %v378 = vld [vmem:[%s321 + $0x4] sm:$0xf]
        %v379 = vld [vmem:[%s321 + $0x8] sm:$0x1]
        %v380 = vunpack.c.l.bf16 %v377
        %v381 = vunpack.c.l.bf16 %v378
        %v382 = vunpack.c.l.bf16 %v379
        %v383 = vld [vmem:[#allocation5] sm:$0x1]
        %v384 = vld [vmem:[#allocation7] sm:$0x1]
        %vm385 = vcmask 261120
        %v386 = vsel %vm385, %v380, 0.0
        %387 = vadd.xlane.f32.xlu0 %v386
        %v388 = vpop.xlane.xlu0 %387
        %v389 = vsel %vm385, %v381, 0.0
        %390 = vadd.xlane.f32.xlu0 %v389
        %v391 = vpop.xlane.xlu0 %390
        %vm392 = vcmask 253952
        %v393 = vsel %vm392, %v382, 0.0
        %394 = vadd.xlane.f32.xlu0 %v393
        %v395 = vpop.xlane.xlu0 %394
        %v396 = vrcp.pop 32.0
        %v397 = vmul.f32 %v388, %v396
        %v398 = vmul.f32 %v391, %v396
        %v399 = vmul.f32 %v395, %v396
        %v400 = vsub.f32 %v380, %v397
        %v401 = vsub.f32 %v381, %v398
        %v402 = vsub.f32 %v382, %v399
        %v403 = vmul.f32 %v400, %v400
        %v404 = vmul.f32 %v401, %v401
        %v405 = vmul.f32 %v402, %v402
        %v406 = vsel %vm385, %v403, 0.0
        %407 = vadd.xlane.f32.xlu0 %v406
        %v408 = vpop.xlane.xlu0 %407
        %v409 = vsel %vm385, %v404, 0.0
        %410 = vadd.xlane.f32.xlu0 %v409
        %v411 = vpop.xlane.xlu0 %410
        %v412 = vsel %vm392, %v405, 0.0
        %413 = vadd.xlane.f32.xlu0 %v412
        %v414 = vpop.xlane.xlu0 %413
        %v415 = vmul.f32 %v408, %v396
        %v416 = vmul.f32 %v411, %v396
        %v417 = vmul.f32 %v414, %v396
        %v418 = vadd.f32 %v415, 1e-05
        %v419 = vadd.f32 %v416, 1e-05
        %v420 = vadd.f32 %v417, 1e-05
        %v421 = vrsqrt.pop %v418
        %v422 = vrsqrt.pop %v419
        %v423 = vrsqrt.pop %v420
        %v424 = vmul.f32 %v400, %v421
        %v425 = vmul.f32 %v401, %v422
        %v426 = vmul.f32 %v402, %v423
        %v428 = vlaneseq
        %v429 = vshrl.u32 %v428, 7
        %v430 = vsub.s32 0, %v429
        %v431 = vrot.slane %v383, %v430
        %v433 = vmul.f32 %v424, %v431
        %v434 = vmul.f32 %v425, %v431
        %v435 = vmul.f32 %v426, %v431
        %v437 = vlaneseq
        %v438 = vshrl.u32 %v437, 7
        %v439 = vsub.s32 0, %v438
        %v440 = vrot.slane %v384, %v439
        %v442 = vadd.f32 %v433, %v440
        %v443 = vadd.f32 %v434, %v440
        %v444 = vadd.f32 %v435, %v440
        %v445 = vpack.c.bf16 %v443, %v442
        %v446 = vpack.c.bf16 %v444, %v444
        %v447 = vld [vmem:[#allocation8] sm:$0xf]
        %v448 = vld [vmem:[#allocation8 + $0x4] sm:$0xf]
        %v449 = vld [vmem:[#allocation8 + $0x8] sm:$0xf]
        %v450 = vld [vmem:[#allocation8 + $0xc] sm:$0xf]
        %v451 = vld [vmem:[#allocation10] sm:$0x1]
        %v453 = vlaneseq
        %v454 = vshrl.u32 %v453, 7
        %v455 = vsub.s32 0, %v454
        %v456 = vrot.slane %v451, %v455
        %v462 = vunpack.c.l.b16 %v447
        %v463 = vunpack.c.l.b16 %v448
        %v464 = vunpack.c.l.b16 %v449
        %v465 = vunpack.c.l.b16 %v450
        %v466 = vpack.c.b16 %v463, %v462
        %v467 = vpack.c.b16 %v465, %v464
        %v471 = vsel %vm385, %v445, 0
        %v474 = vsel %vm385, %v446, 0
        %476 = vmatprep.subr.bf16.mxu0 0
        %477 = vmatpush1.bf16.msra.mxu0 %v466
        %478 = vmatprep.subr.bf16.mxu0 0
        %479 = vmatpush1.bf16.msra.mxu0 %v467
        %480 = vmatprep.subr.bf16.mxu0 0
        %481 = vmatpush1.bf16.msra.mxu0 0
        %482 = vmatprep.subr.bf16.mxu0 0
        %483 = vmatpush1.bf16.msra.mxu0 0
        %484 = vmatprep.subr.bf16.mxu0 0
        %485 = vmatpush1.bf16.msra.mxu0 0
        %486 = vmatprep.subr.bf16.mxu0 0
        %487 = vmatpush1.bf16.msra.mxu0 0
        %488 = vmatprep.subr.bf16.mxu0 0
        %489 = vmatpush1.bf16.msra.mxu0 0
        %490 = vmatprep.subr.bf16.mxu0 0
        %491 = vmatpush1.bf16.msra.mxu0 0
        %492 = vmatprep.subr.bf16.mxu0 0
        %493 = vmatpush1.bf16.msra.mxu0 0
        %494 = vmatprep.subr.bf16.mxu0 0
        %495 = vmatpush1.bf16.msra.mxu0 0
        %496 = vmatprep.subr.bf16.mxu0 0
        %497 = vmatpush1.bf16.msra.mxu0 0
        %498 = vmatprep.subr.bf16.mxu0 0
        %499 = vmatpush1.bf16.msra.mxu0 0
        %500 = vmatprep.subr.bf16.mxu0 0
        %501 = vmatpush1.bf16.msra.mxu0 0
        %502 = vmatprep.subr.bf16.mxu0 0
        %503 = vmatpush1.bf16.msra.mxu0 0
        %504 = vmatprep.subr.bf16.mxu0 0
        %505 = vmatpush1.bf16.msra.mxu0 0
        %506 = vmatprep.subr.bf16.mxu0 0
        %507 = vmatpush1.bf16.msra.mxu0 0
        %508 = vmatprep.mubr.bf16.mxu0 0
        %509 = vmatmul.mubr.bf16.gmra.mrb[0].mxu0 %v471
        %v510 = vpop.f32.mrb[0].mxu0
        %v511 = vadd.f32 %v456, %v510
        %v512 = vpop.f32.mrb[0].mxu0
        %v513 = vpop.f32.mrb[0].mxu0
        %v514 = vadd.f32 %v456, %v513
        %v515 = vpop.f32.mrb[0].mxu0
        %516 = vmatprep.mubr.bf16.mxu0 0
        %517 = vmatmul.mubr.bf16.gmra.mrb[0].mxu0 %v474
        %v518 = vpop.f32.mrb[0].mxu0
        %v519 = vadd.f32 %v456, %v518
        %v520 = vpop.f32.mrb[0].mxu0
        %v521 = vpop.f32.mrb[0].mxu0
        %v522 = vpop.f32.mrb[0].mxu0
        %523 = vdwg.mxu0
        %v524 = vmul.f32 %v511, 0.5
        %v525 = vmul.f32 %v514, 0.5
        %v526 = vmul.f32 %v519, 0.5
        %v527 = vmul.f32 %v511, 0.044715
        %v528 = vmul.f32 %v514, 0.044715
        %v529 = vmul.f32 %v519, 0.044715
        %v530 = vmul.f32 %v527, %v511
        %v531 = vmul.f32 %v528, %v514
        %v532 = vmul.f32 %v529, %v519
        %v533 = vmul.f32 %v530, %v511
        %v534 = vmul.f32 %v531, %v514
        %v535 = vmul.f32 %v532, %v519
        %v536 = vadd.f32 %v511, %v533
        %v537 = vadd.f32 %v514, %v534
        %v538 = vadd.f32 %v519, %v535
        %v539 = vmul.f32 %v536, 0.7978846
        %v540 = vmul.f32 %v537, 0.7978846
        %v541 = vmul.f32 %v538, 0.7978846
        %v542 = vtanh.pop %v539
        %v543 = vtanh.pop %v540
        %v544 = vtanh.pop %v541
        %v545 = vadd.f32 %v542, 1.0
        %v546 = vadd.f32 %v543, 1.0
        %v547 = vadd.f32 %v544, 1.0
        %v548 = vmul.f32 %v524, %v545
        %v549 = vmul.f32 %v525, %v546
        %v550 = vmul.f32 %v526, %v547
        %v551 = vpack.c.bf16 %v549, %v548
        %v552 = vpack.c.bf16 %v550, %v550
        %v553 = vld [vmem:[#allocation11] sm:$0xf]
        %v554 = vld [vmem:[#allocation11 + $0x4] sm:$0xf]
        %v555 = vld [vmem:[#allocation11 + $0x8] sm:$0xf]
        %v556 = vld [vmem:[#allocation11 + $0xc] sm:$0xf]
        %v557 = vld [vmem:[#allocation11 + $0x10] sm:$0xf]
        %v558 = vld [vmem:[#allocation11 + $0x14] sm:$0xf]
        %v559 = vld [vmem:[#allocation11 + $0x18] sm:$0xf]
        %v560 = vld [vmem:[#allocation11 + $0x1c] sm:$0xf]
        %v561 = vld [vmem:[#allocation13] sm:$0x1]
        %v563 = vlaneseq
        %v564 = vshrl.u32 %v563, 7
        %v565 = vsub.s32 0, %v564
        %v566 = vrot.slane %v561, %v565
        %v576 = vunpack.c.l.b16 %v553
        %v577 = vunpack.c.l.b16 %v554
        %v578 = vunpack.c.l.b16 %v555
        %v579 = vunpack.c.l.b16 %v556
        %v580 = vunpack.c.l.b16 %v557
        %v581 = vunpack.c.l.b16 %v558
        %v582 = vunpack.c.l.b16 %v559
        %v583 = vunpack.c.l.b16 %v560
        %v584 = vpack.c.b16 %v577, %v576
        %v585 = vpack.c.b16 %v579, %v578
        %v586 = vpack.c.b16 %v581, %v580
        %v587 = vpack.c.b16 %v583, %v582
        %vm592 = vcmask 523264
        %v594 = vsel %vm592, %v551, 0
        %v597 = vsel %vm592, %v552, 0
        %599 = vmatprep.subr.bf16.mxu0 0
        %600 = vmatpush1.bf16.msra.mxu0 %v584
        %601 = vmatprep.subr.bf16.mxu0 0
        %602 = vmatpush1.bf16.msra.mxu0 %v585
        %603 = vmatprep.subr.bf16.mxu0 0
        %604 = vmatpush1.bf16.msra.mxu0 %v586
        %605 = vmatprep.subr.bf16.mxu0 0
        %606 = vmatpush1.bf16.msra.mxu0 %v587
        %607 = vmatprep.subr.bf16.mxu0 0
        %608 = vmatpush1.bf16.msra.mxu0 0
        %609 = vmatprep.subr.bf16.mxu0 0
        %610 = vmatpush1.bf16.msra.mxu0 0
        %611 = vmatprep.subr.bf16.mxu0 0
        %612 = vmatpush1.bf16.msra.mxu0 0
        %613 = vmatprep.subr.bf16.mxu0 0
        %614 = vmatpush1.bf16.msra.mxu0 0
        %615 = vmatprep.subr.bf16.mxu0 0
        %616 = vmatpush1.bf16.msra.mxu0 0
        %617 = vmatprep.subr.bf16.mxu0 0
        %618 = vmatpush1.bf16.msra.mxu0 0
        %619 = vmatprep.subr.bf16.mxu0 0
        %620 = vmatpush1.bf16.msra.mxu0 0
        %621 = vmatprep.subr.bf16.mxu0 0
        %622 = vmatpush1.bf16.msra.mxu0 0
        %623 = vmatprep.subr.bf16.mxu0 0
        %624 = vmatpush1.bf16.msra.mxu0 0
        %625 = vmatprep.subr.bf16.mxu0 0
        %626 = vmatpush1.bf16.msra.mxu0 0
        %627 = vmatprep.subr.bf16.mxu0 0
        %628 = vmatpush1.bf16.msra.mxu0 0
        %629 = vmatprep.subr.bf16.mxu0 0
        %630 = vmatpush1.bf16.msra.mxu0 0
        %631 = vmatprep.mubr.bf16.mxu0 0
        %632 = vmatmul.mubr.bf16.gmra.mrb[0].mxu0 %v594
        %v633 = vpop.f32.mrb[0].mxu0
        %v634 = vadd.f32 %v566, %v633
        %v635 = vpop.f32.mrb[0].mxu0
        %v636 = vpop.f32.mrb[0].mxu0
        %v637 = vadd.f32 %v566, %v636
        %v638 = vpop.f32.mrb[0].mxu0
        %639 = vmatprep.mubr.bf16.mxu0 0
        %640 = vmatmul.mubr.bf16.gmra.mrb[0].mxu0 %v597
        %v641 = vpop.f32.mrb[0].mxu0
        %v642 = vadd.f32 %v566, %v641
        %v643 = vpop.f32.mrb[0].mxu0
        %v644 = vpop.f32.mrb[0].mxu0
        %v645 = vpop.f32.mrb[0].mxu0
        %646 = vdwg.mxu0
        %v647 = vadd.f32 %v634, %v380
        %v648 = vadd.f32 %v637, %v381
        %v649 = vadd.f32 %v642, %v382
        %v650 = vpack.c.bf16 %v648, %v647
        %v651 = vpack.c.bf16 %v649, %v649
        %v654 = vunpack.c.l.b16 %v650
        %v655 = vunpack.c.h.b16 %v650
        %v656 = vunpack.c.l.b16 %v651
        %v657 = vpack.c.b16 %v654, %v654
        %v658 = vpack.c.b16 %v655, %v655
        %v659 = vpack.c.b16 %v656, %v656
        %vm663 = vcmask 257024
        %664 = vst.msk [vmem:[%s375] sm:$0xf] %vm663, %v657
        %665 = vst.msk [vmem:[%s375 + $0x4] sm:$0xf] %vm663, %v658
        %vm666 = vcmask 253952
        %vm667 = vsmask.f32 256
        %vm668 = vmand %vm666, %vm667
        %v669 = vld [vmem:[%s375 + $0x8] sm:$0x1]
        %v670 = vsel %vm668, %v659, %v669
        %671 = vst [vmem:[%s375 + $0x8] sm:$0x1] %v670
        %s672 = sand.u32 %s187, 1
        %s673 = scalar_lea.sflag [#allocation4], %s672
        %s674 = sand.u32 %s187, 1
        %s675 = smul.addr %s674, 12
        %s676 = scalar_lea.vmem [#allocation14], %s675
        // Predicated region
        $region77: #{_lambda_.12} parent=47 // pred_check
          %p677 = pneg %p197
        $region78: #{_lambda_.12} parent=47 // pred_check_branch
          %679 = sbr.rel (%p677) target = $region80
        $region79: #{_lambda_.12} parent=47 // pred_region
          %s681 = ssub.s32 192, 192
          %682 = vsyncadd %s673, %s681
          %s683 = smul.addr %s27, 3
          %s684 = smul.addr %s683, 64
          %s685 = scalar_lea.hbm %s7, %s684
          %s686 = sshll.u32 %s676, 4
          %s687 = int_to_ptr.vmem [resolvable:$true] %s686
          %692 = dma.vmem_to_hbm [thread:$0]  %s687, 192, %s685, %s673, 64, 64, 4
        $region80: #{_lambda_.12} parent=47 // pred_fallthru
          _
      $region48: #{_lambda_.12} parent=5 // pred_fallthru
        _
      %p693 = scmp.le.s32.totalorder 2, %s22
      // Predicated region
      $region81: #{_lambda_.12} parent=5 // pred_check
        %p694 = pneg %p693
      $region82: #{_lambda_.12} parent=5 // pred_check_branch
        %696 = sbr.rel (%p694) target = $region84
      $region83: #{_lambda_.12} parent=5 // pred_region
        %s697 = ssub.s32 %s22, 2
        // Predicated region
        $region85: #{_lambda_.12} parent=83 // pred_check
          %p698 = pneg %p203
        $region86: #{_lambda_.12} parent=83 // pred_check_branch
          %700 = sbr.rel (%p698) target = $region88
        $region87: #{_lambda_.12} parent=83 // pred_region
          %s701 = sand.u32 %s188, 1
          %s702 = scalar_lea.sflag [#allocation4], %s701
          %s703 = sand.u32 %s188, 1
          %s704 = smul.addr %s703, 12
          %s705 = scalar_lea.vmem [#allocation14], %s704
          %706 = dma.done %s702, 192
        $region88: #{_lambda_.12} parent=83 // pred_fallthru
          _
      $region84: #{_lambda_.12} parent=5 // pred_fallthru
        _
    $region6: #{_lambda_.12} parent=1 // loop_footer
      %s26 = sadd.s32 1, %s22
    $region7: #{_lambda_.12} parent=1 // loop_footer_branch
      %21 = sbr.rel target = $region3
    $region8: #{_lambda_.12} parent=1 // loop_exit
      _
    %707 = vsyncpa [#allocation3], 1
    %s708 = scalar_lea.sflag [#allocation3], 1
    %709 = vsyncpa %s708, 1
    %710 = vsyncpa [#allocation6], 1
    %711 = vsyncpa [#allocation9], 1
    %712 = vsyncpa [#allocation12], 1
    %713 = vsyncpa [#allocation4], 1
    %s714 = scalar_lea.sflag [#allocation4], 1
    %715 = vsyncpa %s714, 1

// kernel: _lambda_.19
$region0: #{_lambda_.19}
  #allocation0 [shape = 'u32[]', space=smem, size = 0x4, offset = 0x4, fixed_abs, tag = 'smem constant byte address 0x4 - core index']
  #allocation1 [shape = 'u32[144,128]{1,0:T(1,128)}', space=vmem, size = 0x12000, scoped, tag = 'internal scratch']
  %s0 = inlined_call_operand.hbm [shape: bf16[4,2,32], index: 0, kind: input, shape index: {}]
  %s1 = inlined_call_operand.hbm [shape: f32[4,1,32], index: 1, kind: input, shape index: {}]
  %s2 = inlined_call_operand.hbm [shape: f32[4,1,32], index: 2, kind: input, shape index: {}]
  %s3 = inlined_call_operand.hbm [shape: bf16[4,32,128], index: 3, kind: input, shape index: {}]
  %s4 = inlined_call_operand.hbm [shape: f32[4,1,128], index: 4, kind: input, shape index: {}]
  %s5 = inlined_call_operand.hbm [shape: f32[4,2,128], index: 5, kind: output, shape index: {}]
  %s6 = sld [smem:[#allocation0]]
  $region73: #{_lambda_.19} parent=0
    _
  %s8 = ssub.s32 1, %s6
  %s9 = scalar_select 0, %s8, %s6
  $region1: #{_lambda_.19} parent=0
    #allocation2 [shape = 'u8[1024]{0}', space=vmem, size = 0x400, scoped, tag = 'input window, operand 0']
    #allocation3 [shape = 's32[2]{0}', space=sflag, size = 0x8, scoped, tag = 'scoped memory for _lambda_.19']
    #allocation4 [shape = 's32[2]{0}', space=sflag, size = 0x8, scoped, tag = 'scoped memory for _lambda_.19']
    #allocation5 [shape = 'u8[1024]{0}', space=vmem, size = 0x400, scoped, tag = 'input window, operand 1']
    #allocation6 [shape = 's32[2]{0}', space=sflag, size = 0x8, scoped, tag = 'scoped memory for _lambda_.19']
    #allocation7 [shape = 'u8[1024]{0}', space=vmem, size = 0x400, scoped, tag = 'input window, operand 2']
    #allocation8 [shape = 'u8[16384]{0}', space=vmem, size = 0x4000, scoped, tag = 'input window, operand 3']
    #allocation9 [shape = 's32[2]{0}', space=sflag, size = 0x8, scoped, tag = 'scoped memory for _lambda_.19']
    #allocation10 [shape = 'u8[1024]{0}', space=vmem, size = 0x400, scoped, tag = 'input window, operand 4']
    #allocation11 [shape = 'u8[2048]{0}', space=vmem, size = 0x800, scoped, tag = 'output window, operand 0']
    %10 = vsyncpa [#allocation3], 0
    %s11 = scalar_lea.sflag [#allocation3], 1
    %12 = vsyncpa %s11, 0
    %13 = vsyncpa [#allocation6], 0
    %s14 = scalar_lea.sflag [#allocation6], 1
    %15 = vsyncpa %s14, 0
    %16 = vsyncpa [#allocation9], 0
    %s17 = scalar_lea.sflag [#allocation9], 1
    %18 = vsyncpa %s17, 0
    %19 = vsyncpa [#allocation4], 0
    %s20 = scalar_lea.sflag [#allocation4], 1
    %21 = vsyncpa %s20, 0
    loop: start=0, step=1, limit=6
    $region2: #{_lambda_.19} parent=1 // loop_pre_header
      _
    $region3: #{_lambda_.19} parent=1 // loop_header
      %s23 = sphi 0, %s27
      %p24 = scmp.ge.s32.totalorder %s23, 6
      %s33 = sphi 0, %s35
      %s36 = sphi 0, %s33
      %s37 = sphi 0, %s36
      %s53 = sphi 0, %s37
      %s59 = sphi 0, %s61
      %s62 = sphi 0, %s59
      %s63 = sphi 0, %s62
      %s79 = sphi 0, %s63
      %s85 = sphi 0, %s87
      %s88 = sphi 0, %s85
      %s89 = sphi 0, %s88
      %s105 = sphi 0, %s89
      %s111 = sphi 0, %s113
      %s114 = sphi 0, %s111
      %s115 = sphi 0, %s114
      %s131 = sphi 0, %s115
      %s137 = sphi 0, %s139
      %s140 = sphi 0, %s137
      %s141 = sphi 0, %s140
      %s157 = sphi 0, %s141
      %s163 = sphi 0, %s165
      %s166 = sphi 0, %s163
      %s167 = sphi 0, %s166
      %s183 = sphi 0, %s167
    $region4: #{_lambda_.19} parent=1 // loop_header_branch
      %26 = sbr.rel (%p24) target = $region8
    $region5: #{_lambda_.19} parent=1 // loop_body
      %s28 = ssub.s32 %s23, 1
      %s29 = ssub.s32 %s23, 2
      %s30 = sadd.s32 %s23, 1
      %s31 = ssub.s32 %s23, %s30
      %p32 = scmp.eq.s32.totalorder %s31, 0
      %s34 = sadd.s32 %s33, 1
      %s35 = scalar_select %p32, %s33, %s34
      %p38 = pneg %p32
      %p39 = scmp.eq.s32.totalorder %s23, 3
      %p40 = por %p38, %p39
      %p41 = scmp.ne.s32.totalorder %s33, %s36
      %p42 = scmp.eq.s32.totalorder %s23, 0
      %p43 = por %p41, %p42
      %p44 = scmp.ne.s32.totalorder %s33, %s36
      %p45 = scmp.eq.s32.totalorder %s28, 3
      %p46 = por %p44, %p45
      %p47 = scmp.ne.s32.totalorder %s36, %s37
      %p48 = scmp.eq.s32.totalorder %s28, 0
      %p49 = por %p47, %p48
      %p50 = scmp.ne.s32.totalorder %s36, %s37
      %p51 = scmp.eq.s32.totalorder %s29, 3
      %p52 = por %p50, %p51
      %p54 = scmp.ne.s32.totalorder %s37, %s53
      %p55 = scmp.eq.s32.totalorder %s29, 0
      %p56 = por %p54, %p55
      %s57 = ssub.s32 %s23, %s30
      %p58 = scmp.eq.s32.totalorder %s57, 0
      %s60 = sadd.s32 %s59, 1
      %s61 = scalar_select %p58, %s59, %s60
      %p64 = pneg %p58
      %p65 = scmp.eq.s32.totalorder %s23, 3
      %p66 = por %p64, %p65
      %p67 = scmp.ne.s32.totalorder %s59, %s62
      %p68 = scmp.eq.s32.totalorder %s23, 0
      %p69 = por %p67, %p68
      %p70 = scmp.ne.s32.totalorder %s59, %s62
      %p71 = scmp.eq.s32.totalorder %s28, 3
      %p72 = por %p70, %p71
      %p73 = scmp.ne.s32.totalorder %s62, %s63
      %p74 = scmp.eq.s32.totalorder %s28, 0
      %p75 = por %p73, %p74
      %p76 = scmp.ne.s32.totalorder %s62, %s63
      %p77 = scmp.eq.s32.totalorder %s29, 3
      %p78 = por %p76, %p77
      %p80 = scmp.ne.s32.totalorder %s63, %s79
      %p81 = scmp.eq.s32.totalorder %s29, 0
      %p82 = por %p80, %p81
      %s83 = ssub.s32 %s23, %s30
      %p84 = scmp.eq.s32.totalorder %s83, 0
      %s86 = sadd.s32 %s85, 1
      %s87 = scalar_select %p84, %s85, %s86
      %p90 = pneg %p84
      %p91 = scmp.eq.s32.totalorder %s23, 3
      %p92 = por %p90, %p91
      %p93 = scmp.ne.s32.totalorder %s85, %s88
      %p94 = scmp.eq.s32.totalorder %s23, 0
      %p95 = por %p93, %p94
      %p96 = scmp.ne.s32.totalorder %s85, %s88
      %p97 = scmp.eq.s32.totalorder %s28, 3
      %p98 = por %p96, %p97
      %p99 = scmp.ne.s32.totalorder %s88, %s89
      %p100 = scmp.eq.s32.totalorder %s28, 0
      %p101 = por %p99, %p100
      %p102 = scmp.ne.s32.totalorder %s88, %s89
      %p103 = scmp.eq.s32.totalorder %s29, 3
      %p104 = por %p102, %p103
      %p106 = scmp.ne.s32.totalorder %s89, %s105
      %p107 = scmp.eq.s32.totalorder %s29, 0
      %p108 = por %p106, %p107
      %s109 = ssub.s32 %s23, %s30
      %p110 = scmp.eq.s32.totalorder %s109, 0
      %s112 = sadd.s32 %s111, 1
      %s113 = scalar_select %p110, %s111, %s112
      %p116 = pneg %p110
      %p117 = scmp.eq.s32.totalorder %s23, 3
      %p118 = por %p116, %p117
      %p119 = scmp.ne.s32.totalorder %s111, %s114
      %p120 = scmp.eq.s32.totalorder %s23, 0
      %p121 = por %p119, %p120
      %p122 = scmp.ne.s32.totalorder %s111, %s114
      %p123 = scmp.eq.s32.totalorder %s28, 3
      %p124 = por %p122, %p123
      %p125 = scmp.ne.s32.totalorder %s114, %s115
      %p126 = scmp.eq.s32.totalorder %s28, 0
      %p127 = por %p125, %p126
      %p128 = scmp.ne.s32.totalorder %s114, %s115
      %p129 = scmp.eq.s32.totalorder %s29, 3
      %p130 = por %p128, %p129
      %p132 = scmp.ne.s32.totalorder %s115, %s131
      %p133 = scmp.eq.s32.totalorder %s29, 0
      %p134 = por %p132, %p133
      %s135 = ssub.s32 %s23, %s30
      %p136 = scmp.eq.s32.totalorder %s135, 0
      %s138 = sadd.s32 %s137, 1
      %s139 = scalar_select %p136, %s137, %s138
      %p142 = pneg %p136
      %p143 = scmp.eq.s32.totalorder %s23, 3
      %p144 = por %p142, %p143
      %p145 = scmp.ne.s32.totalorder %s137, %s140
      %p146 = scmp.eq.s32.totalorder %s23, 0
      %p147 = por %p145, %p146
      %p148 = scmp.ne.s32.totalorder %s137, %s140
      %p149 = scmp.eq.s32.totalorder %s28, 3
      %p150 = por %p148, %p149
      %p151 = scmp.ne.s32.totalorder %s140, %s141
      %p152 = scmp.eq.s32.totalorder %s28, 0
      %p153 = por %p151, %p152
      %p154 = scmp.ne.s32.totalorder %s140, %s141
      %p155 = scmp.eq.s32.totalorder %s29, 3
      %p156 = por %p154, %p155
      %p158 = scmp.ne.s32.totalorder %s141, %s157
      %p159 = scmp.eq.s32.totalorder %s29, 0
      %p160 = por %p158, %p159
      %s161 = ssub.s32 %s23, %s30
      %p162 = scmp.eq.s32.totalorder %s161, 0
      %s164 = sadd.s32 %s163, 1
      %s165 = scalar_select %p162, %s163, %s164
      %p168 = pneg %p162
      %p169 = scmp.eq.s32.totalorder %s23, 3
      %p170 = por %p168, %p169
      %p171 = scmp.ne.s32.totalorder %s163, %s166
      %p172 = scmp.eq.s32.totalorder %s23, 0
      %p173 = por %p171, %p172
      %p174 = scmp.ne.s32.totalorder %s163, %s166
      %p175 = scmp.eq.s32.totalorder %s28, 3
      %p176 = por %p174, %p175
      %p177 = scmp.ne.s32.totalorder %s166, %s167
      %p178 = scmp.eq.s32.totalorder %s28, 0
      %p179 = por %p177, %p178
      %p180 = scmp.ne.s32.totalorder %s166, %s167
      %p181 = scmp.eq.s32.totalorder %s29, 3
      %p182 = por %p180, %p181
      %p184 = scmp.ne.s32.totalorder %s167, %s183
      %p185 = scmp.eq.s32.totalorder %s29, 0
      %p186 = por %p184, %p185
      %p187 = scmp.le.s32.totalorder 1, %s23
      %p188 = scmp.lt.s32.totalorder %s23, 5
      %p189 = pnand %p187, %p188
      %p190 = pneg %p189
      // Predicated region
      $region9: #{_lambda_.19} parent=5 // pred_check
        _
      $region10: #{_lambda_.19} parent=5 // pred_check_branch
        %192 = sbr.rel (%p189) target = $region12
      $region11: #{_lambda_.19} parent=5 // pred_region
        %s193 = ssub.s32 %s23, 1
      $region12: #{_lambda_.19} parent=5 // pred_fallthru
        _
      %p194 = scmp.lt.s32.totalorder %s23, 4
      // Predicated region
      $region13: #{_lambda_.19} parent=5 // pred_check
        %p195 = pneg %p194
      $region14: #{_lambda_.19} parent=5 // pred_check_branch
        %197 = sbr.rel (%p195) target = $region16
      $region15: #{_lambda_.19} parent=5 // pred_region
        // Predicated region
        $region17: #{_lambda_.19} parent=15 // pred_check
          %p198 = pneg %p43
        $region18: #{_lambda_.19} parent=15 // pred_check_branch
          %200 = sbr.rel (%p198) target = $region20
        $region19: #{_lambda_.19} parent=15 // pred_region
          %s201 = sand.u32 %s33, 1
          %s202 = scalar_lea.sflag [#allocation3], %s201
          %s203 = sand.u32 %s33, 1
          %s204 = scalar_lea.vmem [#allocation2], %s203
          %s206 = ssub.s32 16, 16
          %207 = vsyncadd %s202, %s206
          %s208 = smul.addr %s23, 16
          %s209 = scalar_lea.hbm %s0, %s208
          %s211 = sshll.u32 %s204, 4
          %s212 = int_to_ptr.vmem [resolvable:$true] %s211
          %214 = dma.hbm_to_vmem [thread:$0]  %s209, 16, %s212, %s202
        $region20: #{_lambda_.19} parent=15 // pred_fallthru
          _
        // Predicated region
        $region21: #{_lambda_.19} parent=15 // pred_check
          %p215 = pneg %p69
        $region22: #{_lambda_.19} parent=15 // pred_check_branch
          %217 = sbr.rel (%p215) target = $region24
        $region23: #{_lambda_.19} parent=15 // pred_region
          %s218 = sand.u32 %s23, 1
          %s219 = scalar_lea.sflag [#allocation6], %s218
          %s220 = sand.u32 %s59, 1
          %s221 = scalar_lea.vmem [#allocation5], %s220
          %s223 = ssub.s32 16, 16
          %224 = vsyncadd %s219, %s223
          %s225 = smul.addr %s23, 16
          %s226 = scalar_lea.hbm %s1, %s225
          %s228 = sshll.u32 %s221, 4
          %s229 = int_to_ptr.vmem [resolvable:$true] %s228
          %231 = dma.hbm_to_vmem [thread:$0]  %s226, 16, %s229, %s219
        $region24: #{_lambda_.19} parent=15 // pred_fallthru
          _
        // Predicated region
        $region25: #{_lambda_.19} parent=15 // pred_check
          %p232 = pneg %p95
        $region26: #{_lambda_.19} parent=15 // pred_check_branch
          %234 = sbr.rel (%p232) target = $region28
        $region27: #{_lambda_.19} parent=15 // pred_region
          %s235 = sand.u32 %s23, 1
          %s236 = scalar_lea.sflag [#allocation6], %s235
          %s237 = sand.u32 %s85, 1
          %s238 = scalar_lea.vmem [#allocation7], %s237
          %s240 = ssub.s32 16, 16
          %241 = vsyncadd %s236, %s240
          %s242 = smul.addr %s23, 16
          %s243 = scalar_lea.hbm %s2, %s242
          %s245 = sshll.u32 %s238, 4
          %s246 = int_to_ptr.vmem [resolvable:$true] %s245
          %248 = dma.hbm_to_vmem [thread:$0]  %s243, 16, %s246, %s236
        $region28: #{_lambda_.19} parent=15 // pred_fallthru
          _
        // Predicated region
        $region29: #{_lambda_.19} parent=15 // pred_check
          %p249 = pneg %p121
        $region30: #{_lambda_.19} parent=15 // pred_check_branch
          %251 = sbr.rel (%p249) target = $region32
        $region31: #{_lambda_.19} parent=15 // pred_region
          %s252 = sand.u32 %s23, 1
          %s253 = scalar_lea.sflag [#allocation9], %s252
          %s254 = sand.u32 %s111, 1
          %s255 = smul.addr %s254, 16
          %s256 = scalar_lea.vmem [#allocation8], %s255
          %s258 = ssub.s32 256, 256
          %259 = vsyncadd %s253, %s258
          %s260 = smul.addr %s23, 4
          %s261 = smul.addr %s260, 64
          %s262 = scalar_lea.hbm %s3, %s261
          %s263 = sshll.u32 %s256, 4
          %s264 = int_to_ptr.vmem [resolvable:$true] %s263
          %269 = dma.hbm_to_vmem [thread:$0]  %s262, 256, %s264, %s253, 64, 64, 4
        $region32: #{_lambda_.19} parent=15 // pred_fallthru
          _
        // Predicated region
        $region33: #{_lambda_.19} parent=15 // pred_check
          %p270 = pneg %p147
        $region34: #{_lambda_.19} parent=15 // pred_check_branch
          %272 = sbr.rel (%p270) target = $region36
        $region35: #{_lambda_.19} parent=15 // pred_region
          %s273 = sand.u32 %s23, 1
          %s274 = scalar_lea.sflag [#allocation9], %s273
          %s275 = sand.u32 %s137, 1
          %s276 = scalar_lea.vmem [#allocation10], %s275
          %s278 = ssub.s32 16, 16
          %279 = vsyncadd %s274, %s278
          %s280 = smul.addr %s23, 16
          %s281 = scalar_lea.hbm %s4, %s280
          %s283 = sshll.u32 %s276, 4
          %s284 = int_to_ptr.vmem [resolvable:$true] %s283
          %286 = dma.hbm_to_vmem [thread:$0]  %s281, 16, %s284, %s274
        $region36: #{_lambda_.19} parent=15 // pred_fallthru
          _
      $region16: #{_lambda_.19} parent=5 // pred_fallthru
        _
      %p287 = scmp.le.s32.totalorder 1, %s23
      %p288 = scmp.lt.s32.totalorder %s23, 5
      %p289 = pnand %p287, %p288
      %p290 = pneg %p289
      // Predicated region
      $region37: #{_lambda_.19} parent=5 // pred_check
        _
      $region38: #{_lambda_.19} parent=5 // pred_check_branch
        %292 = sbr.rel (%p289) target = $region40
      $region39: #{_lambda_.19} parent=5 // pred_region
        %s293 = ssub.s32 %s23, 1
        %s294 = sand.u32 %s36, 1
        %s295 = scalar_lea.sflag [#allocation3], %s294
        %s296 = sand.u32 %s36, 1
        %s297 = scalar_lea.vmem [#allocation2], %s296
        // Predicated region
        $region41: #{_lambda_.19} parent=39 // pred_check
          %p298 = pneg %p49
        $region42: #{_lambda_.19} parent=39 // pred_check_branch
          %300 = sbr.rel (%p298) target = $region44
        $region43: #{_lambda_.19} parent=39 // pred_region
          %301 = dma.done %s295, 16
        $region44: #{_lambda_.19} parent=39 // pred_fallthru
          _
        %s302 = sand.u32 %s28, 1
        %s303 = scalar_lea.sflag [#allocation6], %s302
        %s304 = sand.u32 %s62, 1
        %s305 = scalar_lea.vmem [#allocation5], %s304
        // Predicated region
        $region45: #{_lambda_.19} parent=39 // pred_check
          %p306 = pneg %p75
        $region46: #{_lambda_.19} parent=39 // pred_check_branch
          %308 = sbr.rel (%p306) target = $region48
        $region47: #{_lambda_.19} parent=39 // pred_region
          %309 = dma.done %s303, 16
        $region48: #{_lambda_.19} parent=39 // pred_fallthru
          _
        %s310 = sand.u32 %s28, 1
        %s311 = scalar_lea.sflag [#allocation6], %s310
        %s312 = sand.u32 %s88, 1
        %s313 = scalar_lea.vmem [#allocation7], %s312
        // Predicated region
        $region49: #{_lambda_.19} parent=39 // pred_check
          %p314 = pneg %p101
        $region50: #{_lambda_.19} parent=39 // pred_check_branch
          %316 = sbr.rel (%p314) target = $region52
        $region51: #{_lambda_.19} parent=39 // pred_region
          %317 = dma.done %s311, 16
        $region52: #{_lambda_.19} parent=39 // pred_fallthru
          _
        %s318 = sand.u32 %s28, 1
        %s319 = scalar_lea.sflag [#allocation9], %s318
        %s320 = sand.u32 %s114, 1
        %s321 = smul.addr %s320, 16
        %s322 = scalar_lea.vmem [#allocation8], %s321
        // Predicated region
        $region53: #{_lambda_.19} parent=39 // pred_check
          %p323 = pneg %p127
        $region54: #{_lambda_.19} parent=39 // pred_check_branch
          %325 = sbr.rel (%p323) target = $region56
        $region55: #{_lambda_.19} parent=39 // pred_region
          %326 = dma.done %s319, 256
        $region56: #{_lambda_.19} parent=39 // pred_fallthru
          _
        %s327 = sand.u32 %s28, 1
        %s328 = scalar_lea.sflag [#allocation9], %s327
        %s329 = sand.u32 %s140, 1
        %s330 = scalar_lea.vmem [#allocation10], %s329
        // Predicated region
        $region57: #{_lambda_.19} parent=39 // pred_check
          %p331 = pneg %p153
        $region58: #{_lambda_.19} parent=39 // pred_check_branch
          %333 = sbr.rel (%p331) target = $region60
        $region59: #{_lambda_.19} parent=39 // pred_region
          %334 = dma.done %s328, 16
        $region60: #{_lambda_.19} parent=39 // pred_fallthru
          _
        %s335 = sand.u32 %s36, 1
        %s336 = scalar_lea.sflag [#allocation3], %s335
        %s337 = sand.u32 %s36, 1
        %s338 = scalar_lea.vmem [#allocation2], %s337
        %p339 = pneg %p49
        %p340 = pneg %p46
        %s341 = sand.u32 %s28, 1
        %s342 = scalar_lea.sflag [#allocation6], %s341
        %s343 = sand.u32 %s62, 1
        %s344 = scalar_lea.vmem [#allocation5], %s343
        %p345 = pneg %p75
        %p346 = pneg %p72
        %s347 = sand.u32 %s28, 1
        %s348 = scalar_lea.sflag [#allocation6], %s347
        %s349 = sand.u32 %s88, 1
        %s350 = scalar_lea.vmem [#allocation7], %s349
        %p351 = pneg %p101
        %p352 = pneg %p98
        %s353 = sand.u32 %s28, 1
        %s354 = scalar_lea.sflag [#allocation9], %s353
        %s355 = sand.u32 %s114, 1
        %s356 = smul.addr %s355, 16
        %s357 = scalar_lea.vmem [#allocation8], %s356
        %p358 = pneg %p127
        %p359 = pneg %p124
        %s360 = sand.u32 %s28, 1
        %s361 = scalar_lea.sflag [#allocation9], %s360
        %s362 = sand.u32 %s140, 1
        %s363 = scalar_lea.vmem [#allocation10], %s362
        %p364 = pneg %p153
        %p365 = pneg %p150
        %p366 = pneg %p179
        %p367 = pneg %p176
        %s368 = sand.u32 %s166, 1
        %s369 = scalar_lea.sflag [#allocation4], %s368
        %s370 = sand.u32 %s166, 1
        %s371 = smul.addr %s370, 2
        %s372 = scalar_lea.vmem [#allocation11], %s371
        %v374 = vld [vmem:[%s297] sm:$0x1]
        %v375 = vunpack.c.l.bf16 %v374
        %v376 = vld [vmem:[%s305] sm:$0x1]
        %v377 = vld [vmem:[%s313] sm:$0x1]
        %vm378 = vcmask 254976
        %v379 = vsel %vm378, %v375, 0.0
        %380 = vadd.xlane.f32.xlu0 %v379
        %v381 = vpop.xlane.xlu0 %380
        %v382 = vrcp.pop 32.0
        %v383 = vmul.f32 %v381, %v382
        %v384 = vsub.f32 %v375, %v383
        %v385 = vmul.f32 %v384, %v384
        %v386 = vsel %vm378, %v385, 0.0
        %387 = vadd.xlane.f32.xlu0 %v386
        %v388 = vpop.xlane.xlu0 %387
        %v389 = vmul.f32 %v388, %v382
        %v390 = vadd.f32 %v389, 1e-05
        %v391 = vrsqrt.pop %v390
        %v392 = vmul.f32 %v384, %v391
        %v394 = vlaneseq
        %v395 = vshrl.u32 %v394, 7
        %v396 = vsub.s32 0, %v395
        %v397 = vrot.slane %v376, %v396
        %v399 = vmul.f32 %v392, %v397
        %v401 = vlaneseq
        %v402 = vshrl.u32 %v401, 7
        %v403 = vsub.s32 0, %v402
        %v404 = vrot.slane %v377, %v403
        %v406 = vadd.f32 %v399, %v404
        %v407 = vpack.c.bf16 %v406, %v406
        %v408 = vld [vmem:[%s322] sm:$0xf]
        %v409 = vld [vmem:[%s322 + $0x4] sm:$0xf]
        %v410 = vld [vmem:[%s322 + $0x8] sm:$0xf]
        %v411 = vld [vmem:[%s322 + $0xc] sm:$0xf]
        %v412 = vld [vmem:[%s330] sm:$0x1]
        %v414 = vlaneseq
        %v415 = vshrl.u32 %v414, 7
        %v416 = vsub.s32 0, %v415
        %v417 = vrot.slane %v412, %v416
        %v423 = vunpack.c.l.b16 %v408
        %v424 = vunpack.c.l.b16 %v409
        %v425 = vunpack.c.l.b16 %v410
        %v426 = vunpack.c.l.b16 %v411
        %v427 = vpack.c.b16 %v424, %v423
        %v428 = vpack.c.b16 %v426, %v425
        %vm431 = vcmask 261120
        %v433 = vsel %vm431, %v407, 0
        %435 = vmatprep.subr.bf16.mxu0 0
        %436 = vmatpush1.bf16.msra.mxu0 %v427
        %437 = vmatprep.subr.bf16.mxu0 0
        %438 = vmatpush1.bf16.msra.mxu0 %v428
        %439 = vmatprep.subr.bf16.mxu0 0
        %440 = vmatpush1.bf16.msra.mxu0 0
        %441 = vmatprep.subr.bf16.mxu0 0
        %442 = vmatpush1.bf16.msra.mxu0 0
        %443 = vmatprep.subr.bf16.mxu0 0
        %444 = vmatpush1.bf16.msra.mxu0 0
        %445 = vmatprep.subr.bf16.mxu0 0
        %446 = vmatpush1.bf16.msra.mxu0 0
        %447 = vmatprep.subr.bf16.mxu0 0
        %448 = vmatpush1.bf16.msra.mxu0 0
        %449 = vmatprep.subr.bf16.mxu0 0
        %450 = vmatpush1.bf16.msra.mxu0 0
        %451 = vmatprep.subr.bf16.mxu0 0
        %452 = vmatpush1.bf16.msra.mxu0 0
        %453 = vmatprep.subr.bf16.mxu0 0
        %454 = vmatpush1.bf16.msra.mxu0 0
        %455 = vmatprep.subr.bf16.mxu0 0
        %456 = vmatpush1.bf16.msra.mxu0 0
        %457 = vmatprep.subr.bf16.mxu0 0
        %458 = vmatpush1.bf16.msra.mxu0 0
        %459 = vmatprep.subr.bf16.mxu0 0
        %460 = vmatpush1.bf16.msra.mxu0 0
        %461 = vmatprep.subr.bf16.mxu0 0
        %462 = vmatpush1.bf16.msra.mxu0 0
        %463 = vmatprep.subr.bf16.mxu0 0
        %464 = vmatpush1.bf16.msra.mxu0 0
        %465 = vmatprep.subr.bf16.mxu0 0
        %466 = vmatpush1.bf16.msra.mxu0 0
        %467 = vmatprep.mubr.bf16.mxu0 0
        %468 = vmatmul.mubr.bf16.gmra.mrb[0].mxu0 %v433
        %v469 = vpop.f32.mrb[0].mxu0
        %v470 = vadd.f32 %v417, %v469
        %v471 = vpop.f32.mrb[0].mxu0
        %v472 = vpop.f32.mrb[0].mxu0
        %v473 = vpop.f32.mrb[0].mxu0
        %474 = vdwg.mxu0
        %475 = vst [vmem:[%s372] sm:$0x3] %v470
        %s476 = sand.u32 %s166, 1
        %s477 = scalar_lea.sflag [#allocation4], %s476
        %s478 = sand.u32 %s166, 1
        %s479 = smul.addr %s478, 2
        %s480 = scalar_lea.vmem [#allocation11], %s479
        // Predicated region
        $region61: #{_lambda_.19} parent=39 // pred_check
          %p481 = pneg %p176
        $region62: #{_lambda_.19} parent=39 // pred_check_branch
          %483 = sbr.rel (%p481) target = $region64
        $region63: #{_lambda_.19} parent=39 // pred_region
          %s485 = ssub.s32 32, 32
          %486 = vsyncadd %s477, %s485
          %s487 = smul.addr %s28, 32
          %s488 = scalar_lea.hbm %s5, %s487
          %s490 = sshll.u32 %s480, 4
          %s491 = int_to_ptr.vmem [resolvable:$true] %s490
          %493 = dma.vmem_to_hbm [thread:$0]  %s491, 32, %s488, %s477
        $region64: #{_lambda_.19} parent=39 // pred_fallthru
          _
      $region40: #{_lambda_.19} parent=5 // pred_fallthru
        _
      %p494 = scmp.le.s32.totalorder 2, %s23
      // Predicated region
      $region65: #{_lambda_.19} parent=5 // pred_check
        %p495 = pneg %p494
      $region66: #{_lambda_.19} parent=5 // pred_check_branch
        %497 = sbr.rel (%p495) target = $region68
      $region67: #{_lambda_.19} parent=5 // pred_region
        %s498 = ssub.s32 %s23, 2
        // Predicated region
        $region69: #{_lambda_.19} parent=67 // pred_check
          %p499 = pneg %p182
        $region70: #{_lambda_.19} parent=67 // pred_check_branch
          %501 = sbr.rel (%p499) target = $region72
        $region71: #{_lambda_.19} parent=67 // pred_region
          %s502 = sand.u32 %s167, 1
          %s503 = scalar_lea.sflag [#allocation4], %s502
          %s504 = sand.u32 %s167, 1
          %s505 = smul.addr %s504, 2
          %s506 = scalar_lea.vmem [#allocation11], %s505
          %507 = dma.done %s503, 32
        $region72: #{_lambda_.19} parent=67 // pred_fallthru
          _
      $region68: #{_lambda_.19} parent=5 // pred_fallthru
        _
    $region6: #{_lambda_.19} parent=1 // loop_footer
      %s27 = sadd.s32 1, %s23
    $region7: #{_lambda_.19} parent=1 // loop_footer_branch
      %22 = sbr.rel target = $region3
    $region8: #{_lambda_.19} parent=1 // loop_exit
      _
    %508 = vsyncpa [#allocation3], 1
    %s509 = scalar_lea.sflag [#allocation3], 1
    %510 = vsyncpa %s509, 1
    %511 = vsyncpa [#allocation6], 1
    %s512 = scalar_lea.sflag [#allocation6], 1
    %513 = vsyncpa %s512, 1
    %514 = vsyncpa [#allocation9], 1
    %s515 = scalar_lea.sflag [#allocation9], 1
    %516 = vsyncpa %s515, 1
    %517 = vsyncpa [#allocation4], 1
    %s518 = scalar_lea.sflag [#allocation4], 1
    %519 = vsyncpa %s518, 1

</llo_original>
